<compile_context>
chip_gen: v6e
topology: v6e:2x2x1
jax: 0.10.0
libtpu: 0.0.40
codegen_flags: <defaults>
</compile_context>

<pallas_src>
import jax
import jax.numpy as jnp
import numpy as np
from jax.experimental import pallas as pl
from jax.experimental.pallas import tpu as pltpu

EPS = 1e-3


# ----------------------------- helpers --------------------------------------
def _round_up(n, m):
    return ((n + m - 1) // m) * m


def _pad_last(a, new_size):
    pad = new_size - a.shape[-1]
    if pad == 0:
        return a
    cfg = [(0, 0)] * (a.ndim - 1) + [(0, pad)]
    return jnp.pad(a, cfg)


def _pad_gate_cols(a, H, Hp):
    """(..., 4H) -> (..., 4Hp); gate k occupies columns [k*Hp, k*Hp+H)."""
    if Hp == H:
        return a
    parts = jnp.split(a, 4, axis=-1)
    return jnp.concatenate([_pad_last(p, Hp) for p in parts], axis=-1)


def _pick_chunk(T, max_chunk):
    for s in range(min(T, max_chunk), 0, -1):
        if T % s == 0:
            return s
    return 1


# ----------------------------- kernel ----------------------------------------
def _bnlstm_seq_kernel(pre_ih_ref, whh_ref, g_hh_ref, g_c_ref, b_c_ref,
                       h0_ref, c0_ref,
                       hc_ref,
                       h_scr, c_scr):
    @pl.when(pl.program_id(0) == 0)
    def _init():
        h_scr[...] = h0_ref[...]
        c_scr[...] = c0_ref[...]

    S = pre_ih_ref.shape[0]
    Hp = h_scr.shape[1]

    # VMEM-resident params, loaded once per chunk.
    w_hh = whh_ref[...]
    g_hh = g_hh_ref[...]          # (1, 4Hp)
    g_c = g_c_ref[...]            # (1, Hp)
    b_c = b_c_ref[...]            # (1, Hp)

    def sigmoid(x):               # exact rewrite -> a single EUP push
        return 0.5 * (1.0 + jnp.tanh(0.5 * x))

    def step(s, carry):
        h, c = carry

        # Recurrent projection on the MXU, f32 accumulation.
        wh = jnp.dot(h.astype(w_hh.dtype), w_hh,
                     preferred_element_type=jnp.float32)

        # Training-mode BN on wh (biased batch stats); gamma folded into the
        # rsqrt scale, beta pre-folded into the streamed pre_ih slab.
        mean = jnp.mean(wh, axis=0, keepdims=True)
        var = jnp.maximum(
            jnp.mean(wh * wh, axis=0, keepdims=True) - mean * mean, 0.0)
        pre = (wh - mean) * (g_hh * jax.lax.rsqrt(var + EPS)) \
            + pre_ih_ref[s].astype(jnp.float32)          # (B, 4Hp)

        # Gate slices are lane-aligned (offsets are multiples of 128).
        f = pre[:, 0 * Hp:1 * Hp]
        i = pre[:, 1 * Hp:2 * Hp]
        o = pre[:, 2 * Hp:3 * Hp]
        g = pre[:, 3 * Hp:4 * Hp]

        c1 = sigmoid(f) * c + sigmoid(i) * jnp.tanh(g)

        mc = jnp.mean(c1, axis=0, keepdims=True)
        vc = jnp.maximum(
            jnp.mean(c1 * c1, axis=0, keepdims=True) - mc * mc, 0.0)
        bn_c1 = (c1 - mc) * (g_c * jax.lax.rsqrt(vc + EPS)) + b_c
        h1 = sigmoid(o) * jnp.tanh(bn_c1)

        # Lane-dense stores: each tensor starts at lane offset 0.
        hc_ref[s, 0] = h1.astype(hc_ref.dtype)
        hc_ref[s, 1] = c1.astype(hc_ref.dtype)
        return (h1, c1)

    h_fin, c_fin = jax.lax.fori_loop(0, S, step,
                                     (h_scr[...], c_scr[...]),
                                     unroll=True)
    # carry state in VMEM scratch across grid steps
    h_scr[...] = h_fin
    c_scr[...] = c_fin


# ----------------------------- wrapper ---------------------------------------
def bnlstm_sequence(x_seq, h0, c0, w_ih, w_hh, bias,
                    g_ih, b_ih, g_hh, b_hh, g_c, b_c,
                    *, compute_dtype=jnp.float32, max_steps_per_block=8):
    """Run the BN-LSTM cell over a whole (T, B, in) sequence in one kernel."""
    T, B, IN = x_seq.shape
    H = h0.shape[1]
    Hp = _round_up(H, 128)        # lane-aligned per-gate width
    Gp = 4 * Hp
    f32 = jnp.float32

    # --- pad parameters to the lane-aligned gate layout (zeros in pad lanes;
    #     padded state lanes then stay exactly zero through the recurrence) ---
    w_ih_p = _pad_gate_cols(w_ih.astype(f32), H, Hp)                 # (IN, Gp)
    w_hh_p = _pad_gate_cols(w_hh.astype(f32), H, Hp)                 # (H, Gp)
    w_hh_p = jnp.pad(w_hh_p, ((0, Hp - H), (0, 0)))                  # (Hp, Gp)
    beta = (bias.reshape(-1) + b_ih.reshape(-1)
            + b_hh.reshape(-1)).astype(f32)
    beta_p = _pad_gate_cols(beta, H, Hp)                             # (Gp,)
    g_ih_p = _pad_gate_cols(g_ih.reshape(-1).astype(f32), H, Hp)     # (Gp,)
    g_hh_p = _pad_gate_cols(g_hh.reshape(-1).astype(f32), H, Hp).reshape(1, Gp)
    g_c_p = _pad_last(g_c.reshape(-1).astype(f32), Hp).reshape(1, Hp)
    b_c_p = _pad_last(b_c.reshape(-1).astype(f32), Hp).reshape(1, Hp)
    h0_p = _pad_last(h0.astype(f32), Hp)                             # (B, Hp)
    c0_p = _pad_last(c0.astype(f32), Hp)                             # (B, Hp)

    # --- hoist the full input-side path out of the recurrence ---------------
    # One big (T*B, IN) @ (IN, Gp) matmul, then per-timestep training BN with
    # the beta terms folded in. This is the only per-step HBM stream into the
    # kernel, so it is cast to compute_dtype (bf16 halves the DMA bytes).
    wi_all = jnp.dot(x_seq.reshape(T * B, IN).astype(compute_dtype),
                     w_ih_p.astype(compute_dtype),
                     preferred_element_type=jnp.float32).reshape(T, B, Gp)
    mean = jnp.mean(wi_all, axis=1, keepdims=True)                   # (T,1,Gp)
    cen = wi_all - mean
    var = jnp.mean(cen * cen, axis=1, keepdims=True)
    pre_ih = cen * (g_ih_p * jax.lax.rsqrt(var + EPS)) + beta_p      # (T,B,Gp)
    pre_ih = pre_ih.astype(compute_dtype)

    whh = w_hh_p.astype(compute_dtype)

    # --- time chunking -------------------------------------------------------
    S = _pick_chunk(T, max_steps_per_block)
    grid = (T // S,)

    # Constant index_map => block fetched once, resident in VMEM for the whole
    # sequence (no per-step weight DMA).
    def resident(shape):
        n = len(shape)
        return pl.BlockSpec(shape, lambda t, n=n: (0,) * n)

    hc = pl.pallas_call(
        _bnlstm_seq_kernel,
        grid=grid,
        in_specs=[
            pl.BlockSpec((S, B, Gp), lambda t: (t, 0, 0)),   # streamed pre_ih
            resident((Hp, Gp)),                              # w_hh
            resident((1, Gp)),                               # g_hh
            resident((1, Hp)), resident((1, Hp)),            # g_c, b_c
            resident((B, Hp)), resident((B, Hp)),            # h0, c0
        ],
        out_specs=pl.BlockSpec((S, 2, B, Hp), lambda t: (t, 0, 0, 0)),
        out_shape=jax.ShapeDtypeStruct((T, 2, B, Hp), jnp.float32),
        scratch_shapes=[pltpu.VMEM((B, Hp), jnp.float32),    # h carry
                        pltpu.VMEM((B, Hp), jnp.float32)],   # c carry
        compiler_params=pltpu.CompilerParams(
            # sequential carry across time chunks -> must be "arbitrary"
            dimension_semantics=("arbitrary",)),
    )(pre_ih, whh, g_hh_p, g_c_p, b_c_p, h0_p, c0_p)

    return hc[:, 0, :, :H], hc[:, 1, :, :H]


def bnlstm_cell(x, h0, c0, *params, **kw):
    """Single-timestep call, equivalent to BNLSTMCell.forward (training BN)."""
    h_seq, c_seq = bnlstm_sequence(x[None], h0, c0, *params, **kw)
    return h_seq[0], c_seq[0]


# ----------------------------- pure-JAX reference ----------------------------
def bnlstm_cell_ref(x, h0, c0, w_ih, w_hh, bias, g_ih, b_ih, g_hh, b_hh,
                    g_c, b_c):
    def bn(v, gamma, beta):
        mean = jnp.mean(v, axis=0, keepdims=True)
        var = jnp.mean((v - mean) ** 2, axis=0, keepdims=True)
        return (v - mean) / jnp.sqrt(var + EPS) * gamma + beta

    wi = x @ w_ih
    wh = h0 @ w_hh
    pre = bn(wh, g_hh, b_hh) + bn(wi, g_ih, b_ih) + bias
    f, i, o, g = jnp.split(pre, 4, axis=1)
    c1 = jax.nn.sigmoid(f) * c0 + jax.nn.sigmoid(i) * jnp.tanh(g)
    h1 = jax.nn.sigmoid(o) * jnp.tanh(bn(c1, g_c, b_c))
    return h1, c1


def bnlstm_sequence_ref(x_seq, h0, c0, *params):
    hs, cs = [], []
    h, c = h0, c0
    for t in range(x_seq.shape[0]):
        h, c = bnlstm_cell_ref(x_seq[t], h, c, *params)
        hs.append(h)
        cs.append(c)
    return jnp.stack(hs), jnp.stack(cs)


# ----------------------------- demo / checks ---------------------------------
if __name__ == "__main__":
    key = jax.random.PRNGKey(0)
    k_x, k_h, k_c, k_w = jax.random.split(key, 4)

    T, B, IN, H = 16, 8, 16, 32     # T=16 with S=8 -> grid=(2,): exercises
    G = 4 * H                       # both chunking and cross-chunk carry

    x_seq = jax.random.normal(k_x, (T, B, IN), dtype=jnp.float32)
    h0 = jax.random.normal(k_h, (B, H), dtype=jnp.float32)
    c0 = jax.random.normal(k_c, (B, H), dtype=jnp.float32)

    # parameters mirroring BNLSTMCell.reset_parameters (deterministic)
    w_ih = jax.nn.initializers.orthogonal()(k_w, (IN, G), jnp.float32)
    w_hh = jnp.tile(jnp.eye(H, dtype=jnp.float32), (1, 4))       # (H, 4H)
    bias = jnp.zeros((G,), dtype=jnp.float32)
    g_ih = jnp.full((G,), 0.1, dtype=jnp.float32)
    b_ih = jnp.zeros((G,), dtype=jnp.float32)
    g_hh = jnp.full((G,), 0.1, dtype=jnp.float32)
    b_hh = jnp.zeros((G,), dtype=jnp.float32)
    g_c = jnp.full((H,), 0.1, dtype=jnp.float32)
    b_c = jnp.zeros((H,), dtype=jnp.float32)

    params = (w_ih, w_hh, bias, g_ih, b_ih, g_hh, b_hh, g_c, b_c)

    # fused-sequence kernel, f32 matmuls / f32 stream -> tight check
    h_seq, c_seq = jax.block_until_ready(
        bnlstm_sequence(x_seq, h0, c0, *params))
    h_ref, c_ref = bnlstm_sequence_ref(x_seq, h0, c0, *params)
    np.testing.assert_allclose(np.asarray(h_seq), np.asarray(h_ref),
                               rtol=1e-4, atol=1e-4)
    np.testing.assert_allclose(np.asarray(c_seq), np.asarray(c_ref),
                               rtol=1e-4, atol=1e-4)

    # bf16 matmul operands + bf16 pre_ih stream (MXU-native on v6e/v7x),
    # f32 accumulation and f32 elementwise -> loose check
    h_bf, c_bf = jax.block_until_ready(
        bnlstm_sequence(x_seq, h0, c0, *params, compute_dtype=jnp.bfloat16))
    np.testing.assert_allclose(np.asarray(h_bf), np.asarray(h_ref),
                               rtol=5e-2, atol=5e-2)
    np.testing.assert_allclose(np.asarray(c_bf), np.asarray(c_ref),
                               rtol=5e-2, atol=5e-2)

    # single-timestep call = BNLSTMCell.forward
    h1, c1 = jax.block_until_ready(bnlstm_cell(x_seq[0], h0, c0, *params))
    h1_ref, c1_ref = bnlstm_cell_ref(x_seq[0], h0, c0, *params)
    np.testing.assert_allclose(np.asarray(h1), np.asarray(h1_ref),
                               rtol=1e-4, atol=1e-4)
    np.testing.assert_allclose(np.asarray(c1), np.asarray(c1_ref),
                               rtol=1e-4, atol=1e-4)

    print("KERNEL_OK")
</pallas_src>

<mosaic_0001>
module attributes {stable_mosaic.version = 11 : i64} {
  func.func @_bnlstm_seq_kernel(%arg0: i32, %arg1: memref<8x8x512xf32, #tpu.memory_space<vmem>>, %arg2: memref<128x512xf32, #tpu.memory_space<vmem>>, %arg3: memref<1x512xf32, #tpu.memory_space<vmem>>, %arg4: memref<1x128xf32, #tpu.memory_space<vmem>>, %arg5: memref<1x128xf32, #tpu.memory_space<vmem>>, %arg6: memref<8x128xf32, #tpu.memory_space<vmem>>, %arg7: memref<8x128xf32, #tpu.memory_space<vmem>>, %arg8: memref<8x2x8x128xf32, #tpu.memory_space<vmem>>, %arg9: memref<8x128xf32, #tpu.memory_space<vmem>>, %arg10: memref<8x128xf32, #tpu.memory_space<vmem>>) attributes {dimension_semantics = [#tpu.dimension_semantics<arbitrary>], iteration_bounds = array<i64: 2>, scalar_prefetch = 0 : i64, scratch_operands = 2 : i64, tpu.core_type = #tpu.core_type<tc>, window_params = [{transform_indices = @transform_0, window_bounds = array<i64: 8, 8, 512>}, {pipeline_mode = #tpu.pipeline_mode<synchronous>, transform_indices = @transform_1, window_bounds = array<i64: 128, 512>}, {pipeline_mode = #tpu.pipeline_mode<synchronous>, transform_indices = @transform_2, window_bounds = array<i64: 1, 512>}, {pipeline_mode = #tpu.pipeline_mode<synchronous>, transform_indices = @transform_3, window_bounds = array<i64: 1, 128>}, {pipeline_mode = #tpu.pipeline_mode<synchronous>, transform_indices = @transform_4, window_bounds = array<i64: 1, 128>}, {pipeline_mode = #tpu.pipeline_mode<synchronous>, transform_indices = @transform_5, window_bounds = array<i64: 8, 128>}, {pipeline_mode = #tpu.pipeline_mode<synchronous>, transform_indices = @transform_6, window_bounds = array<i64: 8, 128>}, {transform_indices = @transform_7, window_bounds = array<i64: 8, 2, 8, 128>}]} {
    %c0_i32 = arith.constant 0 : i32
    %0 = arith.cmpi eq, %arg0, %c0_i32 : i32
    %1 = arith.extui %0 : i1 to i32
    %c0_i32_0 = arith.constant 0 : i32
    %2 = arith.cmpi ne, %1, %c0_i32_0 : i32
    scf.if %2 {
      %c0_255 = arith.constant 0 : index
      %c0_256 = arith.constant 0 : index
      %715 = vector.load %arg6[%c0_255, %c0_256] : memref<8x128xf32, #tpu.memory_space<vmem>>, vector<8x128xf32>
      %c0_257 = arith.constant 0 : index
      %c0_258 = arith.constant 0 : index
      %716 = vector.load %arg9[%c0_257, %c0_258] : memref<8x128xf32, #tpu.memory_space<vmem>>, vector<8x128xf32>
      tpu.vector_store %arg9[%c0_257, %c0_258], %715 {strides = array<i32>} : memref<8x128xf32, #tpu.memory_space<vmem>>, vector<8x128xf32>,
      %c0_259 = arith.constant 0 : index
      %c0_260 = arith.constant 0 : index
      %717 = vector.load %arg7[%c0_259, %c0_260] : memref<8x128xf32, #tpu.memory_space<vmem>>, vector<8x128xf32>
      %c0_261 = arith.constant 0 : index
      %c0_262 = arith.constant 0 : index
      %718 = vector.load %arg10[%c0_261, %c0_262] : memref<8x128xf32, #tpu.memory_space<vmem>>, vector<8x128xf32>
      tpu.vector_store %arg10[%c0_261, %c0_262], %717 {strides = array<i32>} : memref<8x128xf32, #tpu.memory_space<vmem>>, vector<8x128xf32>,
    } else {
    }
    %c0 = arith.constant 0 : index
    %c0_1 = arith.constant 0 : index
    %3 = vector.load %arg2[%c0, %c0_1] : memref<128x512xf32, #tpu.memory_space<vmem>>, vector<128x512xf32>
    %c0_2 = arith.constant 0 : index
    %c0_3 = arith.constant 0 : index
    %4 = vector.load %arg3[%c0_2, %c0_3] : memref<1x512xf32, #tpu.memory_space<vmem>>, vector<1x512xf32>
    %c0_4 = arith.constant 0 : index
    %c0_5 = arith.constant 0 : index
    %5 = vector.load %arg4[%c0_4, %c0_5] : memref<1x128xf32, #tpu.memory_space<vmem>>, vector<1x128xf32>
    %c0_6 = arith.constant 0 : index
    %c0_7 = arith.constant 0 : index
    %6 = vector.load %arg5[%c0_6, %c0_7] : memref<1x128xf32, #tpu.memory_space<vmem>>, vector<1x128xf32>
    %c0_8 = arith.constant 0 : index
    %c0_9 = arith.constant 0 : index
    %7 = vector.load %arg9[%c0_8, %c0_9] : memref<8x128xf32, #tpu.memory_space<vmem>>, vector<8x128xf32>
    %c0_10 = arith.constant 0 : index
    %c0_11 = arith.constant 0 : index
    %8 = vector.load %arg10[%c0_10, %c0_11] : memref<8x128xf32, #tpu.memory_space<vmem>>, vector<8x128xf32>
    %c0_i32_12 = arith.constant 0 : i32
    %cst = arith.constant dense<0.000000e+00> : vector<8x512xf32>
    %9 = tpu.matmul %7, %3, %cst {dimension_numbers = #tpu.dot_dimension_numbers<[1], [0], [0], [1], [0, 0, 1, 1], [], []>} : vector<8x128xf32>, vector<128x512xf32>, vector<8x512xf32> -> vector<8x512xf32>
    %cst_13 = arith.constant dense<0.000000e+00> : vector<512xf32>
    %10 = vector.multi_reduction <add>, %9, %cst_13 [0] : vector<8x512xf32> to vector<512xf32>
    %11 = vector.shape_cast %10 : vector<512xf32> to vector<1x512xf32>
    %cst_14 = arith.constant 8.000000e+00 : f32
    %12 = vector.broadcast %cst_14 : f32 to vector<1x512xf32>
    %13 = arith.divf %11, %12 : vector<1x512xf32>
    %14 = arith.mulf %9, %9 : vector<8x512xf32>
    %cst_15 = arith.constant dense<0.000000e+00> : vector<512xf32>
    %15 = vector.multi_reduction <add>, %14, %cst_15 [0] : vector<8x512xf32> to vector<512xf32>
    %16 = vector.shape_cast %15 : vector<512xf32> to vector<1x512xf32>
    %cst_16 = arith.constant 8.000000e+00 : f32
    %17 = vector.broadcast %cst_16 : f32 to vector<1x512xf32>
    %18 = arith.divf %16, %17 : vector<1x512xf32>
    %19 = arith.mulf %13, %13 : vector<1x512xf32>
    %20 = arith.subf %18, %19 : vector<1x512xf32>
    %cst_17 = arith.constant 0.000000e+00 : f32
    %21 = vector.broadcast %cst_17 : f32 to vector<1x512xf32>
    %22 = arith.maximumf %20, %21 : vector<1x512xf32>
    %23 = vector.broadcast %13 : vector<1x512xf32> to vector<8x512xf32>
    %24 = arith.subf %9, %23 : vector<8x512xf32>
    %cst_18 = arith.constant 1.000000e-03 : f32
    %25 = vector.broadcast %cst_18 : f32 to vector<1x512xf32>
    %26 = arith.addf %22, %25 : vector<1x512xf32>
    %27 = math.rsqrt %26 : vector<1x512xf32>
    %28 = arith.mulf %4, %27 : vector<1x512xf32>
    %29 = vector.broadcast %28 : vector<1x512xf32> to vector<8x512xf32>
    %30 = arith.mulf %24, %29 : vector<8x512xf32>
    %31 = arith.index_cast %c0_i32_12 : i32 to index
    %c0_19 = arith.constant 0 : index
    %c0_20 = arith.constant 0 : index
    %32 = vector.load %arg1[%31, %c0_19, %c0_20] : memref<8x8x512xf32, #tpu.memory_space<vmem>>, vector<1x8x512xf32>
    %33 = vector.shape_cast %32 : vector<1x8x512xf32> to vector<8x512xf32>
    %34 = arith.addf %30, %33 : vector<8x512xf32>
    %35 = vector.extract_strided_slice %34 {offsets = [0, 0], sizes = [8, 128], strides = [1, 1]} : vector<8x512xf32> to vector<8x128xf32>
    %36 = vector.extract_strided_slice %34 {offsets = [0, 128], sizes = [8, 128], strides = [1, 1]} : vector<8x512xf32> to vector<8x128xf32>
    %37 = vector.extract_strided_slice %34 {offsets = [0, 256], sizes = [8, 128], strides = [1, 1]} : vector<8x512xf32> to vector<8x128xf32>
    %38 = vector.extract_strided_slice %34 {offsets = [0, 384], sizes = [8, 128], strides = [1, 1]} : vector<8x512xf32> to vector<8x128xf32>
    %cst_21 = arith.constant 5.000000e-01 : f32
    %39 = vector.broadcast %cst_21 : f32 to vector<8x128xf32>
    %40 = arith.mulf %39, %35 : vector<8x128xf32>
    %41 = math.tanh %40 : vector<8x128xf32>
    %cst_22 = arith.constant 1.000000e+00 : f32
    %42 = vector.broadcast %cst_22 : f32 to vector<8x128xf32>
    %43 = arith.addf %42, %41 : vector<8x128xf32>
    %cst_23 = arith.constant 5.000000e-01 : f32
    %44 = vector.broadcast %cst_23 : f32 to vector<8x128xf32>
    %45 = arith.mulf %44, %43 : vector<8x128xf32>
    %46 = arith.mulf %45, %8 : vector<8x128xf32>
    %cst_24 = arith.constant 5.000000e-01 : f32
    %47 = vector.broadcast %cst_24 : f32 to vector<8x128xf32>
    %48 = arith.mulf %47, %36 : vector<8x128xf32>
    %49 = math.tanh %48 : vector<8x128xf32>
    %cst_25 = arith.constant 1.000000e+00 : f32
    %50 = vector.broadcast %cst_25 : f32 to vector<8x128xf32>
    %51 = arith.addf %50, %49 : vector<8x128xf32>
    %cst_26 = arith.constant 5.000000e-01 : f32
    %52 = vector.broadcast %cst_26 : f32 to vector<8x128xf32>
    %53 = arith.mulf %52, %51 : vector<8x128xf32>
    %54 = math.tanh %38 : vector<8x128xf32>
    %55 = arith.mulf %53, %54 : vector<8x128xf32>
    %56 = arith.addf %46, %55 : vector<8x128xf32>
    %cst_27 = arith.constant dense<0.000000e+00> : vector<128xf32>
    %57 = vector.multi_reduction <add>, %56, %cst_27 [0] : vector<8x128xf32> to vector<128xf32>
    %58 = vector.shape_cast %57 : vector<128xf32> to vector<1x128xf32>
    %cst_28 = arith.constant 8.000000e+00 : f32
    %59 = vector.broadcast %cst_28 : f32 to vector<1x128xf32>
    %60 = arith.divf %58, %59 : vector<1x128xf32>
    %61 = arith.mulf %56, %56 : vector<8x128xf32>
    %cst_29 = arith.constant dense<0.000000e+00> : vector<128xf32>
    %62 = vector.multi_reduction <add>, %61, %cst_29 [0] : vector<8x128xf32> to vector<128xf32>
    %63 = vector.shape_cast %62 : vector<128xf32> to vector<1x128xf32>
    %cst_30 = arith.constant 8.000000e+00 : f32
    %64 = vector.broadcast %cst_30 : f32 to vector<1x128xf32>
    %65 = arith.divf %63, %64 : vector<1x128xf32>
    %66 = arith.mulf %60, %60 : vector<1x128xf32>
    %67 = arith.subf %65, %66 : vector<1x128xf32>
    %cst_31 = arith.constant 0.000000e+00 : f32
    %68 = vector.broadcast %cst_31 : f32 to vector<1x128xf32>
    %69 = arith.maximumf %67, %68 : vector<1x128xf32>
    %70 = vector.broadcast %60 : vector<1x128xf32> to vector<8x128xf32>
    %71 = arith.subf %56, %70 : vector<8x128xf32>
    %cst_32 = arith.constant 1.000000e-03 : f32
    %72 = vector.broadcast %cst_32 : f32 to vector<1x128xf32>
    %73 = arith.addf %69, %72 : vector<1x128xf32>
    %74 = math.rsqrt %73 : vector<1x128xf32>
    %75 = arith.mulf %5, %74 : vector<1x128xf32>
    %76 = vector.broadcast %75 : vector<1x128xf32> to vector<8x128xf32>
    %77 = arith.mulf %71, %76 : vector<8x128xf32>
    %78 = vector.broadcast %6 : vector<1x128xf32> to vector<8x128xf32>
    %79 = arith.addf %77, %78 : vector<8x128xf32>
    %cst_33 = arith.constant 5.000000e-01 : f32
    %80 = vector.broadcast %cst_33 : f32 to vector<8x128xf32>
    %81 = arith.mulf %80, %37 : vector<8x128xf32>
    %82 = math.tanh %81 : vector<8x128xf32>
    %cst_34 = arith.constant 1.000000e+00 : f32
    %83 = vector.broadcast %cst_34 : f32 to vector<8x128xf32>
    %84 = arith.addf %83, %82 : vector<8x128xf32>
    %cst_35 = arith.constant 5.000000e-01 : f32
    %85 = vector.broadcast %cst_35 : f32 to vector<8x128xf32>
    %86 = arith.mulf %85, %84 : vector<8x128xf32>
    %87 = math.tanh %79 : vector<8x128xf32>
    %88 = arith.mulf %86, %87 : vector<8x128xf32>
    %89 = arith.index_cast %c0_i32_12 : i32 to index
    %c0_36 = arith.constant 0 : index
    %c0_37 = arith.constant 0 : index
    %c0_38 = arith.constant 0 : index
    %90 = vector.load %arg8[%89, %c0_36, %c0_37, %c0_38] : memref<8x2x8x128xf32, #tpu.memory_space<vmem>>, vector<1x1x8x128xf32>
    %91 = vector.shape_cast %90 : vector<1x1x8x128xf32> to vector<8x128xf32>
    %92 = vector.shape_cast %88 : vector<8x128xf32> to vector<1x1x8x128xf32>
    tpu.vector_store %arg8[%89, %c0_36, %c0_37, %c0_38], %92 {strides = array<i32>} : memref<8x2x8x128xf32, #tpu.memory_space<vmem>>, vector<1x1x8x128xf32>,
    %93 = arith.index_cast %c0_i32_12 : i32 to index
    %c1 = arith.constant 1 : index
    %c0_39 = arith.constant 0 : index
    %c0_40 = arith.constant 0 : index
    %94 = vector.load %arg8[%93, %c1, %c0_39, %c0_40] : memref<8x2x8x128xf32, #tpu.memory_space<vmem>>, vector<1x1x8x128xf32>
    %95 = vector.shape_cast %94 : vector<1x1x8x128xf32> to vector<8x128xf32>
    %96 = vector.shape_cast %56 : vector<8x128xf32> to vector<1x1x8x128xf32>
    tpu.vector_store %arg8[%93, %c1, %c0_39, %c0_40], %96 {strides = array<i32>} : memref<8x2x8x128xf32, #tpu.memory_space<vmem>>, vector<1x1x8x128xf32>,
    %c1_i32 = arith.constant 1 : i32
    %cst_41 = arith.constant dense<0.000000e+00> : vector<8x512xf32>
    %97 = tpu.matmul %88, %3, %cst_41 {dimension_numbers = #tpu.dot_dimension_numbers<[1], [0], [0], [1], [0, 0, 1, 1], [], []>} : vector<8x128xf32>, vector<128x512xf32>, vector<8x512xf32> -> vector<8x512xf32>
    %cst_42 = arith.constant dense<0.000000e+00> : vector<512xf32>
    %98 = vector.multi_reduction <add>, %97, %cst_42 [0] : vector<8x512xf32> to vector<512xf32>
    %99 = vector.shape_cast %98 : vector<512xf32> to vector<1x512xf32>
    %cst_43 = arith.constant 8.000000e+00 : f32
    %100 = vector.broadcast %cst_43 : f32 to vector<1x512xf32>
    %101 = arith.divf %99, %100 : vector<1x512xf32>
    %102 = arith.mulf %97, %97 : vector<8x512xf32>
    %cst_44 = arith.constant dense<0.000000e+00> : vector<512xf32>
    %103 = vector.multi_reduction <add>, %102, %cst_44 [0] : vector<8x512xf32> to vector<512xf32>
    %104 = vector.shape_cast %103 : vector<512xf32> to vector<1x512xf32>
    %cst_45 = arith.constant 8.000000e+00 : f32
    %105 = vector.broadcast %cst_45 : f32 to vector<1x512xf32>
    %106 = arith.divf %104, %105 : vector<1x512xf32>
    %107 = arith.mulf %101, %101 : vector<1x512xf32>
    %108 = arith.subf %106, %107 : vector<1x512xf32>
    %cst_46 = arith.constant 0.000000e+00 : f32
    %109 = vector.broadcast %cst_46 : f32 to vector<1x512xf32>
    %110 = arith.maximumf %108, %109 : vector<1x512xf32>
    %111 = vector.broadcast %101 : vector<1x512xf32> to vector<8x512xf32>
    %112 = arith.subf %97, %111 : vector<8x512xf32>
    %cst_47 = arith.constant 1.000000e-03 : f32
    %113 = vector.broadcast %cst_47 : f32 to vector<1x512xf32>
    %114 = arith.addf %110, %113 : vector<1x512xf32>
    %115 = math.rsqrt %114 : vector<1x512xf32>
    %116 = arith.mulf %4, %115 : vector<1x512xf32>
    %117 = vector.broadcast %116 : vector<1x512xf32> to vector<8x512xf32>
    %118 = arith.mulf %112, %117 : vector<8x512xf32>
    %119 = arith.index_cast %c1_i32 : i32 to index
    %c0_48 = arith.constant 0 : index
    %c0_49 = arith.constant 0 : index
    %120 = vector.load %arg1[%119, %c0_48, %c0_49] : memref<8x8x512xf32, #tpu.memory_space<vmem>>, vector<1x8x512xf32>
    %121 = vector.shape_cast %120 : vector<1x8x512xf32> to vector<8x512xf32>
    %122 = arith.addf %118, %121 : vector<8x512xf32>
    %123 = vector.extract_strided_slice %122 {offsets = [0, 0], sizes = [8, 128], strides = [1, 1]} : vector<8x512xf32> to vector<8x128xf32>
    %124 = vector.extract_strided_slice %122 {offsets = [0, 128], sizes = [8, 128], strides = [1, 1]} : vector<8x512xf32> to vector<8x128xf32>
    %125 = vector.extract_strided_slice %122 {offsets = [0, 256], sizes = [8, 128], strides = [1, 1]} : vector<8x512xf32> to vector<8x128xf32>
    %126 = vector.extract_strided_slice %122 {offsets = [0, 384], sizes = [8, 128], strides = [1, 1]} : vector<8x512xf32> to vector<8x128xf32>
    %cst_50 = arith.constant 5.000000e-01 : f32
    %127 = vector.broadcast %cst_50 : f32 to vector<8x128xf32>
    %128 = arith.mulf %127, %123 : vector<8x128xf32>
    %129 = math.tanh %128 : vector<8x128xf32>
    %cst_51 = arith.constant 1.000000e+00 : f32
    %130 = vector.broadcast %cst_51 : f32 to vector<8x128xf32>
    %131 = arith.addf %130, %129 : vector<8x128xf32>
    %cst_52 = arith.constant 5.000000e-01 : f32
    %132 = vector.broadcast %cst_52 : f32 to vector<8x128xf32>
    %133 = arith.mulf %132, %131 : vector<8x128xf32>
    %134 = arith.mulf %133, %56 : vector<8x128xf32>
    %cst_53 = arith.constant 5.000000e-01 : f32
    %135 = vector.broadcast %cst_53 : f32 to vector<8x128xf32>
    %136 = arith.mulf %135, %124 : vector<8x128xf32>
    %137 = math.tanh %136 : vector<8x128xf32>
    %cst_54 = arith.constant 1.000000e+00 : f32
    %138 = vector.broadcast %cst_54 : f32 to vector<8x128xf32>
    %139 = arith.addf %138, %137 : vector<8x128xf32>
    %cst_55 = arith.constant 5.000000e-01 : f32
    %140 = vector.broadcast %cst_55 : f32 to vector<8x128xf32>
    %141 = arith.mulf %140, %139 : vector<8x128xf32>
    %142 = math.tanh %126 : vector<8x128xf32>
    %143 = arith.mulf %141, %142 : vector<8x128xf32>
    %144 = arith.addf %134, %143 : vector<8x128xf32>
    %cst_56 = arith.constant dense<0.000000e+00> : vector<128xf32>
    %145 = vector.multi_reduction <add>, %144, %cst_56 [0] : vector<8x128xf32> to vector<128xf32>
    %146 = vector.shape_cast %145 : vector<128xf32> to vector<1x128xf32>
    %cst_57 = arith.constant 8.000000e+00 : f32
    %147 = vector.broadcast %cst_57 : f32 to vector<1x128xf32>
    %148 = arith.divf %146, %147 : vector<1x128xf32>
    %149 = arith.mulf %144, %144 : vector<8x128xf32>
    %cst_58 = arith.constant dense<0.000000e+00> : vector<128xf32>
    %150 = vector.multi_reduction <add>, %149, %cst_58 [0] : vector<8x128xf32> to vector<128xf32>
    %151 = vector.shape_cast %150 : vector<128xf32> to vector<1x128xf32>
    %cst_59 = arith.constant 8.000000e+00 : f32
    %152 = vector.broadcast %cst_59 : f32 to vector<1x128xf32>
    %153 = arith.divf %151, %152 : vector<1x128xf32>
    %154 = arith.mulf %148, %148 : vector<1x128xf32>
    %155 = arith.subf %153, %154 : vector<1x128xf32>
    %cst_60 = arith.constant 0.000000e+00 : f32
    %156 = vector.broadcast %cst_60 : f32 to vector<1x128xf32>
    %157 = arith.maximumf %155, %156 : vector<1x128xf32>
    %158 = vector.broadcast %148 : vector<1x128xf32> to vector<8x128xf32>
    %159 = arith.subf %144, %158 : vector<8x128xf32>
    %cst_61 = arith.constant 1.000000e-03 : f32
    %160 = vector.broadcast %cst_61 : f32 to vector<1x128xf32>
    %161 = arith.addf %157, %160 : vector<1x128xf32>
    %162 = math.rsqrt %161 : vector<1x128xf32>
    %163 = arith.mulf %5, %162 : vector<1x128xf32>
    %164 = vector.broadcast %163 : vector<1x128xf32> to vector<8x128xf32>
    %165 = arith.mulf %159, %164 : vector<8x128xf32>
    %166 = vector.broadcast %6 : vector<1x128xf32> to vector<8x128xf32>
    %167 = arith.addf %165, %166 : vector<8x128xf32>
    %cst_62 = arith.constant 5.000000e-01 : f32
    %168 = vector.broadcast %cst_62 : f32 to vector<8x128xf32>
    %169 = arith.mulf %168, %125 : vector<8x128xf32>
    %170 = math.tanh %169 : vector<8x128xf32>
    %cst_63 = arith.constant 1.000000e+00 : f32
    %171 = vector.broadcast %cst_63 : f32 to vector<8x128xf32>
    %172 = arith.addf %171, %170 : vector<8x128xf32>
    %cst_64 = arith.constant 5.000000e-01 : f32
    %173 = vector.broadcast %cst_64 : f32 to vector<8x128xf32>
    %174 = arith.mulf %173, %172 : vector<8x128xf32>
    %175 = math.tanh %167 : vector<8x128xf32>
    %176 = arith.mulf %174, %175 : vector<8x128xf32>
    %177 = arith.index_cast %c1_i32 : i32 to index
    %c0_65 = arith.constant 0 : index
    %c0_66 = arith.constant 0 : index
    %c0_67 = arith.constant 0 : index
    %178 = vector.load %arg8[%177, %c0_65, %c0_66, %c0_67] : memref<8x2x8x128xf32, #tpu.memory_space<vmem>>, vector<1x1x8x128xf32>
    %179 = vector.shape_cast %178 : vector<1x1x8x128xf32> to vector<8x128xf32>
    %180 = vector.shape_cast %176 : vector<8x128xf32> to vector<1x1x8x128xf32>
    tpu.vector_store %arg8[%177, %c0_65, %c0_66, %c0_67], %180 {strides = array<i32>} : memref<8x2x8x128xf32, #tpu.memory_space<vmem>>, vector<1x1x8x128xf32>,
    %181 = arith.index_cast %c1_i32 : i32 to index
    %c1_68 = arith.constant 1 : index
    %c0_69 = arith.constant 0 : index
    %c0_70 = arith.constant 0 : index
    %182 = vector.load %arg8[%181, %c1_68, %c0_69, %c0_70] : memref<8x2x8x128xf32, #tpu.memory_space<vmem>>, vector<1x1x8x128xf32>
    %183 = vector.shape_cast %182 : vector<1x1x8x128xf32> to vector<8x128xf32>
    %184 = vector.shape_cast %144 : vector<8x128xf32> to vector<1x1x8x128xf32>
    tpu.vector_store %arg8[%181, %c1_68, %c0_69, %c0_70], %184 {strides = array<i32>} : memref<8x2x8x128xf32, #tpu.memory_space<vmem>>, vector<1x1x8x128xf32>,
    %c2_i32 = arith.constant 2 : i32
    %cst_71 = arith.constant dense<0.000000e+00> : vector<8x512xf32>
    %185 = tpu.matmul %176, %3, %cst_71 {dimension_numbers = #tpu.dot_dimension_numbers<[1], [0], [0], [1], [0, 0, 1, 1], [], []>} : vector<8x128xf32>, vector<128x512xf32>, vector<8x512xf32> -> vector<8x512xf32>
    %cst_72 = arith.constant dense<0.000000e+00> : vector<512xf32>
    %186 = vector.multi_reduction <add>, %185, %cst_72 [0] : vector<8x512xf32> to vector<512xf32>
    %187 = vector.shape_cast %186 : vector<512xf32> to vector<1x512xf32>
    %cst_73 = arith.constant 8.000000e+00 : f32
    %188 = vector.broadcast %cst_73 : f32 to vector<1x512xf32>
    %189 = arith.divf %187, %188 : vector<1x512xf32>
    %190 = arith.mulf %185, %185 : vector<8x512xf32>
    %cst_74 = arith.constant dense<0.000000e+00> : vector<512xf32>
    %191 = vector.multi_reduction <add>, %190, %cst_74 [0] : vector<8x512xf32> to vector<512xf32>
    %192 = vector.shape_cast %191 : vector<512xf32> to vector<1x512xf32>
    %cst_75 = arith.constant 8.000000e+00 : f32
    %193 = vector.broadcast %cst_75 : f32 to vector<1x512xf32>
    %194 = arith.divf %192, %193 : vector<1x512xf32>
    %195 = arith.mulf %189, %189 : vector<1x512xf32>
    %196 = arith.subf %194, %195 : vector<1x512xf32>
    %cst_76 = arith.constant 0.000000e+00 : f32
    %197 = vector.broadcast %cst_76 : f32 to vector<1x512xf32>
    %198 = arith.maximumf %196, %197 : vector<1x512xf32>
    %199 = vector.broadcast %189 : vector<1x512xf32> to vector<8x512xf32>
    %200 = arith.subf %185, %199 : vector<8x512xf32>
    %cst_77 = arith.constant 1.000000e-03 : f32
    %201 = vector.broadcast %cst_77 : f32 to vector<1x512xf32>
    %202 = arith.addf %198, %201 : vector<1x512xf32>
    %203 = math.rsqrt %202 : vector<1x512xf32>
    %204 = arith.mulf %4, %203 : vector<1x512xf32>
    %205 = vector.broadcast %204 : vector<1x512xf32> to vector<8x512xf32>
    %206 = arith.mulf %200, %205 : vector<8x512xf32>
    %207 = arith.index_cast %c2_i32 : i32 to index
    %c0_78 = arith.constant 0 : index
    %c0_79 = arith.constant 0 : index
    %208 = vector.load %arg1[%207, %c0_78, %c0_79] : memref<8x8x512xf32, #tpu.memory_space<vmem>>, vector<1x8x512xf32>
    %209 = vector.shape_cast %208 : vector<1x8x512xf32> to vector<8x512xf32>
    %210 = arith.addf %206, %209 : vector<8x512xf32>
    %211 = vector.extract_strided_slice %210 {offsets = [0, 0], sizes = [8, 128], strides = [1, 1]} : vector<8x512xf32> to vector<8x128xf32>
    %212 = vector.extract_strided_slice %210 {offsets = [0, 128], sizes = [8, 128], strides = [1, 1]} : vector<8x512xf32> to vector<8x128xf32>
    %213 = vector.extract_strided_slice %210 {offsets = [0, 256], sizes = [8, 128], strides = [1, 1]} : vector<8x512xf32> to vector<8x128xf32>
    %214 = vector.extract_strided_slice %210 {offsets = [0, 384], sizes = [8, 128], strides = [1, 1]} : vector<8x512xf32> to vector<8x128xf32>
    %cst_80 = arith.constant 5.000000e-01 : f32
    %215 = vector.broadcast %cst_80 : f32 to vector<8x128xf32>
    %216 = arith.mulf %215, %211 : vector<8x128xf32>
    %217 = math.tanh %216 : vector<8x128xf32>
    %cst_81 = arith.constant 1.000000e+00 : f32
    %218 = vector.broadcast %cst_81 : f32 to vector<8x128xf32>
    %219 = arith.addf %218, %217 : vector<8x128xf32>
    %cst_82 = arith.constant 5.000000e-01 : f32
    %220 = vector.broadcast %cst_82 : f32 to vector<8x128xf32>
    %221 = arith.mulf %220, %219 : vector<8x128xf32>
    %222 = arith.mulf %221, %144 : vector<8x128xf32>
    %cst_83 = arith.constant 5.000000e-01 : f32
    %223 = vector.broadcast %cst_83 : f32 to vector<8x128xf32>
    %224 = arith.mulf %223, %212 : vector<8x128xf32>
    %225 = math.tanh %224 : vector<8x128xf32>
    %cst_84 = arith.constant 1.000000e+00 : f32
    %226 = vector.broadcast %cst_84 : f32 to vector<8x128xf32>
    %227 = arith.addf %226, %225 : vector<8x128xf32>
    %cst_85 = arith.constant 5.000000e-01 : f32
    %228 = vector.broadcast %cst_85 : f32 to vector<8x128xf32>
    %229 = arith.mulf %228, %227 : vector<8x128xf32>
    %230 = math.tanh %214 : vector<8x128xf32>
    %231 = arith.mulf %229, %230 : vector<8x128xf32>
    %232 = arith.addf %222, %231 : vector<8x128xf32>
    %cst_86 = arith.constant dense<0.000000e+00> : vector<128xf32>
    %233 = vector.multi_reduction <add>, %232, %cst_86 [0] : vector<8x128xf32> to vector<128xf32>
    %234 = vector.shape_cast %233 : vector<128xf32> to vector<1x128xf32>
    %cst_87 = arith.constant 8.000000e+00 : f32
    %235 = vector.broadcast %cst_87 : f32 to vector<1x128xf32>
    %236 = arith.divf %234, %235 : vector<1x128xf32>
    %237 = arith.mulf %232, %232 : vector<8x128xf32>
    %cst_88 = arith.constant dense<0.000000e+00> : vector<128xf32>
    %238 = vector.multi_reduction <add>, %237, %cst_88 [0] : vector<8x128xf32> to vector<128xf32>
    %239 = vector.shape_cast %238 : vector<128xf32> to vector<1x128xf32>
    %cst_89 = arith.constant 8.000000e+00 : f32
    %240 = vector.broadcast %cst_89 : f32 to vector<1x128xf32>
    %241 = arith.divf %239, %240 : vector<1x128xf32>
    %242 = arith.mulf %236, %236 : vector<1x128xf32>
    %243 = arith.subf %241, %242 : vector<1x128xf32>
    %cst_90 = arith.constant 0.000000e+00 : f32
    %244 = vector.broadcast %cst_90 : f32 to vector<1x128xf32>
    %245 = arith.maximumf %243, %244 : vector<1x128xf32>
    %246 = vector.broadcast %236 : vector<1x128xf32> to vector<8x128xf32>
    %247 = arith.subf %232, %246 : vector<8x128xf32>
    %cst_91 = arith.constant 1.000000e-03 : f32
    %248 = vector.broadcast %cst_91 : f32 to vector<1x128xf32>
    %249 = arith.addf %245, %248 : vector<1x128xf32>
    %250 = math.rsqrt %249 : vector<1x128xf32>
    %251 = arith.mulf %5, %250 : vector<1x128xf32>
    %252 = vector.broadcast %251 : vector<1x128xf32> to vector<8x128xf32>
    %253 = arith.mulf %247, %252 : vector<8x128xf32>
    %254 = vector.broadcast %6 : vector<1x128xf32> to vector<8x128xf32>
    %255 = arith.addf %253, %254 : vector<8x128xf32>
    %cst_92 = arith.constant 5.000000e-01 : f32
    %256 = vector.broadcast %cst_92 : f32 to vector<8x128xf32>
    %257 = arith.mulf %256, %213 : vector<8x128xf32>
    %258 = math.tanh %257 : vector<8x128xf32>
    %cst_93 = arith.constant 1.000000e+00 : f32
    %259 = vector.broadcast %cst_93 : f32 to vector<8x128xf32>
    %260 = arith.addf %259, %258 : vector<8x128xf32>
    %cst_94 = arith.constant 5.000000e-01 : f32
    %261 = vector.broadcast %cst_94 : f32 to vector<8x128xf32>
    %262 = arith.mulf %261, %260 : vector<8x128xf32>
    %263 = math.tanh %255 : vector<8x128xf32>
    %264 = arith.mulf %262, %263 : vector<8x128xf32>
    %265 = arith.index_cast %c2_i32 : i32 to index
    %c0_95 = arith.constant 0 : index
    %c0_96 = arith.constant 0 : index
    %c0_97 = arith.constant 0 : index
    %266 = vector.load %arg8[%265, %c0_95, %c0_96, %c0_97] : memref<8x2x8x128xf32, #tpu.memory_space<vmem>>, vector<1x1x8x128xf32>
    %267 = vector.shape_cast %266 : vector<1x1x8x128xf32> to vector<8x128xf32>
    %268 = vector.shape_cast %264 : vector<8x128xf32> to vector<1x1x8x128xf32>
    tpu.vector_store %arg8[%265, %c0_95, %c0_96, %c0_97], %268 {strides = array<i32>} : memref<8x2x8x128xf32, #tpu.memory_space<vmem>>, vector<1x1x8x128xf32>,
    %269 = arith.index_cast %c2_i32 : i32 to index
    %c1_98 = arith.constant 1 : index
    %c0_99 = arith.constant 0 : index
    %c0_100 = arith.constant 0 : index
    %270 = vector.load %arg8[%269, %c1_98, %c0_99, %c0_100] : memref<8x2x8x128xf32, #tpu.memory_space<vmem>>, vector<1x1x8x128xf32>
    %271 = vector.shape_cast %270 : vector<1x1x8x128xf32> to vector<8x128xf32>
    %272 = vector.shape_cast %232 : vector<8x128xf32> to vector<1x1x8x128xf32>
    tpu.vector_store %arg8[%269, %c1_98, %c0_99, %c0_100], %272 {strides = array<i32>} : memref<8x2x8x128xf32, #tpu.memory_space<vmem>>, vector<1x1x8x128xf32>,
    %c3_i32 = arith.constant 3 : i32
    %cst_101 = arith.constant dense<0.000000e+00> : vector<8x512xf32>
    %273 = tpu.matmul %264, %3, %cst_101 {dimension_numbers = #tpu.dot_dimension_numbers<[1], [0], [0], [1], [0, 0, 1, 1], [], []>} : vector<8x128xf32>, vector<128x512xf32>, vector<8x512xf32> -> vector<8x512xf32>
    %cst_102 = arith.constant dense<0.000000e+00> : vector<512xf32>
    %274 = vector.multi_reduction <add>, %273, %cst_102 [0] : vector<8x512xf32> to vector<512xf32>
    %275 = vector.shape_cast %274 : vector<512xf32> to vector<1x512xf32>
    %cst_103 = arith.constant 8.000000e+00 : f32
    %276 = vector.broadcast %cst_103 : f32 to vector<1x512xf32>
    %277 = arith.divf %275, %276 : vector<1x512xf32>
    %278 = arith.mulf %273, %273 : vector<8x512xf32>
    %cst_104 = arith.constant dense<0.000000e+00> : vector<512xf32>
    %279 = vector.multi_reduction <add>, %278, %cst_104 [0] : vector<8x512xf32> to vector<512xf32>
    %280 = vector.shape_cast %279 : vector<512xf32> to vector<1x512xf32>
    %cst_105 = arith.constant 8.000000e+00 : f32
    %281 = vector.broadcast %cst_105 : f32 to vector<1x512xf32>
    %282 = arith.divf %280, %281 : vector<1x512xf32>
    %283 = arith.mulf %277, %277 : vector<1x512xf32>
    %284 = arith.subf %282, %283 : vector<1x512xf32>
    %cst_106 = arith.constant 0.000000e+00 : f32
    %285 = vector.broadcast %cst_106 : f32 to vector<1x512xf32>
    %286 = arith.maximumf %284, %285 : vector<1x512xf32>
    %287 = vector.broadcast %277 : vector<1x512xf32> to vector<8x512xf32>
    %288 = arith.subf %273, %287 : vector<8x512xf32>
    %cst_107 = arith.constant 1.000000e-03 : f32
    %289 = vector.broadcast %cst_107 : f32 to vector<1x512xf32>
    %290 = arith.addf %286, %289 : vector<1x512xf32>
    %291 = math.rsqrt %290 : vector<1x512xf32>
    %292 = arith.mulf %4, %291 : vector<1x512xf32>
    %293 = vector.broadcast %292 : vector<1x512xf32> to vector<8x512xf32>
    %294 = arith.mulf %288, %293 : vector<8x512xf32>
    %295 = arith.index_cast %c3_i32 : i32 to index
    %c0_108 = arith.constant 0 : index
    %c0_109 = arith.constant 0 : index
    %296 = vector.load %arg1[%295, %c0_108, %c0_109] : memref<8x8x512xf32, #tpu.memory_space<vmem>>, vector<1x8x512xf32>
    %297 = vector.shape_cast %296 : vector<1x8x512xf32> to vector<8x512xf32>
    %298 = arith.addf %294, %297 : vector<8x512xf32>
    %299 = vector.extract_strided_slice %298 {offsets = [0, 0], sizes = [8, 128], strides = [1, 1]} : vector<8x512xf32> to vector<8x128xf32>
    %300 = vector.extract_strided_slice %298 {offsets = [0, 128], sizes = [8, 128], strides = [1, 1]} : vector<8x512xf32> to vector<8x128xf32>
    %301 = vector.extract_strided_slice %298 {offsets = [0, 256], sizes = [8, 128], strides = [1, 1]} : vector<8x512xf32> to vector<8x128xf32>
    %302 = vector.extract_strided_slice %298 {offsets = [0, 384], sizes = [8, 128], strides = [1, 1]} : vector<8x512xf32> to vector<8x128xf32>
    %cst_110 = arith.constant 5.000000e-01 : f32
    %303 = vector.broadcast %cst_110 : f32 to vector<8x128xf32>
    %304 = arith.mulf %303, %299 : vector<8x128xf32>
    %305 = math.tanh %304 : vector<8x128xf32>
    %cst_111 = arith.constant 1.000000e+00 : f32
    %306 = vector.broadcast %cst_111 : f32 to vector<8x128xf32>
    %307 = arith.addf %306, %305 : vector<8x128xf32>
    %cst_112 = arith.constant 5.000000e-01 : f32
    %308 = vector.broadcast %cst_112 : f32 to vector<8x128xf32>
    %309 = arith.mulf %308, %307 : vector<8x128xf32>
    %310 = arith.mulf %309, %232 : vector<8x128xf32>
    %cst_113 = arith.constant 5.000000e-01 : f32
    %311 = vector.broadcast %cst_113 : f32 to vector<8x128xf32>
    %312 = arith.mulf %311, %300 : vector<8x128xf32>
    %313 = math.tanh %312 : vector<8x128xf32>
    %cst_114 = arith.constant 1.000000e+00 : f32
    %314 = vector.broadcast %cst_114 : f32 to vector<8x128xf32>
    %315 = arith.addf %314, %313 : vector<8x128xf32>
    %cst_115 = arith.constant 5.000000e-01 : f32
    %316 = vector.broadcast %cst_115 : f32 to vector<8x128xf32>
    %317 = arith.mulf %316, %315 : vector<8x128xf32>
    %318 = math.tanh %302 : vector<8x128xf32>
    %319 = arith.mulf %317, %318 : vector<8x128xf32>
    %320 = arith.addf %310, %319 : vector<8x128xf32>
    %cst_116 = arith.constant dense<0.000000e+00> : vector<128xf32>
    %321 = vector.multi_reduction <add>, %320, %cst_116 [0] : vector<8x128xf32> to vector<128xf32>
    %322 = vector.shape_cast %321 : vector<128xf32> to vector<1x128xf32>
    %cst_117 = arith.constant 8.000000e+00 : f32
    %323 = vector.broadcast %cst_117 : f32 to vector<1x128xf32>
    %324 = arith.divf %322, %323 : vector<1x128xf32>
    %325 = arith.mulf %320, %320 : vector<8x128xf32>
    %cst_118 = arith.constant dense<0.000000e+00> : vector<128xf32>
    %326 = vector.multi_reduction <add>, %325, %cst_118 [0] : vector<8x128xf32> to vector<128xf32>
    %327 = vector.shape_cast %326 : vector<128xf32> to vector<1x128xf32>
    %cst_119 = arith.constant 8.000000e+00 : f32
    %328 = vector.broadcast %cst_119 : f32 to vector<1x128xf32>
    %329 = arith.divf %327, %328 : vector<1x128xf32>
    %330 = arith.mulf %324, %324 : vector<1x128xf32>
    %331 = arith.subf %329, %330 : vector<1x128xf32>
    %cst_120 = arith.constant 0.000000e+00 : f32
    %332 = vector.broadcast %cst_120 : f32 to vector<1x128xf32>
    %333 = arith.maximumf %331, %332 : vector<1x128xf32>
    %334 = vector.broadcast %324 : vector<1x128xf32> to vector<8x128xf32>
    %335 = arith.subf %320, %334 : vector<8x128xf32>
    %cst_121 = arith.constant 1.000000e-03 : f32
    %336 = vector.broadcast %cst_121 : f32 to vector<1x128xf32>
    %337 = arith.addf %333, %336 : vector<1x128xf32>
    %338 = math.rsqrt %337 : vector<1x128xf32>
    %339 = arith.mulf %5, %338 : vector<1x128xf32>
    %340 = vector.broadcast %339 : vector<1x128xf32> to vector<8x128xf32>
    %341 = arith.mulf %335, %340 : vector<8x128xf32>
    %342 = vector.broadcast %6 : vector<1x128xf32> to vector<8x128xf32>
    %343 = arith.addf %341, %342 : vector<8x128xf32>
    %cst_122 = arith.constant 5.000000e-01 : f32
    %344 = vector.broadcast %cst_122 : f32 to vector<8x128xf32>
    %345 = arith.mulf %344, %301 : vector<8x128xf32>
    %346 = math.tanh %345 : vector<8x128xf32>
    %cst_123 = arith.constant 1.000000e+00 : f32
    %347 = vector.broadcast %cst_123 : f32 to vector<8x128xf32>
    %348 = arith.addf %347, %346 : vector<8x128xf32>
    %cst_124 = arith.constant 5.000000e-01 : f32
    %349 = vector.broadcast %cst_124 : f32 to vector<8x128xf32>
    %350 = arith.mulf %349, %348 : vector<8x128xf32>
    %351 = math.tanh %343 : vector<8x128xf32>
    %352 = arith.mulf %350, %351 : vector<8x128xf32>
    %353 = arith.index_cast %c3_i32 : i32 to index
    %c0_125 = arith.constant 0 : index
    %c0_126 = arith.constant 0 : index
    %c0_127 = arith.constant 0 : index
    %354 = vector.load %arg8[%353, %c0_125, %c0_126, %c0_127] : memref<8x2x8x128xf32, #tpu.memory_space<vmem>>, vector<1x1x8x128xf32>
    %355 = vector.shape_cast %354 : vector<1x1x8x128xf32> to vector<8x128xf32>
    %356 = vector.shape_cast %352 : vector<8x128xf32> to vector<1x1x8x128xf32>
    tpu.vector_store %arg8[%353, %c0_125, %c0_126, %c0_127], %356 {strides = array<i32>} : memref<8x2x8x128xf32, #tpu.memory_space<vmem>>, vector<1x1x8x128xf32>,
    %357 = arith.index_cast %c3_i32 : i32 to index
    %c1_128 = arith.constant 1 : index
    %c0_129 = arith.constant 0 : index
    %c0_130 = arith.constant 0 : index
    %358 = vector.load %arg8[%357, %c1_128, %c0_129, %c0_130] : memref<8x2x8x128xf32, #tpu.memory_space<vmem>>, vector<1x1x8x128xf32>
    %359 = vector.shape_cast %358 : vector<1x1x8x128xf32> to vector<8x128xf32>
    %360 = vector.shape_cast %320 : vector<8x128xf32> to vector<1x1x8x128xf32>
    tpu.vector_store %arg8[%357, %c1_128, %c0_129, %c0_130], %360 {strides = array<i32>} : memref<8x2x8x128xf32, #tpu.memory_space<vmem>>, vector<1x1x8x128xf32>,
    %c4_i32 = arith.constant 4 : i32
    %cst_131 = arith.constant dense<0.000000e+00> : vector<8x512xf32>
    %361 = tpu.matmul %352, %3, %cst_131 {dimension_numbers = #tpu.dot_dimension_numbers<[1], [0], [0], [1], [0, 0, 1, 1], [], []>} : vector<8x128xf32>, vector<128x512xf32>, vector<8x512xf32> -> vector<8x512xf32>
    %cst_132 = arith.constant dense<0.000000e+00> : vector<512xf32>
    %362 = vector.multi_reduction <add>, %361, %cst_132 [0] : vector<8x512xf32> to vector<512xf32>
    %363 = vector.shape_cast %362 : vector<512xf32> to vector<1x512xf32>
    %cst_133 = arith.constant 8.000000e+00 : f32
    %364 = vector.broadcast %cst_133 : f32 to vector<1x512xf32>
    %365 = arith.divf %363, %364 : vector<1x512xf32>
    %366 = arith.mulf %361, %361 : vector<8x512xf32>
    %cst_134 = arith.constant dense<0.000000e+00> : vector<512xf32>
    %367 = vector.multi_reduction <add>, %366, %cst_134 [0] : vector<8x512xf32> to vector<512xf32>
    %368 = vector.shape_cast %367 : vector<512xf32> to vector<1x512xf32>
    %cst_135 = arith.constant 8.000000e+00 : f32
    %369 = vector.broadcast %cst_135 : f32 to vector<1x512xf32>
    %370 = arith.divf %368, %369 : vector<1x512xf32>
    %371 = arith.mulf %365, %365 : vector<1x512xf32>
    %372 = arith.subf %370, %371 : vector<1x512xf32>
    %cst_136 = arith.constant 0.000000e+00 : f32
    %373 = vector.broadcast %cst_136 : f32 to vector<1x512xf32>
    %374 = arith.maximumf %372, %373 : vector<1x512xf32>
    %375 = vector.broadcast %365 : vector<1x512xf32> to vector<8x512xf32>
    %376 = arith.subf %361, %375 : vector<8x512xf32>
    %cst_137 = arith.constant 1.000000e-03 : f32
    %377 = vector.broadcast %cst_137 : f32 to vector<1x512xf32>
    %378 = arith.addf %374, %377 : vector<1x512xf32>
    %379 = math.rsqrt %378 : vector<1x512xf32>
    %380 = arith.mulf %4, %379 : vector<1x512xf32>
    %381 = vector.broadcast %380 : vector<1x512xf32> to vector<8x512xf32>
    %382 = arith.mulf %376, %381 : vector<8x512xf32>
    %383 = arith.index_cast %c4_i32 : i32 to index
    %c0_138 = arith.constant 0 : index
    %c0_139 = arith.constant 0 : index
    %384 = vector.load %arg1[%383, %c0_138, %c0_139] : memref<8x8x512xf32, #tpu.memory_space<vmem>>, vector<1x8x512xf32>
    %385 = vector.shape_cast %384 : vector<1x8x512xf32> to vector<8x512xf32>
    %386 = arith.addf %382, %385 : vector<8x512xf32>
    %387 = vector.extract_strided_slice %386 {offsets = [0, 0], sizes = [8, 128], strides = [1, 1]} : vector<8x512xf32> to vector<8x128xf32>
    %388 = vector.extract_strided_slice %386 {offsets = [0, 128], sizes = [8, 128], strides = [1, 1]} : vector<8x512xf32> to vector<8x128xf32>
    %389 = vector.extract_strided_slice %386 {offsets = [0, 256], sizes = [8, 128], strides = [1, 1]} : vector<8x512xf32> to vector<8x128xf32>
    %390 = vector.extract_strided_slice %386 {offsets = [0, 384], sizes = [8, 128], strides = [1, 1]} : vector<8x512xf32> to vector<8x128xf32>
    %cst_140 = arith.constant 5.000000e-01 : f32
    %391 = vector.broadcast %cst_140 : f32 to vector<8x128xf32>
    %392 = arith.mulf %391, %387 : vector<8x128xf32>
    %393 = math.tanh %392 : vector<8x128xf32>
    %cst_141 = arith.constant 1.000000e+00 : f32
    %394 = vector.broadcast %cst_141 : f32 to vector<8x128xf32>
    %395 = arith.addf %394, %393 : vector<8x128xf32>
    %cst_142 = arith.constant 5.000000e-01 : f32
    %396 = vector.broadcast %cst_142 : f32 to vector<8x128xf32>
    %397 = arith.mulf %396, %395 : vector<8x128xf32>
    %398 = arith.mulf %397, %320 : vector<8x128xf32>
    %cst_143 = arith.constant 5.000000e-01 : f32
    %399 = vector.broadcast %cst_143 : f32 to vector<8x128xf32>
    %400 = arith.mulf %399, %388 : vector<8x128xf32>
    %401 = math.tanh %400 : vector<8x128xf32>
    %cst_144 = arith.constant 1.000000e+00 : f32
    %402 = vector.broadcast %cst_144 : f32 to vector<8x128xf32>
    %403 = arith.addf %402, %401 : vector<8x128xf32>
    %cst_145 = arith.constant 5.000000e-01 : f32
    %404 = vector.broadcast %cst_145 : f32 to vector<8x128xf32>
    %405 = arith.mulf %404, %403 : vector<8x128xf32>
    %406 = math.tanh %390 : vector<8x128xf32>
    %407 = arith.mulf %405, %406 : vector<8x128xf32>
    %408 = arith.addf %398, %407 : vector<8x128xf32>
    %cst_146 = arith.constant dense<0.000000e+00> : vector<128xf32>
    %409 = vector.multi_reduction <add>, %408, %cst_146 [0] : vector<8x128xf32> to vector<128xf32>
    %410 = vector.shape_cast %409 : vector<128xf32> to vector<1x128xf32>
    %cst_147 = arith.constant 8.000000e+00 : f32
    %411 = vector.broadcast %cst_147 : f32 to vector<1x128xf32>
    %412 = arith.divf %410, %411 : vector<1x128xf32>
    %413 = arith.mulf %408, %408 : vector<8x128xf32>
    %cst_148 = arith.constant dense<0.000000e+00> : vector<128xf32>
    %414 = vector.multi_reduction <add>, %413, %cst_148 [0] : vector<8x128xf32> to vector<128xf32>
    %415 = vector.shape_cast %414 : vector<128xf32> to vector<1x128xf32>
    %cst_149 = arith.constant 8.000000e+00 : f32
    %416 = vector.broadcast %cst_149 : f32 to vector<1x128xf32>
    %417 = arith.divf %415, %416 : vector<1x128xf32>
    %418 = arith.mulf %412, %412 : vector<1x128xf32>
    %419 = arith.subf %417, %418 : vector<1x128xf32>
    %cst_150 = arith.constant 0.000000e+00 : f32
    %420 = vector.broadcast %cst_150 : f32 to vector<1x128xf32>
    %421 = arith.maximumf %419, %420 : vector<1x128xf32>
    %422 = vector.broadcast %412 : vector<1x128xf32> to vector<8x128xf32>
    %423 = arith.subf %408, %422 : vector<8x128xf32>
    %cst_151 = arith.constant 1.000000e-03 : f32
    %424 = vector.broadcast %cst_151 : f32 to vector<1x128xf32>
    %425 = arith.addf %421, %424 : vector<1x128xf32>
    %426 = math.rsqrt %425 : vector<1x128xf32>
    %427 = arith.mulf %5, %426 : vector<1x128xf32>
    %428 = vector.broadcast %427 : vector<1x128xf32> to vector<8x128xf32>
    %429 = arith.mulf %423, %428 : vector<8x128xf32>
    %430 = vector.broadcast %6 : vector<1x128xf32> to vector<8x128xf32>
    %431 = arith.addf %429, %430 : vector<8x128xf32>
    %cst_152 = arith.constant 5.000000e-01 : f32
    %432 = vector.broadcast %cst_152 : f32 to vector<8x128xf32>
    %433 = arith.mulf %432, %389 : vector<8x128xf32>
    %434 = math.tanh %433 : vector<8x128xf32>
    %cst_153 = arith.constant 1.000000e+00 : f32
    %435 = vector.broadcast %cst_153 : f32 to vector<8x128xf32>
    %436 = arith.addf %435, %434 : vector<8x128xf32>
    %cst_154 = arith.constant 5.000000e-01 : f32
    %437 = vector.broadcast %cst_154 : f32 to vector<8x128xf32>
    %438 = arith.mulf %437, %436 : vector<8x128xf32>
    %439 = math.tanh %431 : vector<8x128xf32>
    %440 = arith.mulf %438, %439 : vector<8x128xf32>
    %441 = arith.index_cast %c4_i32 : i32 to index
    %c0_155 = arith.constant 0 : index
    %c0_156 = arith.constant 0 : index
    %c0_157 = arith.constant 0 : index
    %442 = vector.load %arg8[%441, %c0_155, %c0_156, %c0_157] : memref<8x2x8x128xf32, #tpu.memory_space<vmem>>, vector<1x1x8x128xf32>
    %443 = vector.shape_cast %442 : vector<1x1x8x128xf32> to vector<8x128xf32>
    %444 = vector.shape_cast %440 : vector<8x128xf32> to vector<1x1x8x128xf32>
    tpu.vector_store %arg8[%441, %c0_155, %c0_156, %c0_157], %444 {strides = array<i32>} : memref<8x2x8x128xf32, #tpu.memory_space<vmem>>, vector<1x1x8x128xf32>,
    %445 = arith.index_cast %c4_i32 : i32 to index
    %c1_158 = arith.constant 1 : index
    %c0_159 = arith.constant 0 : index
    %c0_160 = arith.constant 0 : index
    %446 = vector.load %arg8[%445, %c1_158, %c0_159, %c0_160] : memref<8x2x8x128xf32, #tpu.memory_space<vmem>>, vector<1x1x8x128xf32>
    %447 = vector.shape_cast %446 : vector<1x1x8x128xf32> to vector<8x128xf32>
    %448 = vector.shape_cast %408 : vector<8x128xf32> to vector<1x1x8x128xf32>
    tpu.vector_store %arg8[%445, %c1_158, %c0_159, %c0_160], %448 {strides = array<i32>} : memref<8x2x8x128xf32, #tpu.memory_space<vmem>>, vector<1x1x8x128xf32>,
    %c5_i32 = arith.constant 5 : i32
    %cst_161 = arith.constant dense<0.000000e+00> : vector<8x512xf32>
    %449 = tpu.matmul %440, %3, %cst_161 {dimension_numbers = #tpu.dot_dimension_numbers<[1], [0], [0], [1], [0, 0, 1, 1], [], []>} : vector<8x128xf32>, vector<128x512xf32>, vector<8x512xf32> -> vector<8x512xf32>
    %cst_162 = arith.constant dense<0.000000e+00> : vector<512xf32>
    %450 = vector.multi_reduction <add>, %449, %cst_162 [0] : vector<8x512xf32> to vector<512xf32>
    %451 = vector.shape_cast %450 : vector<512xf32> to vector<1x512xf32>
    %cst_163 = arith.constant 8.000000e+00 : f32
    %452 = vector.broadcast %cst_163 : f32 to vector<1x512xf32>
    %453 = arith.divf %451, %452 : vector<1x512xf32>
    %454 = arith.mulf %449, %449 : vector<8x512xf32>
    %cst_164 = arith.constant dense<0.000000e+00> : vector<512xf32>
    %455 = vector.multi_reduction <add>, %454, %cst_164 [0] : vector<8x512xf32> to vector<512xf32>
    %456 = vector.shape_cast %455 : vector<512xf32> to vector<1x512xf32>
    %cst_165 = arith.constant 8.000000e+00 : f32
    %457 = vector.broadcast %cst_165 : f32 to vector<1x512xf32>
    %458 = arith.divf %456, %457 : vector<1x512xf32>
    %459 = arith.mulf %453, %453 : vector<1x512xf32>
    %460 = arith.subf %458, %459 : vector<1x512xf32>
    %cst_166 = arith.constant 0.000000e+00 : f32
    %461 = vector.broadcast %cst_166 : f32 to vector<1x512xf32>
    %462 = arith.maximumf %460, %461 : vector<1x512xf32>
    %463 = vector.broadcast %453 : vector<1x512xf32> to vector<8x512xf32>
    %464 = arith.subf %449, %463 : vector<8x512xf32>
    %cst_167 = arith.constant 1.000000e-03 : f32
    %465 = vector.broadcast %cst_167 : f32 to vector<1x512xf32>
    %466 = arith.addf %462, %465 : vector<1x512xf32>
    %467 = math.rsqrt %466 : vector<1x512xf32>
    %468 = arith.mulf %4, %467 : vector<1x512xf32>
    %469 = vector.broadcast %468 : vector<1x512xf32> to vector<8x512xf32>
    %470 = arith.mulf %464, %469 : vector<8x512xf32>
    %471 = arith.index_cast %c5_i32 : i32 to index
    %c0_168 = arith.constant 0 : index
    %c0_169 = arith.constant 0 : index
    %472 = vector.load %arg1[%471, %c0_168, %c0_169] : memref<8x8x512xf32, #tpu.memory_space<vmem>>, vector<1x8x512xf32>
    %473 = vector.shape_cast %472 : vector<1x8x512xf32> to vector<8x512xf32>
    %474 = arith.addf %470, %473 : vector<8x512xf32>
    %475 = vector.extract_strided_slice %474 {offsets = [0, 0], sizes = [8, 128], strides = [1, 1]} : vector<8x512xf32> to vector<8x128xf32>
    %476 = vector.extract_strided_slice %474 {offsets = [0, 128], sizes = [8, 128], strides = [1, 1]} : vector<8x512xf32> to vector<8x128xf32>
    %477 = vector.extract_strided_slice %474 {offsets = [0, 256], sizes = [8, 128], strides = [1, 1]} : vector<8x512xf32> to vector<8x128xf32>
    %478 = vector.extract_strided_slice %474 {offsets = [0, 384], sizes = [8, 128], strides = [1, 1]} : vector<8x512xf32> to vector<8x128xf32>
    %cst_170 = arith.constant 5.000000e-01 : f32
    %479 = vector.broadcast %cst_170 : f32 to vector<8x128xf32>
    %480 = arith.mulf %479, %475 : vector<8x128xf32>
    %481 = math.tanh %480 : vector<8x128xf32>
    %cst_171 = arith.constant 1.000000e+00 : f32
    %482 = vector.broadcast %cst_171 : f32 to vector<8x128xf32>
    %483 = arith.addf %482, %481 : vector<8x128xf32>
    %cst_172 = arith.constant 5.000000e-01 : f32
    %484 = vector.broadcast %cst_172 : f32 to vector<8x128xf32>
    %485 = arith.mulf %484, %483 : vector<8x128xf32>
    %486 = arith.mulf %485, %408 : vector<8x128xf32>
    %cst_173 = arith.constant 5.000000e-01 : f32
    %487 = vector.broadcast %cst_173 : f32 to vector<8x128xf32>
    %488 = arith.mulf %487, %476 : vector<8x128xf32>
    %489 = math.tanh %488 : vector<8x128xf32>
    %cst_174 = arith.constant 1.000000e+00 : f32
    %490 = vector.broadcast %cst_174 : f32 to vector<8x128xf32>
    %491 = arith.addf %490, %489 : vector<8x128xf32>
    %cst_175 = arith.constant 5.000000e-01 : f32
    %492 = vector.broadcast %cst_175 : f32 to vector<8x128xf32>
    %493 = arith.mulf %492, %491 : vector<8x128xf32>
    %494 = math.tanh %478 : vector<8x128xf32>
    %495 = arith.mulf %493, %494 : vector<8x128xf32>
    %496 = arith.addf %486, %495 : vector<8x128xf32>
    %cst_176 = arith.constant dense<0.000000e+00> : vector<128xf32>
    %497 = vector.multi_reduction <add>, %496, %cst_176 [0] : vector<8x128xf32> to vector<128xf32>
    %498 = vector.shape_cast %497 : vector<128xf32> to vector<1x128xf32>
    %cst_177 = arith.constant 8.000000e+00 : f32
    %499 = vector.broadcast %cst_177 : f32 to vector<1x128xf32>
    %500 = arith.divf %498, %499 : vector<1x128xf32>
    %501 = arith.mulf %496, %496 : vector<8x128xf32>
    %cst_178 = arith.constant dense<0.000000e+00> : vector<128xf32>
    %502 = vector.multi_reduction <add>, %501, %cst_178 [0] : vector<8x128xf32> to vector<128xf32>
    %503 = vector.shape_cast %502 : vector<128xf32> to vector<1x128xf32>
    %cst_179 = arith.constant 8.000000e+00 : f32
    %504 = vector.broadcast %cst_179 : f32 to vector<1x128xf32>
    %505 = arith.divf %503, %504 : vector<1x128xf32>
    %506 = arith.mulf %500, %500 : vector<1x128xf32>
    %507 = arith.subf %505, %506 : vector<1x128xf32>
    %cst_180 = arith.constant 0.000000e+00 : f32
    %508 = vector.broadcast %cst_180 : f32 to vector<1x128xf32>
    %509 = arith.maximumf %507, %508 : vector<1x128xf32>
    %510 = vector.broadcast %500 : vector<1x128xf32> to vector<8x128xf32>
    %511 = arith.subf %496, %510 : vector<8x128xf32>
    %cst_181 = arith.constant 1.000000e-03 : f32
    %512 = vector.broadcast %cst_181 : f32 to vector<1x128xf32>
    %513 = arith.addf %509, %512 : vector<1x128xf32>
    %514 = math.rsqrt %513 : vector<1x128xf32>
    %515 = arith.mulf %5, %514 : vector<1x128xf32>
    %516 = vector.broadcast %515 : vector<1x128xf32> to vector<8x128xf32>
    %517 = arith.mulf %511, %516 : vector<8x128xf32>
    %518 = vector.broadcast %6 : vector<1x128xf32> to vector<8x128xf32>
    %519 = arith.addf %517, %518 : vector<8x128xf32>
    %cst_182 = arith.constant 5.000000e-01 : f32
    %520 = vector.broadcast %cst_182 : f32 to vector<8x128xf32>
    %521 = arith.mulf %520, %477 : vector<8x128xf32>
    %522 = math.tanh %521 : vector<8x128xf32>
    %cst_183 = arith.constant 1.000000e+00 : f32
    %523 = vector.broadcast %cst_183 : f32 to vector<8x128xf32>
    %524 = arith.addf %523, %522 : vector<8x128xf32>
    %cst_184 = arith.constant 5.000000e-01 : f32
    %525 = vector.broadcast %cst_184 : f32 to vector<8x128xf32>
    %526 = arith.mulf %525, %524 : vector<8x128xf32>
    %527 = math.tanh %519 : vector<8x128xf32>
    %528 = arith.mulf %526, %527 : vector<8x128xf32>
    %529 = arith.index_cast %c5_i32 : i32 to index
    %c0_185 = arith.constant 0 : index
    %c0_186 = arith.constant 0 : index
    %c0_187 = arith.constant 0 : index
    %530 = vector.load %arg8[%529, %c0_185, %c0_186, %c0_187] : memref<8x2x8x128xf32, #tpu.memory_space<vmem>>, vector<1x1x8x128xf32>
    %531 = vector.shape_cast %530 : vector<1x1x8x128xf32> to vector<8x128xf32>
    %532 = vector.shape_cast %528 : vector<8x128xf32> to vector<1x1x8x128xf32>
    tpu.vector_store %arg8[%529, %c0_185, %c0_186, %c0_187], %532 {strides = array<i32>} : memref<8x2x8x128xf32, #tpu.memory_space<vmem>>, vector<1x1x8x128xf32>,
    %533 = arith.index_cast %c5_i32 : i32 to index
    %c1_188 = arith.constant 1 : index
    %c0_189 = arith.constant 0 : index
    %c0_190 = arith.constant 0 : index
    %534 = vector.load %arg8[%533, %c1_188, %c0_189, %c0_190] : memref<8x2x8x128xf32, #tpu.memory_space<vmem>>, vector<1x1x8x128xf32>
    %535 = vector.shape_cast %534 : vector<1x1x8x128xf32> to vector<8x128xf32>
    %536 = vector.shape_cast %496 : vector<8x128xf32> to vector<1x1x8x128xf32>
    tpu.vector_store %arg8[%533, %c1_188, %c0_189, %c0_190], %536 {strides = array<i32>} : memref<8x2x8x128xf32, #tpu.memory_space<vmem>>, vector<1x1x8x128xf32>,
    %c6_i32 = arith.constant 6 : i32
    %cst_191 = arith.constant dense<0.000000e+00> : vector<8x512xf32>
    %537 = tpu.matmul %528, %3, %cst_191 {dimension_numbers = #tpu.dot_dimension_numbers<[1], [0], [0], [1], [0, 0, 1, 1], [], []>} : vector<8x128xf32>, vector<128x512xf32>, vector<8x512xf32> -> vector<8x512xf32>
    %cst_192 = arith.constant dense<0.000000e+00> : vector<512xf32>
    %538 = vector.multi_reduction <add>, %537, %cst_192 [0] : vector<8x512xf32> to vector<512xf32>
    %539 = vector.shape_cast %538 : vector<512xf32> to vector<1x512xf32>
    %cst_193 = arith.constant 8.000000e+00 : f32
    %540 = vector.broadcast %cst_193 : f32 to vector<1x512xf32>
    %541 = arith.divf %539, %540 : vector<1x512xf32>
    %542 = arith.mulf %537, %537 : vector<8x512xf32>
    %cst_194 = arith.constant dense<0.000000e+00> : vector<512xf32>
    %543 = vector.multi_reduction <add>, %542, %cst_194 [0] : vector<8x512xf32> to vector<512xf32>
    %544 = vector.shape_cast %543 : vector<512xf32> to vector<1x512xf32>
    %cst_195 = arith.constant 8.000000e+00 : f32
    %545 = vector.broadcast %cst_195 : f32 to vector<1x512xf32>
    %546 = arith.divf %544, %545 : vector<1x512xf32>
    %547 = arith.mulf %541, %541 : vector<1x512xf32>
    %548 = arith.subf %546, %547 : vector<1x512xf32>
    %cst_196 = arith.constant 0.000000e+00 : f32
    %549 = vector.broadcast %cst_196 : f32 to vector<1x512xf32>
    %550 = arith.maximumf %548, %549 : vector<1x512xf32>
    %551 = vector.broadcast %541 : vector<1x512xf32> to vector<8x512xf32>
    %552 = arith.subf %537, %551 : vector<8x512xf32>
    %cst_197 = arith.constant 1.000000e-03 : f32
    %553 = vector.broadcast %cst_197 : f32 to vector<1x512xf32>
    %554 = arith.addf %550, %553 : vector<1x512xf32>
    %555 = math.rsqrt %554 : vector<1x512xf32>
    %556 = arith.mulf %4, %555 : vector<1x512xf32>
    %557 = vector.broadcast %556 : vector<1x512xf32> to vector<8x512xf32>
    %558 = arith.mulf %552, %557 : vector<8x512xf32>
    %559 = arith.index_cast %c6_i32 : i32 to index
    %c0_198 = arith.constant 0 : index
    %c0_199 = arith.constant 0 : index
    %560 = vector.load %arg1[%559, %c0_198, %c0_199] : memref<8x8x512xf32, #tpu.memory_space<vmem>>, vector<1x8x512xf32>
    %561 = vector.shape_cast %560 : vector<1x8x512xf32> to vector<8x512xf32>
    %562 = arith.addf %558, %561 : vector<8x512xf32>
    %563 = vector.extract_strided_slice %562 {offsets = [0, 0], sizes = [8, 128], strides = [1, 1]} : vector<8x512xf32> to vector<8x128xf32>
    %564 = vector.extract_strided_slice %562 {offsets = [0, 128], sizes = [8, 128], strides = [1, 1]} : vector<8x512xf32> to vector<8x128xf32>
    %565 = vector.extract_strided_slice %562 {offsets = [0, 256], sizes = [8, 128], strides = [1, 1]} : vector<8x512xf32> to vector<8x128xf32>
    %566 = vector.extract_strided_slice %562 {offsets = [0, 384], sizes = [8, 128], strides = [1, 1]} : vector<8x512xf32> to vector<8x128xf32>
    %cst_200 = arith.constant 5.000000e-01 : f32
    %567 = vector.broadcast %cst_200 : f32 to vector<8x128xf32>
    %568 = arith.mulf %567, %563 : vector<8x128xf32>
    %569 = math.tanh %568 : vector<8x128xf32>
    %cst_201 = arith.constant 1.000000e+00 : f32
    %570 = vector.broadcast %cst_201 : f32 to vector<8x128xf32>
    %571 = arith.addf %570, %569 : vector<8x128xf32>
    %cst_202 = arith.constant 5.000000e-01 : f32
    %572 = vector.broadcast %cst_202 : f32 to vector<8x128xf32>
    %573 = arith.mulf %572, %571 : vector<8x128xf32>
    %574 = arith.mulf %573, %496 : vector<8x128xf32>
    %cst_203 = arith.constant 5.000000e-01 : f32
    %575 = vector.broadcast %cst_203 : f32 to vector<8x128xf32>
    %576 = arith.mulf %575, %564 : vector<8x128xf32>
    %577 = math.tanh %576 : vector<8x128xf32>
    %cst_204 = arith.constant 1.000000e+00 : f32
    %578 = vector.broadcast %cst_204 : f32 to vector<8x128xf32>
    %579 = arith.addf %578, %577 : vector<8x128xf32>
    %cst_205 = arith.constant 5.000000e-01 : f32
    %580 = vector.broadcast %cst_205 : f32 to vector<8x128xf32>
    %581 = arith.mulf %580, %579 : vector<8x128xf32>
    %582 = math.tanh %566 : vector<8x128xf32>
    %583 = arith.mulf %581, %582 : vector<8x128xf32>
    %584 = arith.addf %574, %583 : vector<8x128xf32>
    %cst_206 = arith.constant dense<0.000000e+00> : vector<128xf32>
    %585 = vector.multi_reduction <add>, %584, %cst_206 [0] : vector<8x128xf32> to vector<128xf32>
    %586 = vector.shape_cast %585 : vector<128xf32> to vector<1x128xf32>
    %cst_207 = arith.constant 8.000000e+00 : f32
    %587 = vector.broadcast %cst_207 : f32 to vector<1x128xf32>
    %588 = arith.divf %586, %587 : vector<1x128xf32>
    %589 = arith.mulf %584, %584 : vector<8x128xf32>
    %cst_208 = arith.constant dense<0.000000e+00> : vector<128xf32>
    %590 = vector.multi_reduction <add>, %589, %cst_208 [0] : vector<8x128xf32> to vector<128xf32>
    %591 = vector.shape_cast %590 : vector<128xf32> to vector<1x128xf32>
    %cst_209 = arith.constant 8.000000e+00 : f32
    %592 = vector.broadcast %cst_209 : f32 to vector<1x128xf32>
    %593 = arith.divf %591, %592 : vector<1x128xf32>
    %594 = arith.mulf %588, %588 : vector<1x128xf32>
    %595 = arith.subf %593, %594 : vector<1x128xf32>
    %cst_210 = arith.constant 0.000000e+00 : f32
    %596 = vector.broadcast %cst_210 : f32 to vector<1x128xf32>
    %597 = arith.maximumf %595, %596 : vector<1x128xf32>
    %598 = vector.broadcast %588 : vector<1x128xf32> to vector<8x128xf32>
    %599 = arith.subf %584, %598 : vector<8x128xf32>
    %cst_211 = arith.constant 1.000000e-03 : f32
    %600 = vector.broadcast %cst_211 : f32 to vector<1x128xf32>
    %601 = arith.addf %597, %600 : vector<1x128xf32>
    %602 = math.rsqrt %601 : vector<1x128xf32>
    %603 = arith.mulf %5, %602 : vector<1x128xf32>
    %604 = vector.broadcast %603 : vector<1x128xf32> to vector<8x128xf32>
    %605 = arith.mulf %599, %604 : vector<8x128xf32>
    %606 = vector.broadcast %6 : vector<1x128xf32> to vector<8x128xf32>
    %607 = arith.addf %605, %606 : vector<8x128xf32>
    %cst_212 = arith.constant 5.000000e-01 : f32
    %608 = vector.broadcast %cst_212 : f32 to vector<8x128xf32>
    %609 = arith.mulf %608, %565 : vector<8x128xf32>
    %610 = math.tanh %609 : vector<8x128xf32>
    %cst_213 = arith.constant 1.000000e+00 : f32
    %611 = vector.broadcast %cst_213 : f32 to vector<8x128xf32>
    %612 = arith.addf %611, %610 : vector<8x128xf32>
    %cst_214 = arith.constant 5.000000e-01 : f32
    %613 = vector.broadcast %cst_214 : f32 to vector<8x128xf32>
    %614 = arith.mulf %613, %612 : vector<8x128xf32>
    %615 = math.tanh %607 : vector<8x128xf32>
    %616 = arith.mulf %614, %615 : vector<8x128xf32>
    %617 = arith.index_cast %c6_i32 : i32 to index
    %c0_215 = arith.constant 0 : index
    %c0_216 = arith.constant 0 : index
    %c0_217 = arith.constant 0 : index
    %618 = vector.load %arg8[%617, %c0_215, %c0_216, %c0_217] : memref<8x2x8x128xf32, #tpu.memory_space<vmem>>, vector<1x1x8x128xf32>
    %619 = vector.shape_cast %618 : vector<1x1x8x128xf32> to vector<8x128xf32>
    %620 = vector.shape_cast %616 : vector<8x128xf32> to vector<1x1x8x128xf32>
    tpu.vector_store %arg8[%617, %c0_215, %c0_216, %c0_217], %620 {strides = array<i32>} : memref<8x2x8x128xf32, #tpu.memory_space<vmem>>, vector<1x1x8x128xf32>,
    %621 = arith.index_cast %c6_i32 : i32 to index
    %c1_218 = arith.constant 1 : index
    %c0_219 = arith.constant 0 : index
    %c0_220 = arith.constant 0 : index
    %622 = vector.load %arg8[%621, %c1_218, %c0_219, %c0_220] : memref<8x2x8x128xf32, #tpu.memory_space<vmem>>, vector<1x1x8x128xf32>
    %623 = vector.shape_cast %622 : vector<1x1x8x128xf32> to vector<8x128xf32>
    %624 = vector.shape_cast %584 : vector<8x128xf32> to vector<1x1x8x128xf32>
    tpu.vector_store %arg8[%621, %c1_218, %c0_219, %c0_220], %624 {strides = array<i32>} : memref<8x2x8x128xf32, #tpu.memory_space<vmem>>, vector<1x1x8x128xf32>,
    %c7_i32 = arith.constant 7 : i32
    %cst_221 = arith.constant dense<0.000000e+00> : vector<8x512xf32>
    %625 = tpu.matmul %616, %3, %cst_221 {dimension_numbers = #tpu.dot_dimension_numbers<[1], [0], [0], [1], [0, 0, 1, 1], [], []>} : vector<8x128xf32>, vector<128x512xf32>, vector<8x512xf32> -> vector<8x512xf32>
    %cst_222 = arith.constant dense<0.000000e+00> : vector<512xf32>
    %626 = vector.multi_reduction <add>, %625, %cst_222 [0] : vector<8x512xf32> to vector<512xf32>
    %627 = vector.shape_cast %626 : vector<512xf32> to vector<1x512xf32>
    %cst_223 = arith.constant 8.000000e+00 : f32
    %628 = vector.broadcast %cst_223 : f32 to vector<1x512xf32>
    %629 = arith.divf %627, %628 : vector<1x512xf32>
    %630 = arith.mulf %625, %625 : vector<8x512xf32>
    %cst_224 = arith.constant dense<0.000000e+00> : vector<512xf32>
    %631 = vector.multi_reduction <add>, %630, %cst_224 [0] : vector<8x512xf32> to vector<512xf32>
    %632 = vector.shape_cast %631 : vector<512xf32> to vector<1x512xf32>
    %cst_225 = arith.constant 8.000000e+00 : f32
    %633 = vector.broadcast %cst_225 : f32 to vector<1x512xf32>
    %634 = arith.divf %632, %633 : vector<1x512xf32>
    %635 = arith.mulf %629, %629 : vector<1x512xf32>
    %636 = arith.subf %634, %635 : vector<1x512xf32>
    %cst_226 = arith.constant 0.000000e+00 : f32
    %637 = vector.broadcast %cst_226 : f32 to vector<1x512xf32>
    %638 = arith.maximumf %636, %637 : vector<1x512xf32>
    %639 = vector.broadcast %629 : vector<1x512xf32> to vector<8x512xf32>
    %640 = arith.subf %625, %639 : vector<8x512xf32>
    %cst_227 = arith.constant 1.000000e-03 : f32
    %641 = vector.broadcast %cst_227 : f32 to vector<1x512xf32>
    %642 = arith.addf %638, %641 : vector<1x512xf32>
    %643 = math.rsqrt %642 : vector<1x512xf32>
    %644 = arith.mulf %4, %643 : vector<1x512xf32>
    %645 = vector.broadcast %644 : vector<1x512xf32> to vector<8x512xf32>
    %646 = arith.mulf %640, %645 : vector<8x512xf32>
    %647 = arith.index_cast %c7_i32 : i32 to index
    %c0_228 = arith.constant 0 : index
    %c0_229 = arith.constant 0 : index
    %648 = vector.load %arg1[%647, %c0_228, %c0_229] : memref<8x8x512xf32, #tpu.memory_space<vmem>>, vector<1x8x512xf32>
    %649 = vector.shape_cast %648 : vector<1x8x512xf32> to vector<8x512xf32>
    %650 = arith.addf %646, %649 : vector<8x512xf32>
    %651 = vector.extract_strided_slice %650 {offsets = [0, 0], sizes = [8, 128], strides = [1, 1]} : vector<8x512xf32> to vector<8x128xf32>
    %652 = vector.extract_strided_slice %650 {offsets = [0, 128], sizes = [8, 128], strides = [1, 1]} : vector<8x512xf32> to vector<8x128xf32>
    %653 = vector.extract_strided_slice %650 {offsets = [0, 256], sizes = [8, 128], strides = [1, 1]} : vector<8x512xf32> to vector<8x128xf32>
    %654 = vector.extract_strided_slice %650 {offsets = [0, 384], sizes = [8, 128], strides = [1, 1]} : vector<8x512xf32> to vector<8x128xf32>
    %cst_230 = arith.constant 5.000000e-01 : f32
    %655 = vector.broadcast %cst_230 : f32 to vector<8x128xf32>
    %656 = arith.mulf %655, %651 : vector<8x128xf32>
    %657 = math.tanh %656 : vector<8x128xf32>
    %cst_231 = arith.constant 1.000000e+00 : f32
    %658 = vector.broadcast %cst_231 : f32 to vector<8x128xf32>
    %659 = arith.addf %658, %657 : vector<8x128xf32>
    %cst_232 = arith.constant 5.000000e-01 : f32
    %660 = vector.broadcast %cst_232 : f32 to vector<8x128xf32>
    %661 = arith.mulf %660, %659 : vector<8x128xf32>
    %662 = arith.mulf %661, %584 : vector<8x128xf32>
    %cst_233 = arith.constant 5.000000e-01 : f32
    %663 = vector.broadcast %cst_233 : f32 to vector<8x128xf32>
    %664 = arith.mulf %663, %652 : vector<8x128xf32>
    %665 = math.tanh %664 : vector<8x128xf32>
    %cst_234 = arith.constant 1.000000e+00 : f32
    %666 = vector.broadcast %cst_234 : f32 to vector<8x128xf32>
    %667 = arith.addf %666, %665 : vector<8x128xf32>
    %cst_235 = arith.constant 5.000000e-01 : f32
    %668 = vector.broadcast %cst_235 : f32 to vector<8x128xf32>
    %669 = arith.mulf %668, %667 : vector<8x128xf32>
    %670 = math.tanh %654 : vector<8x128xf32>
    %671 = arith.mulf %669, %670 : vector<8x128xf32>
    %672 = arith.addf %662, %671 : vector<8x128xf32>
    %cst_236 = arith.constant dense<0.000000e+00> : vector<128xf32>
    %673 = vector.multi_reduction <add>, %672, %cst_236 [0] : vector<8x128xf32> to vector<128xf32>
    %674 = vector.shape_cast %673 : vector<128xf32> to vector<1x128xf32>
    %cst_237 = arith.constant 8.000000e+00 : f32
    %675 = vector.broadcast %cst_237 : f32 to vector<1x128xf32>
    %676 = arith.divf %674, %675 : vector<1x128xf32>
    %677 = arith.mulf %672, %672 : vector<8x128xf32>
    %cst_238 = arith.constant dense<0.000000e+00> : vector<128xf32>
    %678 = vector.multi_reduction <add>, %677, %cst_238 [0] : vector<8x128xf32> to vector<128xf32>
    %679 = vector.shape_cast %678 : vector<128xf32> to vector<1x128xf32>
    %cst_239 = arith.constant 8.000000e+00 : f32
    %680 = vector.broadcast %cst_239 : f32 to vector<1x128xf32>
    %681 = arith.divf %679, %680 : vector<1x128xf32>
    %682 = arith.mulf %676, %676 : vector<1x128xf32>
    %683 = arith.subf %681, %682 : vector<1x128xf32>
    %cst_240 = arith.constant 0.000000e+00 : f32
    %684 = vector.broadcast %cst_240 : f32 to vector<1x128xf32>
    %685 = arith.maximumf %683, %684 : vector<1x128xf32>
    %686 = vector.broadcast %676 : vector<1x128xf32> to vector<8x128xf32>
    %687 = arith.subf %672, %686 : vector<8x128xf32>
    %cst_241 = arith.constant 1.000000e-03 : f32
    %688 = vector.broadcast %cst_241 : f32 to vector<1x128xf32>
    %689 = arith.addf %685, %688 : vector<1x128xf32>
    %690 = math.rsqrt %689 : vector<1x128xf32>
    %691 = arith.mulf %5, %690 : vector<1x128xf32>
    %692 = vector.broadcast %691 : vector<1x128xf32> to vector<8x128xf32>
    %693 = arith.mulf %687, %692 : vector<8x128xf32>
    %694 = vector.broadcast %6 : vector<1x128xf32> to vector<8x128xf32>
    %695 = arith.addf %693, %694 : vector<8x128xf32>
    %cst_242 = arith.constant 5.000000e-01 : f32
    %696 = vector.broadcast %cst_242 : f32 to vector<8x128xf32>
    %697 = arith.mulf %696, %653 : vector<8x128xf32>
    %698 = math.tanh %697 : vector<8x128xf32>
    %cst_243 = arith.constant 1.000000e+00 : f32
    %699 = vector.broadcast %cst_243 : f32 to vector<8x128xf32>
    %700 = arith.addf %699, %698 : vector<8x128xf32>
    %cst_244 = arith.constant 5.000000e-01 : f32
    %701 = vector.broadcast %cst_244 : f32 to vector<8x128xf32>
    %702 = arith.mulf %701, %700 : vector<8x128xf32>
    %703 = math.tanh %695 : vector<8x128xf32>
    %704 = arith.mulf %702, %703 : vector<8x128xf32>
    %705 = arith.index_cast %c7_i32 : i32 to index
    %c0_245 = arith.constant 0 : index
    %c0_246 = arith.constant 0 : index
    %c0_247 = arith.constant 0 : index
    %706 = vector.load %arg8[%705, %c0_245, %c0_246, %c0_247] : memref<8x2x8x128xf32, #tpu.memory_space<vmem>>, vector<1x1x8x128xf32>
    %707 = vector.shape_cast %706 : vector<1x1x8x128xf32> to vector<8x128xf32>
    %708 = vector.shape_cast %704 : vector<8x128xf32> to vector<1x1x8x128xf32>
    tpu.vector_store %arg8[%705, %c0_245, %c0_246, %c0_247], %708 {strides = array<i32>} : memref<8x2x8x128xf32, #tpu.memory_space<vmem>>, vector<1x1x8x128xf32>,
    %709 = arith.index_cast %c7_i32 : i32 to index
    %c1_248 = arith.constant 1 : index
    %c0_249 = arith.constant 0 : index
    %c0_250 = arith.constant 0 : index
    %710 = vector.load %arg8[%709, %c1_248, %c0_249, %c0_250] : memref<8x2x8x128xf32, #tpu.memory_space<vmem>>, vector<1x1x8x128xf32>
    %711 = vector.shape_cast %710 : vector<1x1x8x128xf32> to vector<8x128xf32>
    %712 = vector.shape_cast %672 : vector<8x128xf32> to vector<1x1x8x128xf32>
    tpu.vector_store %arg8[%709, %c1_248, %c0_249, %c0_250], %712 {strides = array<i32>} : memref<8x2x8x128xf32, #tpu.memory_space<vmem>>, vector<1x1x8x128xf32>,
    %c8_i32 = arith.constant 8 : i32
    %c0_251 = arith.constant 0 : index
    %c0_252 = arith.constant 0 : index
    %713 = vector.load %arg9[%c0_251, %c0_252] : memref<8x128xf32, #tpu.memory_space<vmem>>, vector<8x128xf32>
    tpu.vector_store %arg9[%c0_251, %c0_252], %704 {strides = array<i32>} : memref<8x128xf32, #tpu.memory_space<vmem>>, vector<8x128xf32>,
    %c0_253 = arith.constant 0 : index
    %c0_254 = arith.constant 0 : index
    %714 = vector.load %arg10[%c0_253, %c0_254] : memref<8x128xf32, #tpu.memory_space<vmem>>, vector<8x128xf32>
    tpu.vector_store %arg10[%c0_253, %c0_254], %672 {strides = array<i32>} : memref<8x128xf32, #tpu.memory_space<vmem>>, vector<8x128xf32>,
    return
  }
  func.func @transform_0(%arg0: i32) -> (i32, i32, i32) {
    %c0_i32 = arith.constant 0 : i32
    %c0_i32_0 = arith.constant 0 : i32
    %c0_i32_1 = arith.constant 0 : i32
    return %arg0, %c0_i32, %c0_i32_0 : i32, i32, i32
  }
  func.func @transform_1(%arg0: i32) -> (i32, i32) {
    %c0_i32 = arith.constant 0 : i32
    %c0_i32_0 = arith.constant 0 : i32
    %c0_i32_1 = arith.constant 0 : i32
    return %c0_i32, %c0_i32_0 : i32, i32
  }
  func.func @transform_2(%arg0: i32) -> (i32, i32) {
    %c0_i32 = arith.constant 0 : i32
    %c0_i32_0 = arith.constant 0 : i32
    %c0_i32_1 = arith.constant 0 : i32
    return %c0_i32, %c0_i32_0 : i32, i32
  }
  func.func @transform_3(%arg0: i32) -> (i32, i32) {
    %c0_i32 = arith.constant 0 : i32
    %c0_i32_0 = arith.constant 0 : i32
    %c0_i32_1 = arith.constant 0 : i32
    return %c0_i32, %c0_i32_0 : i32, i32
  }
  func.func @transform_4(%arg0: i32) -> (i32, i32) {
    %c0_i32 = arith.constant 0 : i32
    %c0_i32_0 = arith.constant 0 : i32
    %c0_i32_1 = arith.constant 0 : i32
    return %c0_i32, %c0_i32_0 : i32, i32
  }
  func.func @transform_5(%arg0: i32) -> (i32, i32) {
    %c0_i32 = arith.constant 0 : i32
    %c0_i32_0 = arith.constant 0 : i32
    %c0_i32_1 = arith.constant 0 : i32
    return %c0_i32, %c0_i32_0 : i32, i32
  }
  func.func @transform_6(%arg0: i32) -> (i32, i32) {
    %c0_i32 = arith.constant 0 : i32
    %c0_i32_0 = arith.constant 0 : i32
    %c0_i32_1 = arith.constant 0 : i32
    return %c0_i32, %c0_i32_0 : i32, i32
  }
  func.func @transform_7(%arg0: i32) -> (i32, i32, i32, i32) {
    %c0_i32 = arith.constant 0 : i32
    %c0_i32_0 = arith.constant 0 : i32
    %c0_i32_1 = arith.constant 0 : i32
    %c0_i32_2 = arith.constant 0 : i32
    return %arg0, %c0_i32, %c0_i32_0, %c0_i32_1 : i32, i32, i32, i32
  }
}

</mosaic_0001>

<llo_original>
// kernel: tpu_custom_call.1
$region0: #{tpu_custom_call.1}
  #allocation0 [shape = 'u32[]', space=smem, size = 0x4, offset = 0x4, fixed_abs, tag = 'smem constant byte address 0x4 - core index']
  #allocation1 [shape = 'u32[144,128]{1,0:T(1,128)}', space=vmem, size = 0x12000, scoped, tag = 'internal scratch']
  #allocation2 [shape = 'f32[8,128]{1,0:T(8,128)}', space=vmem, size = 0x1000, scoped, tag = 'scratch operand']
  #allocation3 [shape = 'f32[8,128]{1,0:T(8,128)}', space=vmem, size = 0x1000, scoped, tag = 'scratch operand']
  %s0 = inlined_call_operand.hbm [shape: f32[16,8,512], index: 0, kind: input, shape index: {}]
  %s1 = inlined_call_operand.hbm [shape: f32[128,512], index: 1, kind: input, shape index: {}]
  %s2 = inlined_call_operand.hbm [shape: f32[1,512], index: 2, kind: input, shape index: {}]
  %s3 = inlined_call_operand.vmem [shape: f32[1,128], index: 3, kind: input, shape index: {}]
  %s4 = inlined_call_operand.hbm [shape: f32[1,128], index: 4, kind: input, shape index: {}]
  %s5 = inlined_call_operand.vmem [shape: f32[8,128], index: 5, kind: input, shape index: {}]
  %s6 = inlined_call_operand.hbm [shape: f32[8,128], index: 6, kind: input, shape index: {}]
  %s7 = inlined_call_operand.hbm [shape: f32[16,2,8,128], index: 7, kind: output, shape index: {}]
  %s8 = sld [smem:[#allocation0]]
  $region85: #{tpu_custom_call.1} parent=0
    _
  %s10 = ssub.s32 1, %s8
  %s11 = scalar_select 0, %s10, %s8
  $region1: #{tpu_custom_call.1} parent=0
    #allocation4 [shape = 'u8[262144]{0}', space=vmem, size = 0x40000, scoped, tag = 'input window, operand 0']
    #allocation5 [shape = 's32[2]{0}', space=sflag, size = 0x8, scoped, tag = 'scoped memory for tpu_custom_call.1']
    #allocation6 [shape = 's32[2]{0}', space=sflag, size = 0x8, scoped, tag = 'scoped memory for tpu_custom_call.1']
    #allocation7 [shape = 'u8[262144]{0}', space=vmem, size = 0x40000, scoped, tag = 'input window, operand 1, single buffered']
    #allocation8 [shape = 's32[1]{0}', space=sflag, size = 0x4, scoped, tag = 'scoped memory for tpu_custom_call.1']
    #allocation9 [shape = 'u8[2048]{0}', space=vmem, size = 0x800, scoped, tag = 'input window, operand 2, single buffered']
    #allocation10 [shape = 'u8[512]{0}', space=vmem, size = 0x400, scoped, tag = 'input window, operand 4, single buffered']
    #allocation11 [shape = 's32[1]{0}', space=sflag, size = 0x4, scoped, tag = 'scoped memory for tpu_custom_call.1']
    #allocation12 [shape = 'u8[4096]{0}', space=vmem, size = 0x1000, scoped, tag = 'input window, operand 6, single buffered']
    #allocation13 [shape = 'u8[131072]{0}', space=vmem, size = 0x20000, scoped, tag = 'output window, operand 0']
    %12 = vsyncpa [#allocation5], 0
    %s13 = scalar_lea.sflag [#allocation5], 1
    %14 = vsyncpa %s13, 0
    %15 = vsyncpa [#allocation8], 0
    %16 = vsyncpa [#allocation11], 0
    %17 = vsyncpa [#allocation6], 0
    %s18 = scalar_lea.sflag [#allocation6], 1
    %19 = vsyncpa %s18, 0
    loop: start=0, step=1, limit=4
    $region2: #{tpu_custom_call.1} parent=1 // loop_pre_header
      _
    $region3: #{tpu_custom_call.1} parent=1 // loop_header
      %s21 = sphi 0, %s25
      %p22 = scmp.ge.s32.totalorder %s21, 4
      %s31 = sphi 0, %s33
      %s34 = sphi 0, %s31
      %s35 = sphi 0, %s34
      %s51 = sphi 0, %s35
      %s55 = sphi 0, %s55
      %s57 = sphi 0, %s55
      %s58 = sphi 0, %s57
      %s72 = sphi 0, %s58
      %s76 = sphi 0, %s76
      %s78 = sphi 0, %s76
      %s79 = sphi 0, %s78
      %s93 = sphi 0, %s79
      %s97 = sphi 0, %s97
      %s99 = sphi 0, %s97
      %s100 = sphi 0, %s99
      %s114 = sphi 0, %s100
      %s118 = sphi 0, %s118
      %s120 = sphi 0, %s118
      %s121 = sphi 0, %s120
      %s135 = sphi 0, %s121
      %s139 = sphi 0, %s139
      %s141 = sphi 0, %s139
      %s142 = sphi 0, %s141
      %s156 = sphi 0, %s142
      %s160 = sphi 0, %s160
      %s162 = sphi 0, %s160
      %s163 = sphi 0, %s162
      %s177 = sphi 0, %s163
      %s183 = sphi 0, %s185
      %s186 = sphi 0, %s183
      %s187 = sphi 0, %s186
      %s203 = sphi 0, %s187
    $region4: #{tpu_custom_call.1} parent=1 // loop_header_branch
      %24 = sbr.rel (%p22) target = $region8
    $region5: #{tpu_custom_call.1} parent=1 // loop_body
      %s26 = ssub.s32 %s21, 1
      %s27 = ssub.s32 %s21, 2
      %s28 = sadd.s32 %s21, 1
      %s29 = ssub.s32 %s21, %s28
      %p30 = scmp.eq.s32.totalorder %s29, 0
      %s32 = sadd.s32 %s31, 1
      %s33 = scalar_select %p30, %s31, %s32
      %p36 = pneg %p30
      %p37 = scmp.eq.s32.totalorder %s21, 1
      %p38 = por %p36, %p37
      %p39 = scmp.ne.s32.totalorder %s31, %s34
      %p40 = scmp.eq.s32.totalorder %s21, 0
      %p41 = por %p39, %p40
      %p42 = scmp.ne.s32.totalorder %s31, %s34
      %p43 = scmp.eq.s32.totalorder %s26, 1
      %p44 = por %p42, %p43
      %p45 = scmp.ne.s32.totalorder %s34, %s35
      %p46 = scmp.eq.s32.totalorder %s26, 0
      %p47 = por %p45, %p46
      %p48 = scmp.ne.s32.totalorder %s34, %s35
      %p49 = scmp.eq.s32.totalorder %s27, 1
      %p50 = por %p48, %p49
      %p52 = scmp.ne.s32.totalorder %s35, %s51
      %p53 = scmp.eq.s32.totalorder %s27, 0
      %p54 = por %p52, %p53
      %s56 = sadd.s32 %s55, 1
      %p59 = scmp.eq.s32.totalorder %s21, 1
      %p60 = scmp.ne.s32.totalorder %s55, %s57
      %p61 = scmp.eq.s32.totalorder %s21, 0
      %p62 = por %p60, %p61
      %p63 = scmp.ne.s32.totalorder %s55, %s57
      %p64 = scmp.eq.s32.totalorder %s26, 1
      %p65 = por %p63, %p64
      %p66 = scmp.ne.s32.totalorder %s57, %s58
      %p67 = scmp.eq.s32.totalorder %s26, 0
      %p68 = por %p66, %p67
      %p69 = scmp.ne.s32.totalorder %s57, %s58
      %p70 = scmp.eq.s32.totalorder %s27, 1
      %p71 = por %p69, %p70
      %p73 = scmp.ne.s32.totalorder %s58, %s72
      %p74 = scmp.eq.s32.totalorder %s27, 0
      %p75 = por %p73, %p74
      %s77 = sadd.s32 %s76, 1
      %p80 = scmp.eq.s32.totalorder %s21, 1
      %p81 = scmp.ne.s32.totalorder %s76, %s78
      %p82 = scmp.eq.s32.totalorder %s21, 0
      %p83 = por %p81, %p82
      %p84 = scmp.ne.s32.totalorder %s76, %s78
      %p85 = scmp.eq.s32.totalorder %s26, 1
      %p86 = por %p84, %p85
      %p87 = scmp.ne.s32.totalorder %s78, %s79
      %p88 = scmp.eq.s32.totalorder %s26, 0
      %p89 = por %p87, %p88
      %p90 = scmp.ne.s32.totalorder %s78, %s79
      %p91 = scmp.eq.s32.totalorder %s27, 1
      %p92 = por %p90, %p91
      %p94 = scmp.ne.s32.totalorder %s79, %s93
      %p95 = scmp.eq.s32.totalorder %s27, 0
      %p96 = por %p94, %p95
      %s98 = sadd.s32 %s97, 1
      %p101 = scmp.eq.s32.totalorder %s21, 1
      %p102 = scmp.ne.s32.totalorder %s97, %s99
      %p103 = scmp.eq.s32.totalorder %s21, 0
      %p104 = por %p102, %p103
      %p105 = scmp.ne.s32.totalorder %s97, %s99
      %p106 = scmp.eq.s32.totalorder %s26, 1
      %p107 = por %p105, %p106
      %p108 = scmp.ne.s32.totalorder %s99, %s100
      %p109 = scmp.eq.s32.totalorder %s26, 0
      %p110 = por %p108, %p109
      %p111 = scmp.ne.s32.totalorder %s99, %s100
      %p112 = scmp.eq.s32.totalorder %s27, 1
      %p113 = por %p111, %p112
      %p115 = scmp.ne.s32.totalorder %s100, %s114
      %p116 = scmp.eq.s32.totalorder %s27, 0
      %p117 = por %p115, %p116
      %s119 = sadd.s32 %s118, 1
      %p122 = scmp.eq.s32.totalorder %s21, 1
      %p123 = scmp.ne.s32.totalorder %s118, %s120
      %p124 = scmp.eq.s32.totalorder %s21, 0
      %p125 = por %p123, %p124
      %p126 = scmp.ne.s32.totalorder %s118, %s120
      %p127 = scmp.eq.s32.totalorder %s26, 1
      %p128 = por %p126, %p127
      %p129 = scmp.ne.s32.totalorder %s120, %s121
      %p130 = scmp.eq.s32.totalorder %s26, 0
      %p131 = por %p129, %p130
      %p132 = scmp.ne.s32.totalorder %s120, %s121
      %p133 = scmp.eq.s32.totalorder %s27, 1
      %p134 = por %p132, %p133
      %p136 = scmp.ne.s32.totalorder %s121, %s135
      %p137 = scmp.eq.s32.totalorder %s27, 0
      %p138 = por %p136, %p137
      %s140 = sadd.s32 %s139, 1
      %p143 = scmp.eq.s32.totalorder %s21, 1
      %p144 = scmp.ne.s32.totalorder %s139, %s141
      %p145 = scmp.eq.s32.totalorder %s21, 0
      %p146 = por %p144, %p145
      %p147 = scmp.ne.s32.totalorder %s139, %s141
      %p148 = scmp.eq.s32.totalorder %s26, 1
      %p149 = por %p147, %p148
      %p150 = scmp.ne.s32.totalorder %s141, %s142
      %p151 = scmp.eq.s32.totalorder %s26, 0
      %p152 = por %p150, %p151
      %p153 = scmp.ne.s32.totalorder %s141, %s142
      %p154 = scmp.eq.s32.totalorder %s27, 1
      %p155 = por %p153, %p154
      %p157 = scmp.ne.s32.totalorder %s142, %s156
      %p158 = scmp.eq.s32.totalorder %s27, 0
      %p159 = por %p157, %p158
      %s161 = sadd.s32 %s160, 1
      %p164 = scmp.eq.s32.totalorder %s21, 1
      %p165 = scmp.ne.s32.totalorder %s160, %s162
      %p166 = scmp.eq.s32.totalorder %s21, 0
      %p167 = por %p165, %p166
      %p168 = scmp.ne.s32.totalorder %s160, %s162
      %p169 = scmp.eq.s32.totalorder %s26, 1
      %p170 = por %p168, %p169
      %p171 = scmp.ne.s32.totalorder %s162, %s163
      %p172 = scmp.eq.s32.totalorder %s26, 0
      %p173 = por %p171, %p172
      %p174 = scmp.ne.s32.totalorder %s162, %s163
      %p175 = scmp.eq.s32.totalorder %s27, 1
      %p176 = por %p174, %p175
      %p178 = scmp.ne.s32.totalorder %s163, %s177
      %p179 = scmp.eq.s32.totalorder %s27, 0
      %p180 = por %p178, %p179
      %s181 = ssub.s32 %s21, %s28
      %p182 = scmp.eq.s32.totalorder %s181, 0
      %s184 = sadd.s32 %s183, 1
      %s185 = scalar_select %p182, %s183, %s184
      %p188 = pneg %p182
      %p189 = scmp.eq.s32.totalorder %s21, 1
      %p190 = por %p188, %p189
      %p191 = scmp.ne.s32.totalorder %s183, %s186
      %p192 = scmp.eq.s32.totalorder %s21, 0
      %p193 = por %p191, %p192
      %p194 = scmp.ne.s32.totalorder %s183, %s186
      %p195 = scmp.eq.s32.totalorder %s26, 1
      %p196 = por %p194, %p195
      %p197 = scmp.ne.s32.totalorder %s186, %s187
      %p198 = scmp.eq.s32.totalorder %s26, 0
      %p199 = por %p197, %p198
      %p200 = scmp.ne.s32.totalorder %s186, %s187
      %p201 = scmp.eq.s32.totalorder %s27, 1
      %p202 = por %p200, %p201
      %p204 = scmp.ne.s32.totalorder %s187, %s203
      %p205 = scmp.eq.s32.totalorder %s27, 0
      %p206 = por %p204, %p205
      %p207 = scmp.le.s32.totalorder 1, %s21
      %p208 = scmp.lt.s32.totalorder %s21, 3
      %p209 = pnand %p207, %p208
      %p210 = pneg %p209
      // Predicated region
      $region9: #{tpu_custom_call.1} parent=5 // pred_check
        _
      $region10: #{tpu_custom_call.1} parent=5 // pred_check_branch
        %212 = sbr.rel (%p209) target = $region12
      $region11: #{tpu_custom_call.1} parent=5 // pred_region
        %s213 = ssub.s32 %s21, 1
        // Predicated region
        $region13: #{tpu_custom_call.1} parent=11 // pred_check
          %p214 = pneg %p68
        $region14: #{tpu_custom_call.1} parent=11 // pred_check_branch
          %216 = sbr.rel (%p214) target = $region16
        $region15: #{tpu_custom_call.1} parent=11 // pred_region
          %s218 = ssub.s32 8192, 8192
          %219 = vsyncadd [#allocation8], %s218
          %s220 = sshll.u32 [#allocation7], 4
          %s221 = int_to_ptr.vmem [resolvable:$true] %s220
          %226 = dma.hbm_to_vmem [thread:$0]  %s1, 8192, %s221, [#allocation8], 512, 512, 32
        $region16: #{tpu_custom_call.1} parent=11 // pred_fallthru
          _
        // Predicated region
        $region17: #{tpu_custom_call.1} parent=11 // pred_check
          %p227 = pneg %p89
        $region18: #{tpu_custom_call.1} parent=11 // pred_check_branch
          %229 = sbr.rel (%p227) target = $region20
        $region19: #{tpu_custom_call.1} parent=11 // pred_region
          %s231 = ssub.s32 64, 64
          %232 = vsyncadd [#allocation8], %s231
          %s234 = sshll.u32 [#allocation9], 4
          %s235 = int_to_ptr.vmem [resolvable:$true] %s234
          %237 = dma.hbm_to_vmem [thread:$0]  %s2, 64, %s235, [#allocation8]
        $region20: #{tpu_custom_call.1} parent=11 // pred_fallthru
          _
        // Predicated region
        $region21: #{tpu_custom_call.1} parent=11 // pred_check
          %p238 = pneg %p110
        $region22: #{tpu_custom_call.1} parent=11 // pred_check_branch
          %240 = sbr.rel (%p238) target = $region24
        $region23: #{tpu_custom_call.1} parent=11 // pred_region
          _
        $region24: #{tpu_custom_call.1} parent=11 // pred_fallthru
          _
        // Predicated region
        $region25: #{tpu_custom_call.1} parent=11 // pred_check
          %p241 = pneg %p131
        $region26: #{tpu_custom_call.1} parent=11 // pred_check_branch
          %243 = sbr.rel (%p241) target = $region28
        $region27: #{tpu_custom_call.1} parent=11 // pred_region
          %s245 = ssub.s32 16, 16
          %246 = vsyncadd [#allocation11], %s245
          %s248 = sshll.u32 [#allocation10], 4
          %s249 = int_to_ptr.vmem [resolvable:$true] %s248
          %251 = dma.hbm_to_vmem [thread:$0]  %s4, 16, %s249, [#allocation11]
        $region28: #{tpu_custom_call.1} parent=11 // pred_fallthru
          _
        // Predicated region
        $region29: #{tpu_custom_call.1} parent=11 // pred_check
          %p252 = pneg %p152
        $region30: #{tpu_custom_call.1} parent=11 // pred_check_branch
          %254 = sbr.rel (%p252) target = $region32
        $region31: #{tpu_custom_call.1} parent=11 // pred_region
          _
        $region32: #{tpu_custom_call.1} parent=11 // pred_fallthru
          _
        // Predicated region
        $region33: #{tpu_custom_call.1} parent=11 // pred_check
          %p255 = pneg %p173
        $region34: #{tpu_custom_call.1} parent=11 // pred_check_branch
          %257 = sbr.rel (%p255) target = $region36
        $region35: #{tpu_custom_call.1} parent=11 // pred_region
          %s259 = ssub.s32 128, 128
          %260 = vsyncadd [#allocation11], %s259
          %s262 = sshll.u32 [#allocation12], 4
          %s263 = int_to_ptr.vmem [resolvable:$true] %s262
          %265 = dma.hbm_to_vmem [thread:$0]  %s6, 128, %s263, [#allocation11]
        $region36: #{tpu_custom_call.1} parent=11 // pred_fallthru
          _
      $region12: #{tpu_custom_call.1} parent=5 // pred_fallthru
        _
      %p266 = scmp.lt.s32.totalorder %s21, 2
      // Predicated region
      $region37: #{tpu_custom_call.1} parent=5 // pred_check
        %p267 = pneg %p266
      $region38: #{tpu_custom_call.1} parent=5 // pred_check_branch
        %269 = sbr.rel (%p267) target = $region40
      $region39: #{tpu_custom_call.1} parent=5 // pred_region
        // Predicated region
        $region41: #{tpu_custom_call.1} parent=39 // pred_check
          %p270 = pneg %p41
        $region42: #{tpu_custom_call.1} parent=39 // pred_check_branch
          %272 = sbr.rel (%p270) target = $region44
        $region43: #{tpu_custom_call.1} parent=39 // pred_region
          %s273 = sand.u32 %s31, 1
          %s274 = scalar_lea.sflag [#allocation5], %s273
          %s275 = sand.u32 %s31, 1
          %s276 = smul.addr %s275, 256
          %s277 = scalar_lea.vmem [#allocation4], %s276
          %s278 = smul.u32 8, %s21
          %s280 = ssub.s32 4096, 4096
          %281 = vsyncadd %s274, %s280
          %s282 = smul.addr %s278, 4
          %s283 = smul.addr %s282, 128
          %s284 = scalar_lea.hbm %s0, %s283
          %s285 = sshll.u32 %s277, 4
          %s286 = int_to_ptr.vmem [resolvable:$true] %s285
          %291 = dma.hbm_to_vmem [thread:$0]  %s284, 4096, %s286, %s274, 512, 512, 32
        $region44: #{tpu_custom_call.1} parent=39 // pred_fallthru
          _
      $region40: #{tpu_custom_call.1} parent=5 // pred_fallthru
        _
      %p292 = scmp.le.s32.totalorder 1, %s21
      %p293 = scmp.lt.s32.totalorder %s21, 3
      %p294 = pnand %p292, %p293
      %p295 = pneg %p294
      // Predicated region
      $region45: #{tpu_custom_call.1} parent=5 // pred_check
        _
      $region46: #{tpu_custom_call.1} parent=5 // pred_check_branch
        %297 = sbr.rel (%p294) target = $region48
      $region47: #{tpu_custom_call.1} parent=5 // pred_region
        %s298 = ssub.s32 %s21, 1
        %s299 = sand.u32 %s34, 1
        %s300 = scalar_lea.sflag [#allocation5], %s299
        %s301 = sand.u32 %s34, 1
        %s302 = smul.addr %s301, 256
        %s303 = scalar_lea.vmem [#allocation4], %s302
        // Predicated region
        $region49: #{tpu_custom_call.1} parent=47 // pred_check
          %p304 = pneg %p47
        $region50: #{tpu_custom_call.1} parent=47 // pred_check_branch
          %306 = sbr.rel (%p304) target = $region52
        $region51: #{tpu_custom_call.1} parent=47 // pred_region
          %307 = dma.done %s300, 4096
        $region52: #{tpu_custom_call.1} parent=47 // pred_fallthru
          _
        // Predicated region
        $region53: #{tpu_custom_call.1} parent=47 // pred_check
          %p308 = pneg %p68
        $region54: #{tpu_custom_call.1} parent=47 // pred_check_branch
          %310 = sbr.rel (%p308) target = $region56
        $region55: #{tpu_custom_call.1} parent=47 // pred_region
          %311 = dma.done [#allocation8], 8192
        $region56: #{tpu_custom_call.1} parent=47 // pred_fallthru
          _
        // Predicated region
        $region57: #{tpu_custom_call.1} parent=47 // pred_check
          %p312 = pneg %p89
        $region58: #{tpu_custom_call.1} parent=47 // pred_check_branch
          %314 = sbr.rel (%p312) target = $region60
        $region59: #{tpu_custom_call.1} parent=47 // pred_region
          %315 = dma.done [#allocation8], 64
        $region60: #{tpu_custom_call.1} parent=47 // pred_fallthru
          _
        // Predicated region
        $region61: #{tpu_custom_call.1} parent=47 // pred_check
          %p316 = pneg %p131
        $region62: #{tpu_custom_call.1} parent=47 // pred_check_branch
          %318 = sbr.rel (%p316) target = $region64
        $region63: #{tpu_custom_call.1} parent=47 // pred_region
          %319 = dma.done [#allocation11], 16
        $region64: #{tpu_custom_call.1} parent=47 // pred_fallthru
          _
        // Predicated region
        $region65: #{tpu_custom_call.1} parent=47 // pred_check
          %p320 = pneg %p173
        $region66: #{tpu_custom_call.1} parent=47 // pred_check_branch
          %322 = sbr.rel (%p320) target = $region68
        $region67: #{tpu_custom_call.1} parent=47 // pred_region
          %323 = dma.done [#allocation11], 128
        $region68: #{tpu_custom_call.1} parent=47 // pred_fallthru
          _
        %s324 = sand.u32 %s34, 1
        %s325 = scalar_lea.sflag [#allocation5], %s324
        %s326 = sand.u32 %s34, 1
        %s327 = smul.addr %s326, 256
        %s328 = scalar_lea.vmem [#allocation4], %s327
        %p329 = pneg %p47
        %p330 = pneg %p44
        %p331 = pneg %p68
        %p332 = pneg %p65
        %p333 = pneg %p89
        %p334 = pneg %p86
        %p335 = pneg %p110
        %p336 = pneg %p107
        %p337 = pneg %p131
        %p338 = pneg %p128
        %p339 = pneg %p152
        %p340 = pneg %p149
        %p341 = pneg %p173
        %p342 = pneg %p170
        %p343 = pneg %p199
        %p344 = pneg %p196
        %s345 = sand.u32 %s186, 1
        %s346 = scalar_lea.sflag [#allocation6], %s345
        %s347 = sand.u32 %s186, 1
        %s348 = smul.addr %s347, 128
        %s349 = scalar_lea.vmem [#allocation13], %s348
        %s350 = smul.u32 8, %s26
        %s351 = smul.u32 8, %s26
        %p352 = scmp.eq.s32.totalorder %s26, 0
        // Predicated region
        $region69: #{tpu_custom_call.1} parent=47 // pred_check
          %p353 = pneg %p352
        $region70: #{tpu_custom_call.1} parent=47 // pred_check_branch
          %355 = sbr.rel (%p353) target = $region72
        $region71: #{tpu_custom_call.1} parent=47 // pred_region
          %v356 = vld [vmem:[%s5] sm:$0xff]
          %357 = vst [vmem:[#allocation2] sm:$0xff] %v356
          %v358 = vld [vmem:[#allocation12] sm:$0xff]
          %359 = vst [vmem:[#allocation3] sm:$0xff] %v358
        $region72: #{tpu_custom_call.1} parent=47 // pred_fallthru
          _
        %v360 = vld [vmem:[#allocation7] sm:$0xff]
        %v361 = vld [vmem:[#allocation7 + $0x8] sm:$0xff]
        %v362 = vld [vmem:[#allocation7 + $0x10] sm:$0xff]
        %v363 = vld [vmem:[#allocation7 + $0x18] sm:$0xff]
        %v364 = vld [vmem:[#allocation7 + $0x20] sm:$0xff]
        %v365 = vld [vmem:[#allocation7 + $0x28] sm:$0xff]
        %v366 = vld [vmem:[#allocation7 + $0x30] sm:$0xff]
        %v367 = vld [vmem:[#allocation7 + $0x38] sm:$0xff]
        %v368 = vld [vmem:[#allocation7 + $0x40] sm:$0xff]
        %v369 = vld [vmem:[#allocation7 + $0x48] sm:$0xff]
        %v370 = vld [vmem:[#allocation7 + $0x50] sm:$0xff]
        %v371 = vld [vmem:[#allocation7 + $0x58] sm:$0xff]
        %v372 = vld [vmem:[#allocation7 + $0x60] sm:$0xff]
        %v373 = vld [vmem:[#allocation7 + $0x68] sm:$0xff]
        %v374 = vld [vmem:[#allocation7 + $0x70] sm:$0xff]
        %v375 = vld [vmem:[#allocation7 + $0x78] sm:$0xff]
        %v376 = vld [vmem:[#allocation7 + $0x80] sm:$0xff]
        %v377 = vld [vmem:[#allocation7 + $0x88] sm:$0xff]
        %v378 = vld [vmem:[#allocation7 + $0x90] sm:$0xff]
        %v379 = vld [vmem:[#allocation7 + $0x98] sm:$0xff]
        %v380 = vld [vmem:[#allocation7 + $0xa0] sm:$0xff]
        %v381 = vld [vmem:[#allocation7 + $0xa8] sm:$0xff]
        %v382 = vld [vmem:[#allocation7 + $0xb0] sm:$0xff]
        %v383 = vld [vmem:[#allocation7 + $0xb8] sm:$0xff]
        %v384 = vld [vmem:[#allocation7 + $0xc0] sm:$0xff]
        %v385 = vld [vmem:[#allocation7 + $0xc8] sm:$0xff]
        %v386 = vld [vmem:[#allocation7 + $0xd0] sm:$0xff]
        %v387 = vld [vmem:[#allocation7 + $0xd8] sm:$0xff]
        %v388 = vld [vmem:[#allocation7 + $0xe0] sm:$0xff]
        %v389 = vld [vmem:[#allocation7 + $0xe8] sm:$0xff]
        %v390 = vld [vmem:[#allocation7 + $0xf0] sm:$0xff]
        %v391 = vld [vmem:[#allocation7 + $0xf8] sm:$0xff]
        %v392 = vld [vmem:[#allocation7 + $0x100] sm:$0xff]
        %v393 = vld [vmem:[#allocation7 + $0x108] sm:$0xff]
        %v394 = vld [vmem:[#allocation7 + $0x110] sm:$0xff]
        %v395 = vld [vmem:[#allocation7 + $0x118] sm:$0xff]
        %v396 = vld [vmem:[#allocation7 + $0x120] sm:$0xff]
        %v397 = vld [vmem:[#allocation7 + $0x128] sm:$0xff]
        %v398 = vld [vmem:[#allocation7 + $0x130] sm:$0xff]
        %v399 = vld [vmem:[#allocation7 + $0x138] sm:$0xff]
        %v400 = vld [vmem:[#allocation7 + $0x140] sm:$0xff]
        %v401 = vld [vmem:[#allocation7 + $0x148] sm:$0xff]
        %v402 = vld [vmem:[#allocation7 + $0x150] sm:$0xff]
        %v403 = vld [vmem:[#allocation7 + $0x158] sm:$0xff]
        %v404 = vld [vmem:[#allocation7 + $0x160] sm:$0xff]
        %v405 = vld [vmem:[#allocation7 + $0x168] sm:$0xff]
        %v406 = vld [vmem:[#allocation7 + $0x170] sm:$0xff]
        %v407 = vld [vmem:[#allocation7 + $0x178] sm:$0xff]
        %v408 = vld [vmem:[#allocation7 + $0x180] sm:$0xff]
        %v409 = vld [vmem:[#allocation7 + $0x188] sm:$0xff]
        %v410 = vld [vmem:[#allocation7 + $0x190] sm:$0xff]
        %v411 = vld [vmem:[#allocation7 + $0x198] sm:$0xff]
        %v412 = vld [vmem:[#allocation7 + $0x1a0] sm:$0xff]
        %v413 = vld [vmem:[#allocation7 + $0x1a8] sm:$0xff]
        %v414 = vld [vmem:[#allocation7 + $0x1b0] sm:$0xff]
        %v415 = vld [vmem:[#allocation7 + $0x1b8] sm:$0xff]
        %v416 = vld [vmem:[#allocation7 + $0x1c0] sm:$0xff]
        %v417 = vld [vmem:[#allocation7 + $0x1c8] sm:$0xff]
        %v418 = vld [vmem:[#allocation7 + $0x1d0] sm:$0xff]
        %v419 = vld [vmem:[#allocation7 + $0x1d8] sm:$0xff]
        %v420 = vld [vmem:[#allocation7 + $0x1e0] sm:$0xff]
        %v421 = vld [vmem:[#allocation7 + $0x1e8] sm:$0xff]
        %v422 = vld [vmem:[#allocation7 + $0x1f0] sm:$0xff]
        %v423 = vld [vmem:[#allocation7 + $0x1f8] sm:$0xff]
        %v424 = vld [vmem:[#allocation9] sm:$0xf]
        %v425 = vld [vmem:[%s3] sm:$0x1]
        %v426 = vld [vmem:[#allocation10] sm:$0x1]
        %v427 = vld [vmem:[#allocation2] sm:$0xff]
        %v428 = vld [vmem:[#allocation3] sm:$0xff]
        %429 = vmatprep.subr.mxu0 %v421
        %430 = vmatpush1.msra.mxu0 %v420
        %431 = vmatprep.subr.mxu0 %v417
        %432 = vmatpush1.msra.mxu0 %v416
        %433 = vmatprep.subr.mxu0 %v413
        %434 = vmatpush1.msra.mxu0 %v412
        %435 = vmatprep.subr.mxu0 %v409
        %436 = vmatpush1.msra.mxu0 %v408
        %437 = vmatprep.subr.mxu0 %v405
        %438 = vmatpush1.msra.mxu0 %v404
        %439 = vmatprep.subr.mxu0 %v401
        %440 = vmatpush1.msra.mxu0 %v400
        %441 = vmatprep.subr.mxu0 %v397
        %442 = vmatpush1.msra.mxu0 %v396
        %443 = vmatprep.subr.mxu0 %v393
        %444 = vmatpush1.msra.mxu0 %v392
        %445 = vmatprep.subr.mxu0 %v389
        %446 = vmatpush1.msra.mxu0 %v388
        %447 = vmatprep.subr.mxu0 %v385
        %448 = vmatpush1.msra.mxu0 %v384
        %449 = vmatprep.subr.mxu0 %v381
        %450 = vmatpush1.msra.mxu0 %v380
        %451 = vmatprep.subr.mxu0 %v377
        %452 = vmatpush1.msra.mxu0 %v376
        %453 = vmatprep.subr.mxu0 %v373
        %454 = vmatpush1.msra.mxu0 %v372
        %455 = vmatprep.subr.mxu0 %v369
        %456 = vmatpush1.msra.mxu0 %v368
        %457 = vmatprep.subr.mxu0 %v365
        %458 = vmatpush1.msra.mxu0 %v364
        %459 = vmatprep.subr.mxu0 %v361
        %460 = vmatpush1.msra.mxu0 %v360
        %461 = vmatprep.subr.mxu0 0.0
        %462 = vmatpush2.msra.mxu0 0.0
        %463 = vmatprep.subr.mxu0 0.0
        %464 = vmatpush2.msra.mxu0 0.0
        %465 = vmatprep.subr.mxu0 0.0
        %466 = vmatpush2.msra.mxu0 0.0
        %467 = vmatprep.subr.mxu0 0.0
        %468 = vmatpush2.msra.mxu0 0.0
        %469 = vmatprep.subr.mxu0 0.0
        %470 = vmatpush2.msra.mxu0 0.0
        %471 = vmatprep.subr.mxu0 0.0
        %472 = vmatpush2.msra.mxu0 0.0
        %473 = vmatprep.subr.mxu0 0.0
        %474 = vmatpush2.msra.mxu0 0.0
        %475 = vmatprep.subr.mxu0 0.0
        %476 = vmatpush2.msra.mxu0 0.0
        %477 = vmatprep.subr.mxu0 0.0
        %478 = vmatpush2.msra.mxu0 0.0
        %479 = vmatprep.subr.mxu0 0.0
        %480 = vmatpush2.msra.mxu0 0.0
        %481 = vmatprep.subr.mxu0 0.0
        %482 = vmatpush2.msra.mxu0 0.0
        %483 = vmatprep.subr.mxu0 0.0
        %484 = vmatpush2.msra.mxu0 0.0
        %485 = vmatprep.subr.mxu0 0.0
        %486 = vmatpush2.msra.mxu0 0.0
        %487 = vmatprep.subr.mxu0 0.0
        %488 = vmatpush2.msra.mxu0 0.0
        %489 = vmatprep.subr.mxu0 0.0
        %490 = vmatpush2.msra.mxu0 0.0
        %491 = vmatprep.subr.mxu0 0.0
        %492 = vmatpush2.msra.mxu0 0.0
        %493 = vmatprep.mubr.f32.mxu0 0.0
        %494 = vmatmul.mubr.f32.gmra.mxu0 %v427
        %v495 = vpop.f32.mrf.mxu0
        %v496 = vadd.f32 0.0, %v495
        %v497 = vpop.f32.mrf.mxu0
        %v498 = vadd.f32 0.0, %v497
        %499 = vdwg.mxu0
        %500 = vmatprep.subr.mxu0 %v423
        %501 = vmatpush1.msra.mxu0 %v422
        %502 = vmatprep.subr.mxu0 %v419
        %503 = vmatpush1.msra.mxu0 %v418
        %504 = vmatprep.subr.mxu0 %v415
        %505 = vmatpush1.msra.mxu0 %v414
        %506 = vmatprep.subr.mxu0 %v411
        %507 = vmatpush1.msra.mxu0 %v410
        %508 = vmatprep.subr.mxu0 %v407
        %509 = vmatpush1.msra.mxu0 %v406
        %510 = vmatprep.subr.mxu0 %v403
        %511 = vmatpush1.msra.mxu0 %v402
        %512 = vmatprep.subr.mxu0 %v399
        %513 = vmatpush1.msra.mxu0 %v398
        %514 = vmatprep.subr.mxu0 %v395
        %515 = vmatpush1.msra.mxu0 %v394
        %516 = vmatprep.subr.mxu0 %v391
        %517 = vmatpush1.msra.mxu0 %v390
        %518 = vmatprep.subr.mxu0 %v387
        %519 = vmatpush1.msra.mxu0 %v386
        %520 = vmatprep.subr.mxu0 %v383
        %521 = vmatpush1.msra.mxu0 %v382
        %522 = vmatprep.subr.mxu0 %v379
        %523 = vmatpush1.msra.mxu0 %v378
        %524 = vmatprep.subr.mxu0 %v375
        %525 = vmatpush1.msra.mxu0 %v374
        %526 = vmatprep.subr.mxu0 %v371
        %527 = vmatpush1.msra.mxu0 %v370
        %528 = vmatprep.subr.mxu0 %v367
        %529 = vmatpush1.msra.mxu0 %v366
        %530 = vmatprep.subr.mxu0 %v363
        %531 = vmatpush1.msra.mxu0 %v362
        %532 = vmatprep.subr.mxu0 0.0
        %533 = vmatpush2.msra.mxu0 0.0
        %534 = vmatprep.subr.mxu0 0.0
        %535 = vmatpush2.msra.mxu0 0.0
        %536 = vmatprep.subr.mxu0 0.0
        %537 = vmatpush2.msra.mxu0 0.0
        %538 = vmatprep.subr.mxu0 0.0
        %539 = vmatpush2.msra.mxu0 0.0
        %540 = vmatprep.subr.mxu0 0.0
        %541 = vmatpush2.msra.mxu0 0.0
        %542 = vmatprep.subr.mxu0 0.0
        %543 = vmatpush2.msra.mxu0 0.0
        %544 = vmatprep.subr.mxu0 0.0
        %545 = vmatpush2.msra.mxu0 0.0
        %546 = vmatprep.subr.mxu0 0.0
        %547 = vmatpush2.msra.mxu0 0.0
        %548 = vmatprep.subr.mxu0 0.0
        %549 = vmatpush2.msra.mxu0 0.0
        %550 = vmatprep.subr.mxu0 0.0
        %551 = vmatpush2.msra.mxu0 0.0
        %552 = vmatprep.subr.mxu0 0.0
        %553 = vmatpush2.msra.mxu0 0.0
        %554 = vmatprep.subr.mxu0 0.0
        %555 = vmatpush2.msra.mxu0 0.0
        %556 = vmatprep.subr.mxu0 0.0
        %557 = vmatpush2.msra.mxu0 0.0
        %558 = vmatprep.subr.mxu0 0.0
        %559 = vmatpush2.msra.mxu0 0.0
        %560 = vmatprep.subr.mxu0 0.0
        %561 = vmatpush2.msra.mxu0 0.0
        %562 = vmatprep.subr.mxu0 0.0
        %563 = vmatpush2.msra.mxu0 0.0
        %564 = vmatprep.mubr.f32.mxu0 0.0
        %565 = vmatmul.mubr.f32.gmra.mxu0 %v427
        %v566 = vpop.f32.mrf.mxu0
        %v567 = vadd.f32 0.0, %v566
        %v568 = vpop.f32.mrf.mxu0
        %v569 = vadd.f32 0.0, %v568
        %570 = vdwg.mxu0
        %v571 = vrot.slane %v496, 4
        %v572 = vadd.f32 %v496, %v571
        %v573 = vrot.slane %v572, 2
        %v574 = vadd.f32 %v572, %v573
        %v575 = vrot.slane %v574, 1
        %v576 = vadd.f32 %v574, %v575
        %v577 = vrot.slane %v498, 4
        %v578 = vadd.f32 %v498, %v577
        %v579 = vrot.slane %v578, 2
        %v580 = vadd.f32 %v578, %v579
        %v581 = vrot.slane %v580, 1
        %v582 = vadd.f32 %v580, %v581
        %v583 = vrot.slane %v567, 4
        %v584 = vadd.f32 %v567, %v583
        %v585 = vrot.slane %v584, 2
        %v586 = vadd.f32 %v584, %v585
        %v587 = vrot.slane %v586, 1
        %v588 = vadd.f32 %v586, %v587
        %v589 = vrot.slane %v569, 4
        %v590 = vadd.f32 %v569, %v589
        %v591 = vrot.slane %v590, 2
        %v592 = vadd.f32 %v590, %v591
        %v593 = vrot.slane %v592, 1
        %v594 = vadd.f32 %v592, %v593
        %v595 = vrcp.pop 8.0
        %v596 = vmul.f32 %v576, %v595
        %v597 = vmul.f32 %v582, %v595
        %v598 = vmul.f32 %v588, %v595
        %v599 = vmul.f32 %v594, %v595
        %v600 = vmul.f32 %v496, %v496
        %v601 = vmul.f32 %v498, %v498
        %v602 = vmul.f32 %v567, %v567
        %v603 = vmul.f32 %v569, %v569
        %v604 = vrot.slane %v600, 4
        %v605 = vadd.f32 %v600, %v604
        %v606 = vrot.slane %v605, 2
        %v607 = vadd.f32 %v605, %v606
        %v608 = vrot.slane %v607, 1
        %v609 = vadd.f32 %v607, %v608
        %v610 = vrot.slane %v601, 4
        %v611 = vadd.f32 %v601, %v610
        %v612 = vrot.slane %v611, 2
        %v613 = vadd.f32 %v611, %v612
        %v614 = vrot.slane %v613, 1
        %v615 = vadd.f32 %v613, %v614
        %v616 = vrot.slane %v602, 4
        %v617 = vadd.f32 %v602, %v616
        %v618 = vrot.slane %v617, 2
        %v619 = vadd.f32 %v617, %v618
        %v620 = vrot.slane %v619, 1
        %v621 = vadd.f32 %v619, %v620
        %v622 = vrot.slane %v603, 4
        %v623 = vadd.f32 %v603, %v622
        %v624 = vrot.slane %v623, 2
        %v625 = vadd.f32 %v623, %v624
        %v626 = vrot.slane %v625, 1
        %v627 = vadd.f32 %v625, %v626
        %v628 = vmul.f32 %v609, %v595
        %v629 = vmul.f32 %v615, %v595
        %v630 = vmul.f32 %v621, %v595
        %v631 = vmul.f32 %v627, %v595
        %v632 = vmul.f32 %v596, %v596
        %v633 = vmul.f32 %v597, %v597
        %v634 = vmul.f32 %v598, %v598
        %v635 = vmul.f32 %v599, %v599
        %v636 = vsub.f32 %v628, %v632
        %v637 = vsub.f32 %v629, %v633
        %v638 = vsub.f32 %v630, %v634
        %v639 = vsub.f32 %v631, %v635
        %v640 = vmax.f32 %v636, 0.0
        %v641 = vmax.f32 %v637, 0.0
        %v642 = vmax.f32 %v638, 0.0
        %v643 = vmax.f32 %v639, 0.0
        %v644 = vsub.f32 %v496, %v596
        %v645 = vsub.f32 %v498, %v597
        %v646 = vsub.f32 %v567, %v598
        %v647 = vsub.f32 %v569, %v599
        %v648 = vadd.f32 %v640, 0.001
        %v649 = vadd.f32 %v641, 0.001
        %v650 = vadd.f32 %v642, 0.001
        %v651 = vadd.f32 %v643, 0.001
        %v652 = vrsqrt.pop %v648
        %v653 = vrsqrt.pop %v649
        %v654 = vrsqrt.pop %v650
        %v655 = vrsqrt.pop %v651
        %v660 = vcombine.low %v652, %v653
        %v661 = vcombine.low %v654, %v655
        %v663 = vunpack.c.l.s4 1966171168
        %v664 = vunpack.c.0.s8 %v663
        %v665 = vlaneseq
        %v666 = vshrl.u32 %v665, 7
        %v667 = vsub.s32 %v664, %v666
        %v668 = vrot.slane %v660, %v667
        %v670 = vunpack.c.l.s4 1966171168
        %v671 = vunpack.c.0.s8 %v670
        %v672 = vlaneseq
        %v673 = vshrl.u32 %v672, 7
        %v674 = vsub.s32 %v671, %v673
        %v675 = vrot.slane %v661, %v674
        %v676 = vcombine.low %v668, %v675
        %v678 = vunpack.c.l.s4 1966171168
        %v679 = vunpack.c.0.s8 %v678
        %v680 = vlaneseq
        %v681 = vshrl.u32 %v680, 7
        %v682 = vsub.s32 %v679, %v681
        %v683 = vrot.slane %v676, %v682
        %v685 = vmul.f32 %v424, %v683
        %v687 = vlaneseq
        %v688 = vshrl.u32 %v687, 7
        %v689 = vsub.s32 0, %v688
        %v690 = vrot.slane %v685, %v689
        %v691 = vlaneseq
        %v692 = vshrl.u32 %v691, 7
        %v693 = vsub.s32 1, %v692
        %v694 = vrot.slane %v685, %v693
        %v695 = vlaneseq
        %v696 = vshrl.u32 %v695, 7
        %v697 = vsub.s32 2, %v696
        %v698 = vrot.slane %v685, %v697
        %v699 = vlaneseq
        %v700 = vshrl.u32 %v699, 7
        %v701 = vsub.s32 3, %v700
        %v702 = vrot.slane %v685, %v701
        %v707 = vmul.f32 %v644, %v690
        %v708 = vmul.f32 %v645, %v694
        %v709 = vmul.f32 %v646, %v698
        %v710 = vmul.f32 %v647, %v702
        %v711 = vld [vmem:[%s303] sm:$0xff]
        %v712 = vld [vmem:[%s303 + $0x8] sm:$0xff]
        %v713 = vld [vmem:[%s303 + $0x10] sm:$0xff]
        %v714 = vld [vmem:[%s303 + $0x18] sm:$0xff]
        %v715 = vadd.f32 %v707, %v711
        %v716 = vadd.f32 %v708, %v712
        %v717 = vadd.f32 %v709, %v713
        %v718 = vadd.f32 %v710, %v714
        %v719 = vmul.f32 %v715, 0.5
        %v720 = vtanh.pop %v719
        %v721 = vadd.f32 %v720, 1.0
        %v722 = vmul.f32 %v721, 0.5
        %v723 = vmul.f32 %v722, %v428
        %v724 = vmul.f32 %v716, 0.5
        %v725 = vtanh.pop %v724
        %v726 = vadd.f32 %v725, 1.0
        %v727 = vmul.f32 %v726, 0.5
        %v728 = vtanh.pop %v718
        %v729 = vmul.f32 %v727, %v728
        %v730 = vadd.f32 %v723, %v729
        %v731 = vrot.slane %v730, 4
        %v732 = vadd.f32 %v730, %v731
        %v733 = vrot.slane %v732, 2
        %v734 = vadd.f32 %v732, %v733
        %v735 = vrot.slane %v734, 1
        %v736 = vadd.f32 %v734, %v735
        %v737 = vmul.f32 %v736, %v595
        %v738 = vmul.f32 %v730, %v730
        %v739 = vrot.slane %v738, 4
        %v740 = vadd.f32 %v738, %v739
        %v741 = vrot.slane %v740, 2
        %v742 = vadd.f32 %v740, %v741
        %v743 = vrot.slane %v742, 1
        %v744 = vadd.f32 %v742, %v743
        %v745 = vmul.f32 %v744, %v595
        %v746 = vmul.f32 %v737, %v737
        %v747 = vsub.f32 %v745, %v746
        %v748 = vmax.f32 %v747, 0.0
        %v749 = vsub.f32 %v730, %v737
        %v750 = vadd.f32 %v748, 0.001
        %v751 = vrsqrt.pop %v750
        %v752 = vmul.f32 %v425, %v751
        %v754 = vlaneseq
        %v755 = vshrl.u32 %v754, 7
        %v756 = vsub.s32 0, %v755
        %v757 = vrot.slane %v752, %v756
        %v759 = vmul.f32 %v749, %v757
        %v761 = vlaneseq
        %v762 = vshrl.u32 %v761, 7
        %v763 = vsub.s32 0, %v762
        %v764 = vrot.slane %v426, %v763
        %v766 = vadd.f32 %v759, %v764
        %v767 = vmul.f32 %v717, 0.5
        %v768 = vtanh.pop %v767
        %v769 = vadd.f32 %v768, 1.0
        %v770 = vmul.f32 %v769, 0.5
        %v771 = vtanh.pop %v766
        %v772 = vmul.f32 %v770, %v771
        %773 = vst [vmem:[%s349] sm:$0xff] %v772
        %s774 = scalar_lea.vmem %s349, 8 [#allocation13]
        %775 = vst [vmem:[%s774] sm:$0xff] %v730
        %776 = vmatprep.subr.mxu0 %v421
        %777 = vmatpush1.msra.mxu0 %v420
        %778 = vmatprep.subr.mxu0 %v417
        %779 = vmatpush1.msra.mxu0 %v416
        %780 = vmatprep.subr.mxu0 %v413
        %781 = vmatpush1.msra.mxu0 %v412
        %782 = vmatprep.subr.mxu0 %v409
        %783 = vmatpush1.msra.mxu0 %v408
        %784 = vmatprep.subr.mxu0 %v405
        %785 = vmatpush1.msra.mxu0 %v404
        %786 = vmatprep.subr.mxu0 %v401
        %787 = vmatpush1.msra.mxu0 %v400
        %788 = vmatprep.subr.mxu0 %v397
        %789 = vmatpush1.msra.mxu0 %v396
        %790 = vmatprep.subr.mxu0 %v393
        %791 = vmatpush1.msra.mxu0 %v392
        %792 = vmatprep.subr.mxu0 %v389
        %793 = vmatpush1.msra.mxu0 %v388
        %794 = vmatprep.subr.mxu0 %v385
        %795 = vmatpush1.msra.mxu0 %v384
        %796 = vmatprep.subr.mxu0 %v381
        %797 = vmatpush1.msra.mxu0 %v380
        %798 = vmatprep.subr.mxu0 %v377
        %799 = vmatpush1.msra.mxu0 %v376
        %800 = vmatprep.subr.mxu0 %v373
        %801 = vmatpush1.msra.mxu0 %v372
        %802 = vmatprep.subr.mxu0 %v369
        %803 = vmatpush1.msra.mxu0 %v368
        %804 = vmatprep.subr.mxu0 %v365
        %805 = vmatpush1.msra.mxu0 %v364
        %806 = vmatprep.subr.mxu0 %v361
        %807 = vmatpush1.msra.mxu0 %v360
        %808 = vmatprep.subr.mxu0 0.0
        %809 = vmatpush2.msra.mxu0 0.0
        %810 = vmatprep.subr.mxu0 0.0
        %811 = vmatpush2.msra.mxu0 0.0
        %812 = vmatprep.subr.mxu0 0.0
        %813 = vmatpush2.msra.mxu0 0.0
        %814 = vmatprep.subr.mxu0 0.0
        %815 = vmatpush2.msra.mxu0 0.0
        %816 = vmatprep.subr.mxu0 0.0
        %817 = vmatpush2.msra.mxu0 0.0
        %818 = vmatprep.subr.mxu0 0.0
        %819 = vmatpush2.msra.mxu0 0.0
        %820 = vmatprep.subr.mxu0 0.0
        %821 = vmatpush2.msra.mxu0 0.0
        %822 = vmatprep.subr.mxu0 0.0
        %823 = vmatpush2.msra.mxu0 0.0
        %824 = vmatprep.subr.mxu0 0.0
        %825 = vmatpush2.msra.mxu0 0.0
        %826 = vmatprep.subr.mxu0 0.0
        %827 = vmatpush2.msra.mxu0 0.0
        %828 = vmatprep.subr.mxu0 0.0
        %829 = vmatpush2.msra.mxu0 0.0
        %830 = vmatprep.subr.mxu0 0.0
        %831 = vmatpush2.msra.mxu0 0.0
        %832 = vmatprep.subr.mxu0 0.0
        %833 = vmatpush2.msra.mxu0 0.0
        %834 = vmatprep.subr.mxu0 0.0
        %835 = vmatpush2.msra.mxu0 0.0
        %836 = vmatprep.subr.mxu0 0.0
        %837 = vmatpush2.msra.mxu0 0.0
        %838 = vmatprep.subr.mxu0 0.0
        %839 = vmatpush2.msra.mxu0 0.0
        %840 = vmatprep.mubr.f32.mxu0 0.0
        %841 = vmatmul.mubr.f32.gmra.mxu0 %v772
        %v842 = vpop.f32.mrf.mxu0
        %v843 = vadd.f32 0.0, %v842
        %v844 = vpop.f32.mrf.mxu0
        %v845 = vadd.f32 0.0, %v844
        %846 = vdwg.mxu0
        %847 = vmatprep.subr.mxu0 %v423
        %848 = vmatpush1.msra.mxu0 %v422
        %849 = vmatprep.subr.mxu0 %v419
        %850 = vmatpush1.msra.mxu0 %v418
        %851 = vmatprep.subr.mxu0 %v415
        %852 = vmatpush1.msra.mxu0 %v414
        %853 = vmatprep.subr.mxu0 %v411
        %854 = vmatpush1.msra.mxu0 %v410
        %855 = vmatprep.subr.mxu0 %v407
        %856 = vmatpush1.msra.mxu0 %v406
        %857 = vmatprep.subr.mxu0 %v403
        %858 = vmatpush1.msra.mxu0 %v402
        %859 = vmatprep.subr.mxu0 %v399
        %860 = vmatpush1.msra.mxu0 %v398
        %861 = vmatprep.subr.mxu0 %v395
        %862 = vmatpush1.msra.mxu0 %v394
        %863 = vmatprep.subr.mxu0 %v391
        %864 = vmatpush1.msra.mxu0 %v390
        %865 = vmatprep.subr.mxu0 %v387
        %866 = vmatpush1.msra.mxu0 %v386
        %867 = vmatprep.subr.mxu0 %v383
        %868 = vmatpush1.msra.mxu0 %v382
        %869 = vmatprep.subr.mxu0 %v379
        %870 = vmatpush1.msra.mxu0 %v378
        %871 = vmatprep.subr.mxu0 %v375
        %872 = vmatpush1.msra.mxu0 %v374
        %873 = vmatprep.subr.mxu0 %v371
        %874 = vmatpush1.msra.mxu0 %v370
        %875 = vmatprep.subr.mxu0 %v367
        %876 = vmatpush1.msra.mxu0 %v366
        %877 = vmatprep.subr.mxu0 %v363
        %878 = vmatpush1.msra.mxu0 %v362
        %879 = vmatprep.subr.mxu0 0.0
        %880 = vmatpush2.msra.mxu0 0.0
        %881 = vmatprep.subr.mxu0 0.0
        %882 = vmatpush2.msra.mxu0 0.0
        %883 = vmatprep.subr.mxu0 0.0
        %884 = vmatpush2.msra.mxu0 0.0
        %885 = vmatprep.subr.mxu0 0.0
        %886 = vmatpush2.msra.mxu0 0.0
        %887 = vmatprep.subr.mxu0 0.0
        %888 = vmatpush2.msra.mxu0 0.0
        %889 = vmatprep.subr.mxu0 0.0
        %890 = vmatpush2.msra.mxu0 0.0
        %891 = vmatprep.subr.mxu0 0.0
        %892 = vmatpush2.msra.mxu0 0.0
        %893 = vmatprep.subr.mxu0 0.0
        %894 = vmatpush2.msra.mxu0 0.0
        %895 = vmatprep.subr.mxu0 0.0
        %896 = vmatpush2.msra.mxu0 0.0
        %897 = vmatprep.subr.mxu0 0.0
        %898 = vmatpush2.msra.mxu0 0.0
        %899 = vmatprep.subr.mxu0 0.0
        %900 = vmatpush2.msra.mxu0 0.0
        %901 = vmatprep.subr.mxu0 0.0
        %902 = vmatpush2.msra.mxu0 0.0
        %903 = vmatprep.subr.mxu0 0.0
        %904 = vmatpush2.msra.mxu0 0.0
        %905 = vmatprep.subr.mxu0 0.0
        %906 = vmatpush2.msra.mxu0 0.0
        %907 = vmatprep.subr.mxu0 0.0
        %908 = vmatpush2.msra.mxu0 0.0
        %909 = vmatprep.subr.mxu0 0.0
        %910 = vmatpush2.msra.mxu0 0.0
        %911 = vmatprep.mubr.f32.mxu0 0.0
        %912 = vmatmul.mubr.f32.gmra.mxu0 %v772
        %v913 = vpop.f32.mrf.mxu0
        %v914 = vadd.f32 0.0, %v913
        %v915 = vpop.f32.mrf.mxu0
        %v916 = vadd.f32 0.0, %v915
        %917 = vdwg.mxu0
        %v918 = vrot.slane %v843, 4
        %v919 = vadd.f32 %v843, %v918
        %v920 = vrot.slane %v919, 2
        %v921 = vadd.f32 %v919, %v920
        %v922 = vrot.slane %v921, 1
        %v923 = vadd.f32 %v921, %v922
        %v924 = vrot.slane %v845, 4
        %v925 = vadd.f32 %v845, %v924
        %v926 = vrot.slane %v925, 2
        %v927 = vadd.f32 %v925, %v926
        %v928 = vrot.slane %v927, 1
        %v929 = vadd.f32 %v927, %v928
        %v930 = vrot.slane %v914, 4
        %v931 = vadd.f32 %v914, %v930
        %v932 = vrot.slane %v931, 2
        %v933 = vadd.f32 %v931, %v932
        %v934 = vrot.slane %v933, 1
        %v935 = vadd.f32 %v933, %v934
        %v936 = vrot.slane %v916, 4
        %v937 = vadd.f32 %v916, %v936
        %v938 = vrot.slane %v937, 2
        %v939 = vadd.f32 %v937, %v938
        %v940 = vrot.slane %v939, 1
        %v941 = vadd.f32 %v939, %v940
        %v942 = vmul.f32 %v923, %v595
        %v943 = vmul.f32 %v929, %v595
        %v944 = vmul.f32 %v935, %v595
        %v945 = vmul.f32 %v941, %v595
        %v946 = vmul.f32 %v843, %v843
        %v947 = vmul.f32 %v845, %v845
        %v948 = vmul.f32 %v914, %v914
        %v949 = vmul.f32 %v916, %v916
        %v950 = vrot.slane %v946, 4
        %v951 = vadd.f32 %v946, %v950
        %v952 = vrot.slane %v951, 2
        %v953 = vadd.f32 %v951, %v952
        %v954 = vrot.slane %v953, 1
        %v955 = vadd.f32 %v953, %v954
        %v956 = vrot.slane %v947, 4
        %v957 = vadd.f32 %v947, %v956
        %v958 = vrot.slane %v957, 2
        %v959 = vadd.f32 %v957, %v958
        %v960 = vrot.slane %v959, 1
        %v961 = vadd.f32 %v959, %v960
        %v962 = vrot.slane %v948, 4
        %v963 = vadd.f32 %v948, %v962
        %v964 = vrot.slane %v963, 2
        %v965 = vadd.f32 %v963, %v964
        %v966 = vrot.slane %v965, 1
        %v967 = vadd.f32 %v965, %v966
        %v968 = vrot.slane %v949, 4
        %v969 = vadd.f32 %v949, %v968
        %v970 = vrot.slane %v969, 2
        %v971 = vadd.f32 %v969, %v970
        %v972 = vrot.slane %v971, 1
        %v973 = vadd.f32 %v971, %v972
        %v974 = vmul.f32 %v955, %v595
        %v975 = vmul.f32 %v961, %v595
        %v976 = vmul.f32 %v967, %v595
        %v977 = vmul.f32 %v973, %v595
        %v978 = vmul.f32 %v942, %v942
        %v979 = vmul.f32 %v943, %v943
        %v980 = vmul.f32 %v944, %v944
        %v981 = vmul.f32 %v945, %v945
        %v982 = vsub.f32 %v974, %v978
        %v983 = vsub.f32 %v975, %v979
        %v984 = vsub.f32 %v976, %v980
        %v985 = vsub.f32 %v977, %v981
        %v986 = vmax.f32 %v982, 0.0
        %v987 = vmax.f32 %v983, 0.0
        %v988 = vmax.f32 %v984, 0.0
        %v989 = vmax.f32 %v985, 0.0
        %v990 = vsub.f32 %v843, %v942
        %v991 = vsub.f32 %v845, %v943
        %v992 = vsub.f32 %v914, %v944
        %v993 = vsub.f32 %v916, %v945
        %v994 = vadd.f32 %v986, 0.001
        %v995 = vadd.f32 %v987, 0.001
        %v996 = vadd.f32 %v988, 0.001
        %v997 = vadd.f32 %v989, 0.001
        %v998 = vrsqrt.pop %v994
        %v999 = vrsqrt.pop %v995
        %v1000 = vrsqrt.pop %v996
        %v1001 = vrsqrt.pop %v997
        %v1006 = vcombine.low %v998, %v999
        %v1007 = vcombine.low %v1000, %v1001
        %v1009 = vunpack.c.l.s4 1966171168
        %v1010 = vunpack.c.0.s8 %v1009
        %v1011 = vlaneseq
        %v1012 = vshrl.u32 %v1011, 7
        %v1013 = vsub.s32 %v1010, %v1012
        %v1014 = vrot.slane %v1006, %v1013
        %v1016 = vunpack.c.l.s4 1966171168
        %v1017 = vunpack.c.0.s8 %v1016
        %v1018 = vlaneseq
        %v1019 = vshrl.u32 %v1018, 7
        %v1020 = vsub.s32 %v1017, %v1019
        %v1021 = vrot.slane %v1007, %v1020
        %v1022 = vcombine.low %v1014, %v1021
        %v1024 = vunpack.c.l.s4 1966171168
        %v1025 = vunpack.c.0.s8 %v1024
        %v1026 = vlaneseq
        %v1027 = vshrl.u32 %v1026, 7
        %v1028 = vsub.s32 %v1025, %v1027
        %v1029 = vrot.slane %v1022, %v1028
        %v1031 = vmul.f32 %v424, %v1029
        %v1033 = vlaneseq
        %v1034 = vshrl.u32 %v1033, 7
        %v1035 = vsub.s32 0, %v1034
        %v1036 = vrot.slane %v1031, %v1035
        %v1037 = vlaneseq
        %v1038 = vshrl.u32 %v1037, 7
        %v1039 = vsub.s32 1, %v1038
        %v1040 = vrot.slane %v1031, %v1039
        %v1041 = vlaneseq
        %v1042 = vshrl.u32 %v1041, 7
        %v1043 = vsub.s32 2, %v1042
        %v1044 = vrot.slane %v1031, %v1043
        %v1045 = vlaneseq
        %v1046 = vshrl.u32 %v1045, 7
        %v1047 = vsub.s32 3, %v1046
        %v1048 = vrot.slane %v1031, %v1047
        %v1053 = vmul.f32 %v990, %v1036
        %v1054 = vmul.f32 %v991, %v1040
        %v1055 = vmul.f32 %v992, %v1044
        %v1056 = vmul.f32 %v993, %v1048
        %s1057 = scalar_lea.vmem %s303, 32 [#allocation4]
        %v1058 = vld [vmem:[%s1057] sm:$0xff]
        %v1059 = vld [vmem:[%s1057 + $0x8] sm:$0xff]
        %v1060 = vld [vmem:[%s1057 + $0x10] sm:$0xff]
        %v1061 = vld [vmem:[%s1057 + $0x18] sm:$0xff]
        %v1062 = vadd.f32 %v1053, %v1058
        %v1063 = vadd.f32 %v1054, %v1059
        %v1064 = vadd.f32 %v1055, %v1060
        %v1065 = vadd.f32 %v1056, %v1061
        %v1066 = vmul.f32 %v1062, 0.5
        %v1067 = vtanh.pop %v1066
        %v1068 = vadd.f32 %v1067, 1.0
        %v1069 = vmul.f32 %v1068, 0.5
        %v1070 = vmul.f32 %v1069, %v730
        %v1071 = vmul.f32 %v1063, 0.5
        %v1072 = vtanh.pop %v1071
        %v1073 = vadd.f32 %v1072, 1.0
        %v1074 = vmul.f32 %v1073, 0.5
        %v1075 = vtanh.pop %v1065
        %v1076 = vmul.f32 %v1074, %v1075
        %v1077 = vadd.f32 %v1070, %v1076
        %v1078 = vrot.slane %v1077, 4
        %v1079 = vadd.f32 %v1077, %v1078
        %v1080 = vrot.slane %v1079, 2
        %v1081 = vadd.f32 %v1079, %v1080
        %v1082 = vrot.slane %v1081, 1
        %v1083 = vadd.f32 %v1081, %v1082
        %v1084 = vmul.f32 %v1083, %v595
        %v1085 = vmul.f32 %v1077, %v1077
        %v1086 = vrot.slane %v1085, 4
        %v1087 = vadd.f32 %v1085, %v1086
        %v1088 = vrot.slane %v1087, 2
        %v1089 = vadd.f32 %v1087, %v1088
        %v1090 = vrot.slane %v1089, 1
        %v1091 = vadd.f32 %v1089, %v1090
        %v1092 = vmul.f32 %v1091, %v595
        %v1093 = vmul.f32 %v1084, %v1084
        %v1094 = vsub.f32 %v1092, %v1093
        %v1095 = vmax.f32 %v1094, 0.0
        %v1096 = vsub.f32 %v1077, %v1084
        %v1097 = vadd.f32 %v1095, 0.001
        %v1098 = vrsqrt.pop %v1097
        %v1099 = vmul.f32 %v425, %v1098
        %v1101 = vlaneseq
        %v1102 = vshrl.u32 %v1101, 7
        %v1103 = vsub.s32 0, %v1102
        %v1104 = vrot.slane %v1099, %v1103
        %v1106 = vmul.f32 %v1096, %v1104
        %v1107 = vadd.f32 %v1106, %v764
        %v1108 = vmul.f32 %v1064, 0.5
        %v1109 = vtanh.pop %v1108
        %v1110 = vadd.f32 %v1109, 1.0
        %v1111 = vmul.f32 %v1110, 0.5
        %v1112 = vtanh.pop %v1107
        %v1113 = vmul.f32 %v1111, %v1112
        %s1114 = scalar_lea.vmem %s349, 16 [#allocation13]
        %1115 = vst [vmem:[%s1114] sm:$0xff] %v1113
        %s1116 = scalar_lea.vmem %s349, 24 [#allocation13]
        %1117 = vst [vmem:[%s1116] sm:$0xff] %v1077
        %1118 = vmatprep.subr.mxu0 %v421
        %1119 = vmatpush1.msra.mxu0 %v420
        %1120 = vmatprep.subr.mxu0 %v417
        %1121 = vmatpush1.msra.mxu0 %v416
        %1122 = vmatprep.subr.mxu0 %v413
        %1123 = vmatpush1.msra.mxu0 %v412
        %1124 = vmatprep.subr.mxu0 %v409
        %1125 = vmatpush1.msra.mxu0 %v408
        %1126 = vmatprep.subr.mxu0 %v405
        %1127 = vmatpush1.msra.mxu0 %v404
        %1128 = vmatprep.subr.mxu0 %v401
        %1129 = vmatpush1.msra.mxu0 %v400
        %1130 = vmatprep.subr.mxu0 %v397
        %1131 = vmatpush1.msra.mxu0 %v396
        %1132 = vmatprep.subr.mxu0 %v393
        %1133 = vmatpush1.msra.mxu0 %v392
        %1134 = vmatprep.subr.mxu0 %v389
        %1135 = vmatpush1.msra.mxu0 %v388
        %1136 = vmatprep.subr.mxu0 %v385
        %1137 = vmatpush1.msra.mxu0 %v384
        %1138 = vmatprep.subr.mxu0 %v381
        %1139 = vmatpush1.msra.mxu0 %v380
        %1140 = vmatprep.subr.mxu0 %v377
        %1141 = vmatpush1.msra.mxu0 %v376
        %1142 = vmatprep.subr.mxu0 %v373
        %1143 = vmatpush1.msra.mxu0 %v372
        %1144 = vmatprep.subr.mxu0 %v369
        %1145 = vmatpush1.msra.mxu0 %v368
        %1146 = vmatprep.subr.mxu0 %v365
        %1147 = vmatpush1.msra.mxu0 %v364
        %1148 = vmatprep.subr.mxu0 %v361
        %1149 = vmatpush1.msra.mxu0 %v360
        %1150 = vmatprep.subr.mxu0 0.0
        %1151 = vmatpush2.msra.mxu0 0.0
        %1152 = vmatprep.subr.mxu0 0.0
        %1153 = vmatpush2.msra.mxu0 0.0
        %1154 = vmatprep.subr.mxu0 0.0
        %1155 = vmatpush2.msra.mxu0 0.0
        %1156 = vmatprep.subr.mxu0 0.0
        %1157 = vmatpush2.msra.mxu0 0.0
        %1158 = vmatprep.subr.mxu0 0.0
        %1159 = vmatpush2.msra.mxu0 0.0
        %1160 = vmatprep.subr.mxu0 0.0
        %1161 = vmatpush2.msra.mxu0 0.0
        %1162 = vmatprep.subr.mxu0 0.0
        %1163 = vmatpush2.msra.mxu0 0.0
        %1164 = vmatprep.subr.mxu0 0.0
        %1165 = vmatpush2.msra.mxu0 0.0
        %1166 = vmatprep.subr.mxu0 0.0
        %1167 = vmatpush2.msra.mxu0 0.0
        %1168 = vmatprep.subr.mxu0 0.0
        %1169 = vmatpush2.msra.mxu0 0.0
        %1170 = vmatprep.subr.mxu0 0.0
        %1171 = vmatpush2.msra.mxu0 0.0
        %1172 = vmatprep.subr.mxu0 0.0
        %1173 = vmatpush2.msra.mxu0 0.0
        %1174 = vmatprep.subr.mxu0 0.0
        %1175 = vmatpush2.msra.mxu0 0.0
        %1176 = vmatprep.subr.mxu0 0.0
        %1177 = vmatpush2.msra.mxu0 0.0
        %1178 = vmatprep.subr.mxu0 0.0
        %1179 = vmatpush2.msra.mxu0 0.0
        %1180 = vmatprep.subr.mxu0 0.0
        %1181 = vmatpush2.msra.mxu0 0.0
        %1182 = vmatprep.mubr.f32.mxu0 0.0
        %1183 = vmatmul.mubr.f32.gmra.mxu0 %v1113
        %v1184 = vpop.f32.mrf.mxu0
        %v1185 = vadd.f32 0.0, %v1184
        %v1186 = vpop.f32.mrf.mxu0
        %v1187 = vadd.f32 0.0, %v1186
        %1188 = vdwg.mxu0
        %1189 = vmatprep.subr.mxu0 %v423
        %1190 = vmatpush1.msra.mxu0 %v422
        %1191 = vmatprep.subr.mxu0 %v419
        %1192 = vmatpush1.msra.mxu0 %v418
        %1193 = vmatprep.subr.mxu0 %v415
        %1194 = vmatpush1.msra.mxu0 %v414
        %1195 = vmatprep.subr.mxu0 %v411
        %1196 = vmatpush1.msra.mxu0 %v410
        %1197 = vmatprep.subr.mxu0 %v407
        %1198 = vmatpush1.msra.mxu0 %v406
        %1199 = vmatprep.subr.mxu0 %v403
        %1200 = vmatpush1.msra.mxu0 %v402
        %1201 = vmatprep.subr.mxu0 %v399
        %1202 = vmatpush1.msra.mxu0 %v398
        %1203 = vmatprep.subr.mxu0 %v395
        %1204 = vmatpush1.msra.mxu0 %v394
        %1205 = vmatprep.subr.mxu0 %v391
        %1206 = vmatpush1.msra.mxu0 %v390
        %1207 = vmatprep.subr.mxu0 %v387
        %1208 = vmatpush1.msra.mxu0 %v386
        %1209 = vmatprep.subr.mxu0 %v383
        %1210 = vmatpush1.msra.mxu0 %v382
        %1211 = vmatprep.subr.mxu0 %v379
        %1212 = vmatpush1.msra.mxu0 %v378
        %1213 = vmatprep.subr.mxu0 %v375
        %1214 = vmatpush1.msra.mxu0 %v374
        %1215 = vmatprep.subr.mxu0 %v371
        %1216 = vmatpush1.msra.mxu0 %v370
        %1217 = vmatprep.subr.mxu0 %v367
        %1218 = vmatpush1.msra.mxu0 %v366
        %1219 = vmatprep.subr.mxu0 %v363
        %1220 = vmatpush1.msra.mxu0 %v362
        %1221 = vmatprep.subr.mxu0 0.0
        %1222 = vmatpush2.msra.mxu0 0.0
        %1223 = vmatprep.subr.mxu0 0.0
        %1224 = vmatpush2.msra.mxu0 0.0
        %1225 = vmatprep.subr.mxu0 0.0
        %1226 = vmatpush2.msra.mxu0 0.0
        %1227 = vmatprep.subr.mxu0 0.0
        %1228 = vmatpush2.msra.mxu0 0.0
        %1229 = vmatprep.subr.mxu0 0.0
        %1230 = vmatpush2.msra.mxu0 0.0
        %1231 = vmatprep.subr.mxu0 0.0
        %1232 = vmatpush2.msra.mxu0 0.0
        %1233 = vmatprep.subr.mxu0 0.0
        %1234 = vmatpush2.msra.mxu0 0.0
        %1235 = vmatprep.subr.mxu0 0.0
        %1236 = vmatpush2.msra.mxu0 0.0
        %1237 = vmatprep.subr.mxu0 0.0
        %1238 = vmatpush2.msra.mxu0 0.0
        %1239 = vmatprep.subr.mxu0 0.0
        %1240 = vmatpush2.msra.mxu0 0.0
        %1241 = vmatprep.subr.mxu0 0.0
        %1242 = vmatpush2.msra.mxu0 0.0
        %1243 = vmatprep.subr.mxu0 0.0
        %1244 = vmatpush2.msra.mxu0 0.0
        %1245 = vmatprep.subr.mxu0 0.0
        %1246 = vmatpush2.msra.mxu0 0.0
        %1247 = vmatprep.subr.mxu0 0.0
        %1248 = vmatpush2.msra.mxu0 0.0
        %1249 = vmatprep.subr.mxu0 0.0
        %1250 = vmatpush2.msra.mxu0 0.0
        %1251 = vmatprep.subr.mxu0 0.0
        %1252 = vmatpush2.msra.mxu0 0.0
        %1253 = vmatprep.mubr.f32.mxu0 0.0
        %1254 = vmatmul.mubr.f32.gmra.mxu0 %v1113
        %v1255 = vpop.f32.mrf.mxu0
        %v1256 = vadd.f32 0.0, %v1255
        %v1257 = vpop.f32.mrf.mxu0
        %v1258 = vadd.f32 0.0, %v1257
        %1259 = vdwg.mxu0
        %v1260 = vrot.slane %v1185, 4
        %v1261 = vadd.f32 %v1185, %v1260
        %v1262 = vrot.slane %v1261, 2
        %v1263 = vadd.f32 %v1261, %v1262
        %v1264 = vrot.slane %v1263, 1
        %v1265 = vadd.f32 %v1263, %v1264
        %v1266 = vrot.slane %v1187, 4
        %v1267 = vadd.f32 %v1187, %v1266
        %v1268 = vrot.slane %v1267, 2
        %v1269 = vadd.f32 %v1267, %v1268
        %v1270 = vrot.slane %v1269, 1
        %v1271 = vadd.f32 %v1269, %v1270
        %v1272 = vrot.slane %v1256, 4
        %v1273 = vadd.f32 %v1256, %v1272
        %v1274 = vrot.slane %v1273, 2
        %v1275 = vadd.f32 %v1273, %v1274
        %v1276 = vrot.slane %v1275, 1
        %v1277 = vadd.f32 %v1275, %v1276
        %v1278 = vrot.slane %v1258, 4
        %v1279 = vadd.f32 %v1258, %v1278
        %v1280 = vrot.slane %v1279, 2
        %v1281 = vadd.f32 %v1279, %v1280
        %v1282 = vrot.slane %v1281, 1
        %v1283 = vadd.f32 %v1281, %v1282
        %v1284 = vmul.f32 %v1265, %v595
        %v1285 = vmul.f32 %v1271, %v595
        %v1286 = vmul.f32 %v1277, %v595
        %v1287 = vmul.f32 %v1283, %v595
        %v1288 = vmul.f32 %v1185, %v1185
        %v1289 = vmul.f32 %v1187, %v1187
        %v1290 = vmul.f32 %v1256, %v1256
        %v1291 = vmul.f32 %v1258, %v1258
        %v1292 = vrot.slane %v1288, 4
        %v1293 = vadd.f32 %v1288, %v1292
        %v1294 = vrot.slane %v1293, 2
        %v1295 = vadd.f32 %v1293, %v1294
        %v1296 = vrot.slane %v1295, 1
        %v1297 = vadd.f32 %v1295, %v1296
        %v1298 = vrot.slane %v1289, 4
        %v1299 = vadd.f32 %v1289, %v1298
        %v1300 = vrot.slane %v1299, 2
        %v1301 = vadd.f32 %v1299, %v1300
        %v1302 = vrot.slane %v1301, 1
        %v1303 = vadd.f32 %v1301, %v1302
        %v1304 = vrot.slane %v1290, 4
        %v1305 = vadd.f32 %v1290, %v1304
        %v1306 = vrot.slane %v1305, 2
        %v1307 = vadd.f32 %v1305, %v1306
        %v1308 = vrot.slane %v1307, 1
        %v1309 = vadd.f32 %v1307, %v1308
        %v1310 = vrot.slane %v1291, 4
        %v1311 = vadd.f32 %v1291, %v1310
        %v1312 = vrot.slane %v1311, 2
        %v1313 = vadd.f32 %v1311, %v1312
        %v1314 = vrot.slane %v1313, 1
        %v1315 = vadd.f32 %v1313, %v1314
        %v1316 = vmul.f32 %v1297, %v595
        %v1317 = vmul.f32 %v1303, %v595
        %v1318 = vmul.f32 %v1309, %v595
        %v1319 = vmul.f32 %v1315, %v595
        %v1320 = vmul.f32 %v1284, %v1284
        %v1321 = vmul.f32 %v1285, %v1285
        %v1322 = vmul.f32 %v1286, %v1286
        %v1323 = vmul.f32 %v1287, %v1287
        %v1324 = vsub.f32 %v1316, %v1320
        %v1325 = vsub.f32 %v1317, %v1321
        %v1326 = vsub.f32 %v1318, %v1322
        %v1327 = vsub.f32 %v1319, %v1323
        %v1328 = vmax.f32 %v1324, 0.0
        %v1329 = vmax.f32 %v1325, 0.0
        %v1330 = vmax.f32 %v1326, 0.0
        %v1331 = vmax.f32 %v1327, 0.0
        %v1332 = vsub.f32 %v1185, %v1284
        %v1333 = vsub.f32 %v1187, %v1285
        %v1334 = vsub.f32 %v1256, %v1286
        %v1335 = vsub.f32 %v1258, %v1287
        %v1336 = vadd.f32 %v1328, 0.001
        %v1337 = vadd.f32 %v1329, 0.001
        %v1338 = vadd.f32 %v1330, 0.001
        %v1339 = vadd.f32 %v1331, 0.001
        %v1340 = vrsqrt.pop %v1336
        %v1341 = vrsqrt.pop %v1337
        %v1342 = vrsqrt.pop %v1338
        %v1343 = vrsqrt.pop %v1339
        %v1348 = vcombine.low %v1340, %v1341
        %v1349 = vcombine.low %v1342, %v1343
        %v1351 = vunpack.c.l.s4 1966171168
        %v1352 = vunpack.c.0.s8 %v1351
        %v1353 = vlaneseq
        %v1354 = vshrl.u32 %v1353, 7
        %v1355 = vsub.s32 %v1352, %v1354
        %v1356 = vrot.slane %v1348, %v1355
        %v1358 = vunpack.c.l.s4 1966171168
        %v1359 = vunpack.c.0.s8 %v1358
        %v1360 = vlaneseq
        %v1361 = vshrl.u32 %v1360, 7
        %v1362 = vsub.s32 %v1359, %v1361
        %v1363 = vrot.slane %v1349, %v1362
        %v1364 = vcombine.low %v1356, %v1363
        %v1366 = vunpack.c.l.s4 1966171168
        %v1367 = vunpack.c.0.s8 %v1366
        %v1368 = vlaneseq
        %v1369 = vshrl.u32 %v1368, 7
        %v1370 = vsub.s32 %v1367, %v1369
        %v1371 = vrot.slane %v1364, %v1370
        %v1373 = vmul.f32 %v424, %v1371
        %v1375 = vlaneseq
        %v1376 = vshrl.u32 %v1375, 7
        %v1377 = vsub.s32 0, %v1376
        %v1378 = vrot.slane %v1373, %v1377
        %v1379 = vlaneseq
        %v1380 = vshrl.u32 %v1379, 7
        %v1381 = vsub.s32 1, %v1380
        %v1382 = vrot.slane %v1373, %v1381
        %v1383 = vlaneseq
        %v1384 = vshrl.u32 %v1383, 7
        %v1385 = vsub.s32 2, %v1384
        %v1386 = vrot.slane %v1373, %v1385
        %v1387 = vlaneseq
        %v1388 = vshrl.u32 %v1387, 7
        %v1389 = vsub.s32 3, %v1388
        %v1390 = vrot.slane %v1373, %v1389
        %v1395 = vmul.f32 %v1332, %v1378
        %v1396 = vmul.f32 %v1333, %v1382
        %v1397 = vmul.f32 %v1334, %v1386
        %v1398 = vmul.f32 %v1335, %v1390
        %s1399 = scalar_lea.vmem %s303, 64 [#allocation4]
        %v1400 = vld [vmem:[%s1399] sm:$0xff]
        %v1401 = vld [vmem:[%s1399 + $0x8] sm:$0xff]
        %v1402 = vld [vmem:[%s1399 + $0x10] sm:$0xff]
        %v1403 = vld [vmem:[%s1399 + $0x18] sm:$0xff]
        %v1404 = vadd.f32 %v1395, %v1400
        %v1405 = vadd.f32 %v1396, %v1401
        %v1406 = vadd.f32 %v1397, %v1402
        %v1407 = vadd.f32 %v1398, %v1403
        %v1408 = vmul.f32 %v1404, 0.5
        %v1409 = vtanh.pop %v1408
        %v1410 = vadd.f32 %v1409, 1.0
        %v1411 = vmul.f32 %v1410, 0.5
        %v1412 = vmul.f32 %v1411, %v1077
        %v1413 = vmul.f32 %v1405, 0.5
        %v1414 = vtanh.pop %v1413
        %v1415 = vadd.f32 %v1414, 1.0
        %v1416 = vmul.f32 %v1415, 0.5
        %v1417 = vtanh.pop %v1407
        %v1418 = vmul.f32 %v1416, %v1417
        %v1419 = vadd.f32 %v1412, %v1418
        %v1420 = vrot.slane %v1419, 4
        %v1421 = vadd.f32 %v1419, %v1420
        %v1422 = vrot.slane %v1421, 2
        %v1423 = vadd.f32 %v1421, %v1422
        %v1424 = vrot.slane %v1423, 1
        %v1425 = vadd.f32 %v1423, %v1424
        %v1426 = vmul.f32 %v1425, %v595
        %v1427 = vmul.f32 %v1419, %v1419
        %v1428 = vrot.slane %v1427, 4
        %v1429 = vadd.f32 %v1427, %v1428
        %v1430 = vrot.slane %v1429, 2
        %v1431 = vadd.f32 %v1429, %v1430
        %v1432 = vrot.slane %v1431, 1
        %v1433 = vadd.f32 %v1431, %v1432
        %v1434 = vmul.f32 %v1433, %v595
        %v1435 = vmul.f32 %v1426, %v1426
        %v1436 = vsub.f32 %v1434, %v1435
        %v1437 = vmax.f32 %v1436, 0.0
        %v1438 = vsub.f32 %v1419, %v1426
        %v1439 = vadd.f32 %v1437, 0.001
        %v1440 = vrsqrt.pop %v1439
        %v1441 = vmul.f32 %v425, %v1440
        %v1443 = vlaneseq
        %v1444 = vshrl.u32 %v1443, 7
        %v1445 = vsub.s32 0, %v1444
        %v1446 = vrot.slane %v1441, %v1445
        %v1448 = vmul.f32 %v1438, %v1446
        %v1449 = vadd.f32 %v1448, %v764
        %v1450 = vmul.f32 %v1406, 0.5
        %v1451 = vtanh.pop %v1450
        %v1452 = vadd.f32 %v1451, 1.0
        %v1453 = vmul.f32 %v1452, 0.5
        %v1454 = vtanh.pop %v1449
        %v1455 = vmul.f32 %v1453, %v1454
        %s1456 = scalar_lea.vmem %s349, 32 [#allocation13]
        %1457 = vst [vmem:[%s1456] sm:$0xff] %v1455
        %s1458 = scalar_lea.vmem %s349, 40 [#allocation13]
        %1459 = vst [vmem:[%s1458] sm:$0xff] %v1419
        %1460 = vmatprep.subr.mxu0 %v421
        %1461 = vmatpush1.msra.mxu0 %v420
        %1462 = vmatprep.subr.mxu0 %v417
        %1463 = vmatpush1.msra.mxu0 %v416
        %1464 = vmatprep.subr.mxu0 %v413
        %1465 = vmatpush1.msra.mxu0 %v412
        %1466 = vmatprep.subr.mxu0 %v409
        %1467 = vmatpush1.msra.mxu0 %v408
        %1468 = vmatprep.subr.mxu0 %v405
        %1469 = vmatpush1.msra.mxu0 %v404
        %1470 = vmatprep.subr.mxu0 %v401
        %1471 = vmatpush1.msra.mxu0 %v400
        %1472 = vmatprep.subr.mxu0 %v397
        %1473 = vmatpush1.msra.mxu0 %v396
        %1474 = vmatprep.subr.mxu0 %v393
        %1475 = vmatpush1.msra.mxu0 %v392
        %1476 = vmatprep.subr.mxu0 %v389
        %1477 = vmatpush1.msra.mxu0 %v388
        %1478 = vmatprep.subr.mxu0 %v385
        %1479 = vmatpush1.msra.mxu0 %v384
        %1480 = vmatprep.subr.mxu0 %v381
        %1481 = vmatpush1.msra.mxu0 %v380
        %1482 = vmatprep.subr.mxu0 %v377
        %1483 = vmatpush1.msra.mxu0 %v376
        %1484 = vmatprep.subr.mxu0 %v373
        %1485 = vmatpush1.msra.mxu0 %v372
        %1486 = vmatprep.subr.mxu0 %v369
        %1487 = vmatpush1.msra.mxu0 %v368
        %1488 = vmatprep.subr.mxu0 %v365
        %1489 = vmatpush1.msra.mxu0 %v364
        %1490 = vmatprep.subr.mxu0 %v361
        %1491 = vmatpush1.msra.mxu0 %v360
        %1492 = vmatprep.subr.mxu0 0.0
        %1493 = vmatpush2.msra.mxu0 0.0
        %1494 = vmatprep.subr.mxu0 0.0
        %1495 = vmatpush2.msra.mxu0 0.0
        %1496 = vmatprep.subr.mxu0 0.0
        %1497 = vmatpush2.msra.mxu0 0.0
        %1498 = vmatprep.subr.mxu0 0.0
        %1499 = vmatpush2.msra.mxu0 0.0
        %1500 = vmatprep.subr.mxu0 0.0
        %1501 = vmatpush2.msra.mxu0 0.0
        %1502 = vmatprep.subr.mxu0 0.0
        %1503 = vmatpush2.msra.mxu0 0.0
        %1504 = vmatprep.subr.mxu0 0.0
        %1505 = vmatpush2.msra.mxu0 0.0
        %1506 = vmatprep.subr.mxu0 0.0
        %1507 = vmatpush2.msra.mxu0 0.0
        %1508 = vmatprep.subr.mxu0 0.0
        %1509 = vmatpush2.msra.mxu0 0.0
        %1510 = vmatprep.subr.mxu0 0.0
        %1511 = vmatpush2.msra.mxu0 0.0
        %1512 = vmatprep.subr.mxu0 0.0
        %1513 = vmatpush2.msra.mxu0 0.0
        %1514 = vmatprep.subr.mxu0 0.0
        %1515 = vmatpush2.msra.mxu0 0.0
        %1516 = vmatprep.subr.mxu0 0.0
        %1517 = vmatpush2.msra.mxu0 0.0
        %1518 = vmatprep.subr.mxu0 0.0
        %1519 = vmatpush2.msra.mxu0 0.0
        %1520 = vmatprep.subr.mxu0 0.0
        %1521 = vmatpush2.msra.mxu0 0.0
        %1522 = vmatprep.subr.mxu0 0.0
        %1523 = vmatpush2.msra.mxu0 0.0
        %1524 = vmatprep.mubr.f32.mxu0 0.0
        %1525 = vmatmul.mubr.f32.gmra.mxu0 %v1455
        %v1526 = vpop.f32.mrf.mxu0
        %v1527 = vadd.f32 0.0, %v1526
        %v1528 = vpop.f32.mrf.mxu0
        %v1529 = vadd.f32 0.0, %v1528
        %1530 = vdwg.mxu0
        %1531 = vmatprep.subr.mxu0 %v423
        %1532 = vmatpush1.msra.mxu0 %v422
        %1533 = vmatprep.subr.mxu0 %v419
        %1534 = vmatpush1.msra.mxu0 %v418
        %1535 = vmatprep.subr.mxu0 %v415
        %1536 = vmatpush1.msra.mxu0 %v414
        %1537 = vmatprep.subr.mxu0 %v411
        %1538 = vmatpush1.msra.mxu0 %v410
        %1539 = vmatprep.subr.mxu0 %v407
        %1540 = vmatpush1.msra.mxu0 %v406
        %1541 = vmatprep.subr.mxu0 %v403
        %1542 = vmatpush1.msra.mxu0 %v402
        %1543 = vmatprep.subr.mxu0 %v399
        %1544 = vmatpush1.msra.mxu0 %v398
        %1545 = vmatprep.subr.mxu0 %v395
        %1546 = vmatpush1.msra.mxu0 %v394
        %1547 = vmatprep.subr.mxu0 %v391
        %1548 = vmatpush1.msra.mxu0 %v390
        %1549 = vmatprep.subr.mxu0 %v387
        %1550 = vmatpush1.msra.mxu0 %v386
        %1551 = vmatprep.subr.mxu0 %v383
        %1552 = vmatpush1.msra.mxu0 %v382
        %1553 = vmatprep.subr.mxu0 %v379
        %1554 = vmatpush1.msra.mxu0 %v378
        %1555 = vmatprep.subr.mxu0 %v375
        %1556 = vmatpush1.msra.mxu0 %v374
        %1557 = vmatprep.subr.mxu0 %v371
        %1558 = vmatpush1.msra.mxu0 %v370
        %1559 = vmatprep.subr.mxu0 %v367
        %1560 = vmatpush1.msra.mxu0 %v366
        %1561 = vmatprep.subr.mxu0 %v363
        %1562 = vmatpush1.msra.mxu0 %v362
        %1563 = vmatprep.subr.mxu0 0.0
        %1564 = vmatpush2.msra.mxu0 0.0
        %1565 = vmatprep.subr.mxu0 0.0
        %1566 = vmatpush2.msra.mxu0 0.0
        %1567 = vmatprep.subr.mxu0 0.0
        %1568 = vmatpush2.msra.mxu0 0.0
        %1569 = vmatprep.subr.mxu0 0.0
        %1570 = vmatpush2.msra.mxu0 0.0
        %1571 = vmatprep.subr.mxu0 0.0
        %1572 = vmatpush2.msra.mxu0 0.0
        %1573 = vmatprep.subr.mxu0 0.0
        %1574 = vmatpush2.msra.mxu0 0.0
        %1575 = vmatprep.subr.mxu0 0.0
        %1576 = vmatpush2.msra.mxu0 0.0
        %1577 = vmatprep.subr.mxu0 0.0
        %1578 = vmatpush2.msra.mxu0 0.0
        %1579 = vmatprep.subr.mxu0 0.0
        %1580 = vmatpush2.msra.mxu0 0.0
        %1581 = vmatprep.subr.mxu0 0.0
        %1582 = vmatpush2.msra.mxu0 0.0
        %1583 = vmatprep.subr.mxu0 0.0
        %1584 = vmatpush2.msra.mxu0 0.0
        %1585 = vmatprep.subr.mxu0 0.0
        %1586 = vmatpush2.msra.mxu0 0.0
        %1587 = vmatprep.subr.mxu0 0.0
        %1588 = vmatpush2.msra.mxu0 0.0
        %1589 = vmatprep.subr.mxu0 0.0
        %1590 = vmatpush2.msra.mxu0 0.0
        %1591 = vmatprep.subr.mxu0 0.0
        %1592 = vmatpush2.msra.mxu0 0.0
        %1593 = vmatprep.subr.mxu0 0.0
        %1594 = vmatpush2.msra.mxu0 0.0
        %1595 = vmatprep.mubr.f32.mxu0 0.0
        %1596 = vmatmul.mubr.f32.gmra.mxu0 %v1455
        %v1597 = vpop.f32.mrf.mxu0
        %v1598 = vadd.f32 0.0, %v1597
        %v1599 = vpop.f32.mrf.mxu0
        %v1600 = vadd.f32 0.0, %v1599
        %1601 = vdwg.mxu0
        %v1602 = vrot.slane %v1527, 4
        %v1603 = vadd.f32 %v1527, %v1602
        %v1604 = vrot.slane %v1603, 2
        %v1605 = vadd.f32 %v1603, %v1604
        %v1606 = vrot.slane %v1605, 1
        %v1607 = vadd.f32 %v1605, %v1606
        %v1608 = vrot.slane %v1529, 4
        %v1609 = vadd.f32 %v1529, %v1608
        %v1610 = vrot.slane %v1609, 2
        %v1611 = vadd.f32 %v1609, %v1610
        %v1612 = vrot.slane %v1611, 1
        %v1613 = vadd.f32 %v1611, %v1612
        %v1614 = vrot.slane %v1598, 4
        %v1615 = vadd.f32 %v1598, %v1614
        %v1616 = vrot.slane %v1615, 2
        %v1617 = vadd.f32 %v1615, %v1616
        %v1618 = vrot.slane %v1617, 1
        %v1619 = vadd.f32 %v1617, %v1618
        %v1620 = vrot.slane %v1600, 4
        %v1621 = vadd.f32 %v1600, %v1620
        %v1622 = vrot.slane %v1621, 2
        %v1623 = vadd.f32 %v1621, %v1622
        %v1624 = vrot.slane %v1623, 1
        %v1625 = vadd.f32 %v1623, %v1624
        %v1626 = vmul.f32 %v1607, %v595
        %v1627 = vmul.f32 %v1613, %v595
        %v1628 = vmul.f32 %v1619, %v595
        %v1629 = vmul.f32 %v1625, %v595
        %v1630 = vmul.f32 %v1527, %v1527
        %v1631 = vmul.f32 %v1529, %v1529
        %v1632 = vmul.f32 %v1598, %v1598
        %v1633 = vmul.f32 %v1600, %v1600
        %v1634 = vrot.slane %v1630, 4
        %v1635 = vadd.f32 %v1630, %v1634
        %v1636 = vrot.slane %v1635, 2
        %v1637 = vadd.f32 %v1635, %v1636
        %v1638 = vrot.slane %v1637, 1
        %v1639 = vadd.f32 %v1637, %v1638
        %v1640 = vrot.slane %v1631, 4
        %v1641 = vadd.f32 %v1631, %v1640
        %v1642 = vrot.slane %v1641, 2
        %v1643 = vadd.f32 %v1641, %v1642
        %v1644 = vrot.slane %v1643, 1
        %v1645 = vadd.f32 %v1643, %v1644
        %v1646 = vrot.slane %v1632, 4
        %v1647 = vadd.f32 %v1632, %v1646
        %v1648 = vrot.slane %v1647, 2
        %v1649 = vadd.f32 %v1647, %v1648
        %v1650 = vrot.slane %v1649, 1
        %v1651 = vadd.f32 %v1649, %v1650
        %v1652 = vrot.slane %v1633, 4
        %v1653 = vadd.f32 %v1633, %v1652
        %v1654 = vrot.slane %v1653, 2
        %v1655 = vadd.f32 %v1653, %v1654
        %v1656 = vrot.slane %v1655, 1
        %v1657 = vadd.f32 %v1655, %v1656
        %v1658 = vmul.f32 %v1639, %v595
        %v1659 = vmul.f32 %v1645, %v595
        %v1660 = vmul.f32 %v1651, %v595
        %v1661 = vmul.f32 %v1657, %v595
        %v1662 = vmul.f32 %v1626, %v1626
        %v1663 = vmul.f32 %v1627, %v1627
        %v1664 = vmul.f32 %v1628, %v1628
        %v1665 = vmul.f32 %v1629, %v1629
        %v1666 = vsub.f32 %v1658, %v1662
        %v1667 = vsub.f32 %v1659, %v1663
        %v1668 = vsub.f32 %v1660, %v1664
        %v1669 = vsub.f32 %v1661, %v1665
        %v1670 = vmax.f32 %v1666, 0.0
        %v1671 = vmax.f32 %v1667, 0.0
        %v1672 = vmax.f32 %v1668, 0.0
        %v1673 = vmax.f32 %v1669, 0.0
        %v1674 = vsub.f32 %v1527, %v1626
        %v1675 = vsub.f32 %v1529, %v1627
        %v1676 = vsub.f32 %v1598, %v1628
        %v1677 = vsub.f32 %v1600, %v1629
        %v1678 = vadd.f32 %v1670, 0.001
        %v1679 = vadd.f32 %v1671, 0.001
        %v1680 = vadd.f32 %v1672, 0.001
        %v1681 = vadd.f32 %v1673, 0.001
        %v1682 = vrsqrt.pop %v1678
        %v1683 = vrsqrt.pop %v1679
        %v1684 = vrsqrt.pop %v1680
        %v1685 = vrsqrt.pop %v1681
        %v1690 = vcombine.low %v1682, %v1683
        %v1691 = vcombine.low %v1684, %v1685
        %v1693 = vunpack.c.l.s4 1966171168
        %v1694 = vunpack.c.0.s8 %v1693
        %v1695 = vlaneseq
        %v1696 = vshrl.u32 %v1695, 7
        %v1697 = vsub.s32 %v1694, %v1696
        %v1698 = vrot.slane %v1690, %v1697
        %v1700 = vunpack.c.l.s4 1966171168
        %v1701 = vunpack.c.0.s8 %v1700
        %v1702 = vlaneseq
        %v1703 = vshrl.u32 %v1702, 7
        %v1704 = vsub.s32 %v1701, %v1703
        %v1705 = vrot.slane %v1691, %v1704
        %v1706 = vcombine.low %v1698, %v1705
        %v1708 = vunpack.c.l.s4 1966171168
        %v1709 = vunpack.c.0.s8 %v1708
        %v1710 = vlaneseq
        %v1711 = vshrl.u32 %v1710, 7
        %v1712 = vsub.s32 %v1709, %v1711
        %v1713 = vrot.slane %v1706, %v1712
        %v1715 = vmul.f32 %v424, %v1713
        %v1717 = vlaneseq
        %v1718 = vshrl.u32 %v1717, 7
        %v1719 = vsub.s32 0, %v1718
        %v1720 = vrot.slane %v1715, %v1719
        %v1721 = vlaneseq
        %v1722 = vshrl.u32 %v1721, 7
        %v1723 = vsub.s32 1, %v1722
        %v1724 = vrot.slane %v1715, %v1723
        %v1725 = vlaneseq
        %v1726 = vshrl.u32 %v1725, 7
        %v1727 = vsub.s32 2, %v1726
        %v1728 = vrot.slane %v1715, %v1727
        %v1729 = vlaneseq
        %v1730 = vshrl.u32 %v1729, 7
        %v1731 = vsub.s32 3, %v1730
        %v1732 = vrot.slane %v1715, %v1731
        %v1737 = vmul.f32 %v1674, %v1720
        %v1738 = vmul.f32 %v1675, %v1724
        %v1739 = vmul.f32 %v1676, %v1728
        %v1740 = vmul.f32 %v1677, %v1732
        %s1741 = scalar_lea.vmem %s303, 96 [#allocation4]
        %v1742 = vld [vmem:[%s1741] sm:$0xff]
        %v1743 = vld [vmem:[%s1741 + $0x8] sm:$0xff]
        %v1744 = vld [vmem:[%s1741 + $0x10] sm:$0xff]
        %v1745 = vld [vmem:[%s1741 + $0x18] sm:$0xff]
        %v1746 = vadd.f32 %v1737, %v1742
        %v1747 = vadd.f32 %v1738, %v1743
        %v1748 = vadd.f32 %v1739, %v1744
        %v1749 = vadd.f32 %v1740, %v1745
        %v1750 = vmul.f32 %v1746, 0.5
        %v1751 = vtanh.pop %v1750
        %v1752 = vadd.f32 %v1751, 1.0
        %v1753 = vmul.f32 %v1752, 0.5
        %v1754 = vmul.f32 %v1753, %v1419
        %v1755 = vmul.f32 %v1747, 0.5
        %v1756 = vtanh.pop %v1755
        %v1757 = vadd.f32 %v1756, 1.0
        %v1758 = vmul.f32 %v1757, 0.5
        %v1759 = vtanh.pop %v1749
        %v1760 = vmul.f32 %v1758, %v1759
        %v1761 = vadd.f32 %v1754, %v1760
        %v1762 = vrot.slane %v1761, 4
        %v1763 = vadd.f32 %v1761, %v1762
        %v1764 = vrot.slane %v1763, 2
        %v1765 = vadd.f32 %v1763, %v1764
        %v1766 = vrot.slane %v1765, 1
        %v1767 = vadd.f32 %v1765, %v1766
        %v1768 = vmul.f32 %v1767, %v595
        %v1769 = vmul.f32 %v1761, %v1761
        %v1770 = vrot.slane %v1769, 4
        %v1771 = vadd.f32 %v1769, %v1770
        %v1772 = vrot.slane %v1771, 2
        %v1773 = vadd.f32 %v1771, %v1772
        %v1774 = vrot.slane %v1773, 1
        %v1775 = vadd.f32 %v1773, %v1774
        %v1776 = vmul.f32 %v1775, %v595
        %v1777 = vmul.f32 %v1768, %v1768
        %v1778 = vsub.f32 %v1776, %v1777
        %v1779 = vmax.f32 %v1778, 0.0
        %v1780 = vsub.f32 %v1761, %v1768
        %v1781 = vadd.f32 %v1779, 0.001
        %v1782 = vrsqrt.pop %v1781
        %v1783 = vmul.f32 %v425, %v1782
        %v1785 = vlaneseq
        %v1786 = vshrl.u32 %v1785, 7
        %v1787 = vsub.s32 0, %v1786
        %v1788 = vrot.slane %v1783, %v1787
        %v1790 = vmul.f32 %v1780, %v1788
        %v1791 = vadd.f32 %v1790, %v764
        %v1792 = vmul.f32 %v1748, 0.5
        %v1793 = vtanh.pop %v1792
        %v1794 = vadd.f32 %v1793, 1.0
        %v1795 = vmul.f32 %v1794, 0.5
        %v1796 = vtanh.pop %v1791
        %v1797 = vmul.f32 %v1795, %v1796
        %s1798 = scalar_lea.vmem %s349, 48 [#allocation13]
        %1799 = vst [vmem:[%s1798] sm:$0xff] %v1797
        %s1800 = scalar_lea.vmem %s349, 56 [#allocation13]
        %1801 = vst [vmem:[%s1800] sm:$0xff] %v1761
        %1802 = vmatprep.subr.mxu0 %v421
        %1803 = vmatpush1.msra.mxu0 %v420
        %1804 = vmatprep.subr.mxu0 %v417
        %1805 = vmatpush1.msra.mxu0 %v416
        %1806 = vmatprep.subr.mxu0 %v413
        %1807 = vmatpush1.msra.mxu0 %v412
        %1808 = vmatprep.subr.mxu0 %v409
        %1809 = vmatpush1.msra.mxu0 %v408
        %1810 = vmatprep.subr.mxu0 %v405
        %1811 = vmatpush1.msra.mxu0 %v404
        %1812 = vmatprep.subr.mxu0 %v401
        %1813 = vmatpush1.msra.mxu0 %v400
        %1814 = vmatprep.subr.mxu0 %v397
        %1815 = vmatpush1.msra.mxu0 %v396
        %1816 = vmatprep.subr.mxu0 %v393
        %1817 = vmatpush1.msra.mxu0 %v392
        %1818 = vmatprep.subr.mxu0 %v389
        %1819 = vmatpush1.msra.mxu0 %v388
        %1820 = vmatprep.subr.mxu0 %v385
        %1821 = vmatpush1.msra.mxu0 %v384
        %1822 = vmatprep.subr.mxu0 %v381
        %1823 = vmatpush1.msra.mxu0 %v380
        %1824 = vmatprep.subr.mxu0 %v377
        %1825 = vmatpush1.msra.mxu0 %v376
        %1826 = vmatprep.subr.mxu0 %v373
        %1827 = vmatpush1.msra.mxu0 %v372
        %1828 = vmatprep.subr.mxu0 %v369
        %1829 = vmatpush1.msra.mxu0 %v368
        %1830 = vmatprep.subr.mxu0 %v365
        %1831 = vmatpush1.msra.mxu0 %v364
        %1832 = vmatprep.subr.mxu0 %v361
        %1833 = vmatpush1.msra.mxu0 %v360
        %1834 = vmatprep.subr.mxu0 0.0
        %1835 = vmatpush2.msra.mxu0 0.0
        %1836 = vmatprep.subr.mxu0 0.0
        %1837 = vmatpush2.msra.mxu0 0.0
        %1838 = vmatprep.subr.mxu0 0.0
        %1839 = vmatpush2.msra.mxu0 0.0
        %1840 = vmatprep.subr.mxu0 0.0
        %1841 = vmatpush2.msra.mxu0 0.0
        %1842 = vmatprep.subr.mxu0 0.0
        %1843 = vmatpush2.msra.mxu0 0.0
        %1844 = vmatprep.subr.mxu0 0.0
        %1845 = vmatpush2.msra.mxu0 0.0
        %1846 = vmatprep.subr.mxu0 0.0
        %1847 = vmatpush2.msra.mxu0 0.0
        %1848 = vmatprep.subr.mxu0 0.0
        %1849 = vmatpush2.msra.mxu0 0.0
        %1850 = vmatprep.subr.mxu0 0.0
        %1851 = vmatpush2.msra.mxu0 0.0
        %1852 = vmatprep.subr.mxu0 0.0
        %1853 = vmatpush2.msra.mxu0 0.0
        %1854 = vmatprep.subr.mxu0 0.0
        %1855 = vmatpush2.msra.mxu0 0.0
        %1856 = vmatprep.subr.mxu0 0.0
        %1857 = vmatpush2.msra.mxu0 0.0
        %1858 = vmatprep.subr.mxu0 0.0
        %1859 = vmatpush2.msra.mxu0 0.0
        %1860 = vmatprep.subr.mxu0 0.0
        %1861 = vmatpush2.msra.mxu0 0.0
        %1862 = vmatprep.subr.mxu0 0.0
        %1863 = vmatpush2.msra.mxu0 0.0
        %1864 = vmatprep.subr.mxu0 0.0
        %1865 = vmatpush2.msra.mxu0 0.0
        %1866 = vmatprep.mubr.f32.mxu0 0.0
        %1867 = vmatmul.mubr.f32.gmra.mxu0 %v1797
        %v1868 = vpop.f32.mrf.mxu0
        %v1869 = vadd.f32 0.0, %v1868
        %v1870 = vpop.f32.mrf.mxu0
        %v1871 = vadd.f32 0.0, %v1870
        %1872 = vdwg.mxu0
        %1873 = vmatprep.subr.mxu0 %v423
        %1874 = vmatpush1.msra.mxu0 %v422
        %1875 = vmatprep.subr.mxu0 %v419
        %1876 = vmatpush1.msra.mxu0 %v418
        %1877 = vmatprep.subr.mxu0 %v415
        %1878 = vmatpush1.msra.mxu0 %v414
        %1879 = vmatprep.subr.mxu0 %v411
        %1880 = vmatpush1.msra.mxu0 %v410
        %1881 = vmatprep.subr.mxu0 %v407
        %1882 = vmatpush1.msra.mxu0 %v406
        %1883 = vmatprep.subr.mxu0 %v403
        %1884 = vmatpush1.msra.mxu0 %v402
        %1885 = vmatprep.subr.mxu0 %v399
        %1886 = vmatpush1.msra.mxu0 %v398
        %1887 = vmatprep.subr.mxu0 %v395
        %1888 = vmatpush1.msra.mxu0 %v394
        %1889 = vmatprep.subr.mxu0 %v391
        %1890 = vmatpush1.msra.mxu0 %v390
        %1891 = vmatprep.subr.mxu0 %v387
        %1892 = vmatpush1.msra.mxu0 %v386
        %1893 = vmatprep.subr.mxu0 %v383
        %1894 = vmatpush1.msra.mxu0 %v382
        %1895 = vmatprep.subr.mxu0 %v379
        %1896 = vmatpush1.msra.mxu0 %v378
        %1897 = vmatprep.subr.mxu0 %v375
        %1898 = vmatpush1.msra.mxu0 %v374
        %1899 = vmatprep.subr.mxu0 %v371
        %1900 = vmatpush1.msra.mxu0 %v370
        %1901 = vmatprep.subr.mxu0 %v367
        %1902 = vmatpush1.msra.mxu0 %v366
        %1903 = vmatprep.subr.mxu0 %v363
        %1904 = vmatpush1.msra.mxu0 %v362
        %1905 = vmatprep.subr.mxu0 0.0
        %1906 = vmatpush2.msra.mxu0 0.0
        %1907 = vmatprep.subr.mxu0 0.0
        %1908 = vmatpush2.msra.mxu0 0.0
        %1909 = vmatprep.subr.mxu0 0.0
        %1910 = vmatpush2.msra.mxu0 0.0
        %1911 = vmatprep.subr.mxu0 0.0
        %1912 = vmatpush2.msra.mxu0 0.0
        %1913 = vmatprep.subr.mxu0 0.0
        %1914 = vmatpush2.msra.mxu0 0.0
        %1915 = vmatprep.subr.mxu0 0.0
        %1916 = vmatpush2.msra.mxu0 0.0
        %1917 = vmatprep.subr.mxu0 0.0
        %1918 = vmatpush2.msra.mxu0 0.0
        %1919 = vmatprep.subr.mxu0 0.0
        %1920 = vmatpush2.msra.mxu0 0.0
        %1921 = vmatprep.subr.mxu0 0.0
        %1922 = vmatpush2.msra.mxu0 0.0
        %1923 = vmatprep.subr.mxu0 0.0
        %1924 = vmatpush2.msra.mxu0 0.0
        %1925 = vmatprep.subr.mxu0 0.0
        %1926 = vmatpush2.msra.mxu0 0.0
        %1927 = vmatprep.subr.mxu0 0.0
        %1928 = vmatpush2.msra.mxu0 0.0
        %1929 = vmatprep.subr.mxu0 0.0
        %1930 = vmatpush2.msra.mxu0 0.0
        %1931 = vmatprep.subr.mxu0 0.0
        %1932 = vmatpush2.msra.mxu0 0.0
        %1933 = vmatprep.subr.mxu0 0.0
        %1934 = vmatpush2.msra.mxu0 0.0
        %1935 = vmatprep.subr.mxu0 0.0
        %1936 = vmatpush2.msra.mxu0 0.0
        %1937 = vmatprep.mubr.f32.mxu0 0.0
        %1938 = vmatmul.mubr.f32.gmra.mxu0 %v1797
        %v1939 = vpop.f32.mrf.mxu0
        %v1940 = vadd.f32 0.0, %v1939
        %v1941 = vpop.f32.mrf.mxu0
        %v1942 = vadd.f32 0.0, %v1941
        %1943 = vdwg.mxu0
        %v1944 = vrot.slane %v1869, 4
        %v1945 = vadd.f32 %v1869, %v1944
        %v1946 = vrot.slane %v1945, 2
        %v1947 = vadd.f32 %v1945, %v1946
        %v1948 = vrot.slane %v1947, 1
        %v1949 = vadd.f32 %v1947, %v1948
        %v1950 = vrot.slane %v1871, 4
        %v1951 = vadd.f32 %v1871, %v1950
        %v1952 = vrot.slane %v1951, 2
        %v1953 = vadd.f32 %v1951, %v1952
        %v1954 = vrot.slane %v1953, 1
        %v1955 = vadd.f32 %v1953, %v1954
        %v1956 = vrot.slane %v1940, 4
        %v1957 = vadd.f32 %v1940, %v1956
        %v1958 = vrot.slane %v1957, 2
        %v1959 = vadd.f32 %v1957, %v1958
        %v1960 = vrot.slane %v1959, 1
        %v1961 = vadd.f32 %v1959, %v1960
        %v1962 = vrot.slane %v1942, 4
        %v1963 = vadd.f32 %v1942, %v1962
        %v1964 = vrot.slane %v1963, 2
        %v1965 = vadd.f32 %v1963, %v1964
        %v1966 = vrot.slane %v1965, 1
        %v1967 = vadd.f32 %v1965, %v1966
        %v1968 = vmul.f32 %v1949, %v595
        %v1969 = vmul.f32 %v1955, %v595
        %v1970 = vmul.f32 %v1961, %v595
        %v1971 = vmul.f32 %v1967, %v595
        %v1972 = vmul.f32 %v1869, %v1869
        %v1973 = vmul.f32 %v1871, %v1871
        %v1974 = vmul.f32 %v1940, %v1940
        %v1975 = vmul.f32 %v1942, %v1942
        %v1976 = vrot.slane %v1972, 4
        %v1977 = vadd.f32 %v1972, %v1976
        %v1978 = vrot.slane %v1977, 2
        %v1979 = vadd.f32 %v1977, %v1978
        %v1980 = vrot.slane %v1979, 1
        %v1981 = vadd.f32 %v1979, %v1980
        %v1982 = vrot.slane %v1973, 4
        %v1983 = vadd.f32 %v1973, %v1982
        %v1984 = vrot.slane %v1983, 2
        %v1985 = vadd.f32 %v1983, %v1984
        %v1986 = vrot.slane %v1985, 1
        %v1987 = vadd.f32 %v1985, %v1986
        %v1988 = vrot.slane %v1974, 4
        %v1989 = vadd.f32 %v1974, %v1988
        %v1990 = vrot.slane %v1989, 2
        %v1991 = vadd.f32 %v1989, %v1990
        %v1992 = vrot.slane %v1991, 1
        %v1993 = vadd.f32 %v1991, %v1992
        %v1994 = vrot.slane %v1975, 4
        %v1995 = vadd.f32 %v1975, %v1994
        %v1996 = vrot.slane %v1995, 2
        %v1997 = vadd.f32 %v1995, %v1996
        %v1998 = vrot.slane %v1997, 1
        %v1999 = vadd.f32 %v1997, %v1998
        %v2000 = vmul.f32 %v1981, %v595
        %v2001 = vmul.f32 %v1987, %v595
        %v2002 = vmul.f32 %v1993, %v595
        %v2003 = vmul.f32 %v1999, %v595
        %v2004 = vmul.f32 %v1968, %v1968
        %v2005 = vmul.f32 %v1969, %v1969
        %v2006 = vmul.f32 %v1970, %v1970
        %v2007 = vmul.f32 %v1971, %v1971
        %v2008 = vsub.f32 %v2000, %v2004
        %v2009 = vsub.f32 %v2001, %v2005
        %v2010 = vsub.f32 %v2002, %v2006
        %v2011 = vsub.f32 %v2003, %v2007
        %v2012 = vmax.f32 %v2008, 0.0
        %v2013 = vmax.f32 %v2009, 0.0
        %v2014 = vmax.f32 %v2010, 0.0
        %v2015 = vmax.f32 %v2011, 0.0
        %v2016 = vsub.f32 %v1869, %v1968
        %v2017 = vsub.f32 %v1871, %v1969
        %v2018 = vsub.f32 %v1940, %v1970
        %v2019 = vsub.f32 %v1942, %v1971
        %v2020 = vadd.f32 %v2012, 0.001
        %v2021 = vadd.f32 %v2013, 0.001
        %v2022 = vadd.f32 %v2014, 0.001
        %v2023 = vadd.f32 %v2015, 0.001
        %v2024 = vrsqrt.pop %v2020
        %v2025 = vrsqrt.pop %v2021
        %v2026 = vrsqrt.pop %v2022
        %v2027 = vrsqrt.pop %v2023
        %v2032 = vcombine.low %v2024, %v2025
        %v2033 = vcombine.low %v2026, %v2027
        %v2035 = vunpack.c.l.s4 1966171168
        %v2036 = vunpack.c.0.s8 %v2035
        %v2037 = vlaneseq
        %v2038 = vshrl.u32 %v2037, 7
        %v2039 = vsub.s32 %v2036, %v2038
        %v2040 = vrot.slane %v2032, %v2039
        %v2042 = vunpack.c.l.s4 1966171168
        %v2043 = vunpack.c.0.s8 %v2042
        %v2044 = vlaneseq
        %v2045 = vshrl.u32 %v2044, 7
        %v2046 = vsub.s32 %v2043, %v2045
        %v2047 = vrot.slane %v2033, %v2046
        %v2048 = vcombine.low %v2040, %v2047
        %v2050 = vunpack.c.l.s4 1966171168
        %v2051 = vunpack.c.0.s8 %v2050
        %v2052 = vlaneseq
        %v2053 = vshrl.u32 %v2052, 7
        %v2054 = vsub.s32 %v2051, %v2053
        %v2055 = vrot.slane %v2048, %v2054
        %v2057 = vmul.f32 %v424, %v2055
        %v2059 = vlaneseq
        %v2060 = vshrl.u32 %v2059, 7
        %v2061 = vsub.s32 0, %v2060
        %v2062 = vrot.slane %v2057, %v2061
        %v2063 = vlaneseq
        %v2064 = vshrl.u32 %v2063, 7
        %v2065 = vsub.s32 1, %v2064
        %v2066 = vrot.slane %v2057, %v2065
        %v2067 = vlaneseq
        %v2068 = vshrl.u32 %v2067, 7
        %v2069 = vsub.s32 2, %v2068
        %v2070 = vrot.slane %v2057, %v2069
        %v2071 = vlaneseq
        %v2072 = vshrl.u32 %v2071, 7
        %v2073 = vsub.s32 3, %v2072
        %v2074 = vrot.slane %v2057, %v2073
        %v2079 = vmul.f32 %v2016, %v2062
        %v2080 = vmul.f32 %v2017, %v2066
        %v2081 = vmul.f32 %v2018, %v2070
        %v2082 = vmul.f32 %v2019, %v2074
        %s2083 = scalar_lea.vmem %s303, 128 [#allocation4]
        %v2084 = vld [vmem:[%s2083] sm:$0xff]
        %v2085 = vld [vmem:[%s2083 + $0x8] sm:$0xff]
        %v2086 = vld [vmem:[%s2083 + $0x10] sm:$0xff]
        %v2087 = vld [vmem:[%s2083 + $0x18] sm:$0xff]
        %v2088 = vadd.f32 %v2079, %v2084
        %v2089 = vadd.f32 %v2080, %v2085
        %v2090 = vadd.f32 %v2081, %v2086
        %v2091 = vadd.f32 %v2082, %v2087
        %v2092 = vmul.f32 %v2088, 0.5
        %v2093 = vtanh.pop %v2092
        %v2094 = vadd.f32 %v2093, 1.0
        %v2095 = vmul.f32 %v2094, 0.5
        %v2096 = vmul.f32 %v2095, %v1761
        %v2097 = vmul.f32 %v2089, 0.5
        %v2098 = vtanh.pop %v2097
        %v2099 = vadd.f32 %v2098, 1.0
        %v2100 = vmul.f32 %v2099, 0.5
        %v2101 = vtanh.pop %v2091
        %v2102 = vmul.f32 %v2100, %v2101
        %v2103 = vadd.f32 %v2096, %v2102
        %v2104 = vrot.slane %v2103, 4
        %v2105 = vadd.f32 %v2103, %v2104
        %v2106 = vrot.slane %v2105, 2
        %v2107 = vadd.f32 %v2105, %v2106
        %v2108 = vrot.slane %v2107, 1
        %v2109 = vadd.f32 %v2107, %v2108
        %v2110 = vmul.f32 %v2109, %v595
        %v2111 = vmul.f32 %v2103, %v2103
        %v2112 = vrot.slane %v2111, 4
        %v2113 = vadd.f32 %v2111, %v2112
        %v2114 = vrot.slane %v2113, 2
        %v2115 = vadd.f32 %v2113, %v2114
        %v2116 = vrot.slane %v2115, 1
        %v2117 = vadd.f32 %v2115, %v2116
        %v2118 = vmul.f32 %v2117, %v595
        %v2119 = vmul.f32 %v2110, %v2110
        %v2120 = vsub.f32 %v2118, %v2119
        %v2121 = vmax.f32 %v2120, 0.0
        %v2122 = vsub.f32 %v2103, %v2110
        %v2123 = vadd.f32 %v2121, 0.001
        %v2124 = vrsqrt.pop %v2123
        %v2125 = vmul.f32 %v425, %v2124
        %v2127 = vlaneseq
        %v2128 = vshrl.u32 %v2127, 7
        %v2129 = vsub.s32 0, %v2128
        %v2130 = vrot.slane %v2125, %v2129
        %v2132 = vmul.f32 %v2122, %v2130
        %v2133 = vadd.f32 %v2132, %v764
        %v2134 = vmul.f32 %v2090, 0.5
        %v2135 = vtanh.pop %v2134
        %v2136 = vadd.f32 %v2135, 1.0
        %v2137 = vmul.f32 %v2136, 0.5
        %v2138 = vtanh.pop %v2133
        %v2139 = vmul.f32 %v2137, %v2138
        %s2140 = scalar_lea.vmem %s349, 64 [#allocation13]
        %2141 = vst [vmem:[%s2140] sm:$0xff] %v2139
        %s2142 = scalar_lea.vmem %s349, 72 [#allocation13]
        %2143 = vst [vmem:[%s2142] sm:$0xff] %v2103
        %2144 = vmatprep.subr.mxu0 %v421
        %2145 = vmatpush1.msra.mxu0 %v420
        %2146 = vmatprep.subr.mxu0 %v417
        %2147 = vmatpush1.msra.mxu0 %v416
        %2148 = vmatprep.subr.mxu0 %v413
        %2149 = vmatpush1.msra.mxu0 %v412
        %2150 = vmatprep.subr.mxu0 %v409
        %2151 = vmatpush1.msra.mxu0 %v408
        %2152 = vmatprep.subr.mxu0 %v405
        %2153 = vmatpush1.msra.mxu0 %v404
        %2154 = vmatprep.subr.mxu0 %v401
        %2155 = vmatpush1.msra.mxu0 %v400
        %2156 = vmatprep.subr.mxu0 %v397
        %2157 = vmatpush1.msra.mxu0 %v396
        %2158 = vmatprep.subr.mxu0 %v393
        %2159 = vmatpush1.msra.mxu0 %v392
        %2160 = vmatprep.subr.mxu0 %v389
        %2161 = vmatpush1.msra.mxu0 %v388
        %2162 = vmatprep.subr.mxu0 %v385
        %2163 = vmatpush1.msra.mxu0 %v384
        %2164 = vmatprep.subr.mxu0 %v381
        %2165 = vmatpush1.msra.mxu0 %v380
        %2166 = vmatprep.subr.mxu0 %v377
        %2167 = vmatpush1.msra.mxu0 %v376
        %2168 = vmatprep.subr.mxu0 %v373
        %2169 = vmatpush1.msra.mxu0 %v372
        %2170 = vmatprep.subr.mxu0 %v369
        %2171 = vmatpush1.msra.mxu0 %v368
        %2172 = vmatprep.subr.mxu0 %v365
        %2173 = vmatpush1.msra.mxu0 %v364
        %2174 = vmatprep.subr.mxu0 %v361
        %2175 = vmatpush1.msra.mxu0 %v360
        %2176 = vmatprep.subr.mxu0 0.0
        %2177 = vmatpush2.msra.mxu0 0.0
        %2178 = vmatprep.subr.mxu0 0.0
        %2179 = vmatpush2.msra.mxu0 0.0
        %2180 = vmatprep.subr.mxu0 0.0
        %2181 = vmatpush2.msra.mxu0 0.0
        %2182 = vmatprep.subr.mxu0 0.0
        %2183 = vmatpush2.msra.mxu0 0.0
        %2184 = vmatprep.subr.mxu0 0.0
        %2185 = vmatpush2.msra.mxu0 0.0
        %2186 = vmatprep.subr.mxu0 0.0
        %2187 = vmatpush2.msra.mxu0 0.0
        %2188 = vmatprep.subr.mxu0 0.0
        %2189 = vmatpush2.msra.mxu0 0.0
        %2190 = vmatprep.subr.mxu0 0.0
        %2191 = vmatpush2.msra.mxu0 0.0
        %2192 = vmatprep.subr.mxu0 0.0
        %2193 = vmatpush2.msra.mxu0 0.0
        %2194 = vmatprep.subr.mxu0 0.0
        %2195 = vmatpush2.msra.mxu0 0.0
        %2196 = vmatprep.subr.mxu0 0.0
        %2197 = vmatpush2.msra.mxu0 0.0
        %2198 = vmatprep.subr.mxu0 0.0
        %2199 = vmatpush2.msra.mxu0 0.0
        %2200 = vmatprep.subr.mxu0 0.0
        %2201 = vmatpush2.msra.mxu0 0.0
        %2202 = vmatprep.subr.mxu0 0.0
        %2203 = vmatpush2.msra.mxu0 0.0
        %2204 = vmatprep.subr.mxu0 0.0
        %2205 = vmatpush2.msra.mxu0 0.0
        %2206 = vmatprep.subr.mxu0 0.0
        %2207 = vmatpush2.msra.mxu0 0.0
        %2208 = vmatprep.mubr.f32.mxu0 0.0
        %2209 = vmatmul.mubr.f32.gmra.mxu0 %v2139
        %v2210 = vpop.f32.mrf.mxu0
        %v2211 = vadd.f32 0.0, %v2210
        %v2212 = vpop.f32.mrf.mxu0
        %v2213 = vadd.f32 0.0, %v2212
        %2214 = vdwg.mxu0
        %2215 = vmatprep.subr.mxu0 %v423
        %2216 = vmatpush1.msra.mxu0 %v422
        %2217 = vmatprep.subr.mxu0 %v419
        %2218 = vmatpush1.msra.mxu0 %v418
        %2219 = vmatprep.subr.mxu0 %v415
        %2220 = vmatpush1.msra.mxu0 %v414
        %2221 = vmatprep.subr.mxu0 %v411
        %2222 = vmatpush1.msra.mxu0 %v410
        %2223 = vmatprep.subr.mxu0 %v407
        %2224 = vmatpush1.msra.mxu0 %v406
        %2225 = vmatprep.subr.mxu0 %v403
        %2226 = vmatpush1.msra.mxu0 %v402
        %2227 = vmatprep.subr.mxu0 %v399
        %2228 = vmatpush1.msra.mxu0 %v398
        %2229 = vmatprep.subr.mxu0 %v395
        %2230 = vmatpush1.msra.mxu0 %v394
        %2231 = vmatprep.subr.mxu0 %v391
        %2232 = vmatpush1.msra.mxu0 %v390
        %2233 = vmatprep.subr.mxu0 %v387
        %2234 = vmatpush1.msra.mxu0 %v386
        %2235 = vmatprep.subr.mxu0 %v383
        %2236 = vmatpush1.msra.mxu0 %v382
        %2237 = vmatprep.subr.mxu0 %v379
        %2238 = vmatpush1.msra.mxu0 %v378
        %2239 = vmatprep.subr.mxu0 %v375
        %2240 = vmatpush1.msra.mxu0 %v374
        %2241 = vmatprep.subr.mxu0 %v371
        %2242 = vmatpush1.msra.mxu0 %v370
        %2243 = vmatprep.subr.mxu0 %v367
        %2244 = vmatpush1.msra.mxu0 %v366
        %2245 = vmatprep.subr.mxu0 %v363
        %2246 = vmatpush1.msra.mxu0 %v362
        %2247 = vmatprep.subr.mxu0 0.0
        %2248 = vmatpush2.msra.mxu0 0.0
        %2249 = vmatprep.subr.mxu0 0.0
        %2250 = vmatpush2.msra.mxu0 0.0
        %2251 = vmatprep.subr.mxu0 0.0
        %2252 = vmatpush2.msra.mxu0 0.0
        %2253 = vmatprep.subr.mxu0 0.0
        %2254 = vmatpush2.msra.mxu0 0.0
        %2255 = vmatprep.subr.mxu0 0.0
        %2256 = vmatpush2.msra.mxu0 0.0
        %2257 = vmatprep.subr.mxu0 0.0
        %2258 = vmatpush2.msra.mxu0 0.0
        %2259 = vmatprep.subr.mxu0 0.0
        %2260 = vmatpush2.msra.mxu0 0.0
        %2261 = vmatprep.subr.mxu0 0.0
        %2262 = vmatpush2.msra.mxu0 0.0
        %2263 = vmatprep.subr.mxu0 0.0
        %2264 = vmatpush2.msra.mxu0 0.0
        %2265 = vmatprep.subr.mxu0 0.0
        %2266 = vmatpush2.msra.mxu0 0.0
        %2267 = vmatprep.subr.mxu0 0.0
        %2268 = vmatpush2.msra.mxu0 0.0
        %2269 = vmatprep.subr.mxu0 0.0
        %2270 = vmatpush2.msra.mxu0 0.0
        %2271 = vmatprep.subr.mxu0 0.0
        %2272 = vmatpush2.msra.mxu0 0.0
        %2273 = vmatprep.subr.mxu0 0.0
        %2274 = vmatpush2.msra.mxu0 0.0
        %2275 = vmatprep.subr.mxu0 0.0
        %2276 = vmatpush2.msra.mxu0 0.0
        %2277 = vmatprep.subr.mxu0 0.0
        %2278 = vmatpush2.msra.mxu0 0.0
        %2279 = vmatprep.mubr.f32.mxu0 0.0
        %2280 = vmatmul.mubr.f32.gmra.mxu0 %v2139
        %v2281 = vpop.f32.mrf.mxu0
        %v2282 = vadd.f32 0.0, %v2281
        %v2283 = vpop.f32.mrf.mxu0
        %v2284 = vadd.f32 0.0, %v2283
        %2285 = vdwg.mxu0
        %v2286 = vrot.slane %v2211, 4
        %v2287 = vadd.f32 %v2211, %v2286
        %v2288 = vrot.slane %v2287, 2
        %v2289 = vadd.f32 %v2287, %v2288
        %v2290 = vrot.slane %v2289, 1
        %v2291 = vadd.f32 %v2289, %v2290
        %v2292 = vrot.slane %v2213, 4
        %v2293 = vadd.f32 %v2213, %v2292
        %v2294 = vrot.slane %v2293, 2
        %v2295 = vadd.f32 %v2293, %v2294
        %v2296 = vrot.slane %v2295, 1
        %v2297 = vadd.f32 %v2295, %v2296
        %v2298 = vrot.slane %v2282, 4
        %v2299 = vadd.f32 %v2282, %v2298
        %v2300 = vrot.slane %v2299, 2
        %v2301 = vadd.f32 %v2299, %v2300
        %v2302 = vrot.slane %v2301, 1
        %v2303 = vadd.f32 %v2301, %v2302
        %v2304 = vrot.slane %v2284, 4
        %v2305 = vadd.f32 %v2284, %v2304
        %v2306 = vrot.slane %v2305, 2
        %v2307 = vadd.f32 %v2305, %v2306
        %v2308 = vrot.slane %v2307, 1
        %v2309 = vadd.f32 %v2307, %v2308
        %v2310 = vmul.f32 %v2291, %v595
        %v2311 = vmul.f32 %v2297, %v595
        %v2312 = vmul.f32 %v2303, %v595
        %v2313 = vmul.f32 %v2309, %v595
        %v2314 = vmul.f32 %v2211, %v2211
        %v2315 = vmul.f32 %v2213, %v2213
        %v2316 = vmul.f32 %v2282, %v2282
        %v2317 = vmul.f32 %v2284, %v2284
        %v2318 = vrot.slane %v2314, 4
        %v2319 = vadd.f32 %v2314, %v2318
        %v2320 = vrot.slane %v2319, 2
        %v2321 = vadd.f32 %v2319, %v2320
        %v2322 = vrot.slane %v2321, 1
        %v2323 = vadd.f32 %v2321, %v2322
        %v2324 = vrot.slane %v2315, 4
        %v2325 = vadd.f32 %v2315, %v2324
        %v2326 = vrot.slane %v2325, 2
        %v2327 = vadd.f32 %v2325, %v2326
        %v2328 = vrot.slane %v2327, 1
        %v2329 = vadd.f32 %v2327, %v2328
        %v2330 = vrot.slane %v2316, 4
        %v2331 = vadd.f32 %v2316, %v2330
        %v2332 = vrot.slane %v2331, 2
        %v2333 = vadd.f32 %v2331, %v2332
        %v2334 = vrot.slane %v2333, 1
        %v2335 = vadd.f32 %v2333, %v2334
        %v2336 = vrot.slane %v2317, 4
        %v2337 = vadd.f32 %v2317, %v2336
        %v2338 = vrot.slane %v2337, 2
        %v2339 = vadd.f32 %v2337, %v2338
        %v2340 = vrot.slane %v2339, 1
        %v2341 = vadd.f32 %v2339, %v2340
        %v2342 = vmul.f32 %v2323, %v595
        %v2343 = vmul.f32 %v2329, %v595
        %v2344 = vmul.f32 %v2335, %v595
        %v2345 = vmul.f32 %v2341, %v595
        %v2346 = vmul.f32 %v2310, %v2310
        %v2347 = vmul.f32 %v2311, %v2311
        %v2348 = vmul.f32 %v2312, %v2312
        %v2349 = vmul.f32 %v2313, %v2313
        %v2350 = vsub.f32 %v2342, %v2346
        %v2351 = vsub.f32 %v2343, %v2347
        %v2352 = vsub.f32 %v2344, %v2348
        %v2353 = vsub.f32 %v2345, %v2349
        %v2354 = vmax.f32 %v2350, 0.0
        %v2355 = vmax.f32 %v2351, 0.0
        %v2356 = vmax.f32 %v2352, 0.0
        %v2357 = vmax.f32 %v2353, 0.0
        %v2358 = vsub.f32 %v2211, %v2310
        %v2359 = vsub.f32 %v2213, %v2311
        %v2360 = vsub.f32 %v2282, %v2312
        %v2361 = vsub.f32 %v2284, %v2313
        %v2362 = vadd.f32 %v2354, 0.001
        %v2363 = vadd.f32 %v2355, 0.001
        %v2364 = vadd.f32 %v2356, 0.001
        %v2365 = vadd.f32 %v2357, 0.001
        %v2366 = vrsqrt.pop %v2362
        %v2367 = vrsqrt.pop %v2363
        %v2368 = vrsqrt.pop %v2364
        %v2369 = vrsqrt.pop %v2365
        %v2374 = vcombine.low %v2366, %v2367
        %v2375 = vcombine.low %v2368, %v2369
        %v2377 = vunpack.c.l.s4 1966171168
        %v2378 = vunpack.c.0.s8 %v2377
        %v2379 = vlaneseq
        %v2380 = vshrl.u32 %v2379, 7
        %v2381 = vsub.s32 %v2378, %v2380
        %v2382 = vrot.slane %v2374, %v2381
        %v2384 = vunpack.c.l.s4 1966171168
        %v2385 = vunpack.c.0.s8 %v2384
        %v2386 = vlaneseq
        %v2387 = vshrl.u32 %v2386, 7
        %v2388 = vsub.s32 %v2385, %v2387
        %v2389 = vrot.slane %v2375, %v2388
        %v2390 = vcombine.low %v2382, %v2389
        %v2392 = vunpack.c.l.s4 1966171168
        %v2393 = vunpack.c.0.s8 %v2392
        %v2394 = vlaneseq
        %v2395 = vshrl.u32 %v2394, 7
        %v2396 = vsub.s32 %v2393, %v2395
        %v2397 = vrot.slane %v2390, %v2396
        %v2399 = vmul.f32 %v424, %v2397
        %v2401 = vlaneseq
        %v2402 = vshrl.u32 %v2401, 7
        %v2403 = vsub.s32 0, %v2402
        %v2404 = vrot.slane %v2399, %v2403
        %v2405 = vlaneseq
        %v2406 = vshrl.u32 %v2405, 7
        %v2407 = vsub.s32 1, %v2406
        %v2408 = vrot.slane %v2399, %v2407
        %v2409 = vlaneseq
        %v2410 = vshrl.u32 %v2409, 7
        %v2411 = vsub.s32 2, %v2410
        %v2412 = vrot.slane %v2399, %v2411
        %v2413 = vlaneseq
        %v2414 = vshrl.u32 %v2413, 7
        %v2415 = vsub.s32 3, %v2414
        %v2416 = vrot.slane %v2399, %v2415
        %v2421 = vmul.f32 %v2358, %v2404
        %v2422 = vmul.f32 %v2359, %v2408
        %v2423 = vmul.f32 %v2360, %v2412
        %v2424 = vmul.f32 %v2361, %v2416
        %s2425 = scalar_lea.vmem %s303, 160 [#allocation4]
        %v2426 = vld [vmem:[%s2425] sm:$0xff]
        %v2427 = vld [vmem:[%s2425 + $0x8] sm:$0xff]
        %v2428 = vld [vmem:[%s2425 + $0x10] sm:$0xff]
        %v2429 = vld [vmem:[%s2425 + $0x18] sm:$0xff]
        %v2430 = vadd.f32 %v2421, %v2426
        %v2431 = vadd.f32 %v2422, %v2427
        %v2432 = vadd.f32 %v2423, %v2428
        %v2433 = vadd.f32 %v2424, %v2429
        %v2434 = vmul.f32 %v2430, 0.5
        %v2435 = vtanh.pop %v2434
        %v2436 = vadd.f32 %v2435, 1.0
        %v2437 = vmul.f32 %v2436, 0.5
        %v2438 = vmul.f32 %v2437, %v2103
        %v2439 = vmul.f32 %v2431, 0.5
        %v2440 = vtanh.pop %v2439
        %v2441 = vadd.f32 %v2440, 1.0
        %v2442 = vmul.f32 %v2441, 0.5
        %v2443 = vtanh.pop %v2433
        %v2444 = vmul.f32 %v2442, %v2443
        %v2445 = vadd.f32 %v2438, %v2444
        %v2446 = vrot.slane %v2445, 4
        %v2447 = vadd.f32 %v2445, %v2446
        %v2448 = vrot.slane %v2447, 2
        %v2449 = vadd.f32 %v2447, %v2448
        %v2450 = vrot.slane %v2449, 1
        %v2451 = vadd.f32 %v2449, %v2450
        %v2452 = vmul.f32 %v2451, %v595
        %v2453 = vmul.f32 %v2445, %v2445
        %v2454 = vrot.slane %v2453, 4
        %v2455 = vadd.f32 %v2453, %v2454
        %v2456 = vrot.slane %v2455, 2
        %v2457 = vadd.f32 %v2455, %v2456
        %v2458 = vrot.slane %v2457, 1
        %v2459 = vadd.f32 %v2457, %v2458
        %v2460 = vmul.f32 %v2459, %v595
        %v2461 = vmul.f32 %v2452, %v2452
        %v2462 = vsub.f32 %v2460, %v2461
        %v2463 = vmax.f32 %v2462, 0.0
        %v2464 = vsub.f32 %v2445, %v2452
        %v2465 = vadd.f32 %v2463, 0.001
        %v2466 = vrsqrt.pop %v2465
        %v2467 = vmul.f32 %v425, %v2466
        %v2469 = vlaneseq
        %v2470 = vshrl.u32 %v2469, 7
        %v2471 = vsub.s32 0, %v2470
        %v2472 = vrot.slane %v2467, %v2471
        %v2474 = vmul.f32 %v2464, %v2472
        %v2475 = vadd.f32 %v2474, %v764
        %v2476 = vmul.f32 %v2432, 0.5
        %v2477 = vtanh.pop %v2476
        %v2478 = vadd.f32 %v2477, 1.0
        %v2479 = vmul.f32 %v2478, 0.5
        %v2480 = vtanh.pop %v2475
        %v2481 = vmul.f32 %v2479, %v2480
        %s2482 = scalar_lea.vmem %s349, 80 [#allocation13]
        %2483 = vst [vmem:[%s2482] sm:$0xff] %v2481
        %s2484 = scalar_lea.vmem %s349, 88 [#allocation13]
        %2485 = vst [vmem:[%s2484] sm:$0xff] %v2445
        %2486 = vmatprep.subr.mxu0 %v421
        %2487 = vmatpush1.msra.mxu0 %v420
        %2488 = vmatprep.subr.mxu0 %v417
        %2489 = vmatpush1.msra.mxu0 %v416
        %2490 = vmatprep.subr.mxu0 %v413
        %2491 = vmatpush1.msra.mxu0 %v412
        %2492 = vmatprep.subr.mxu0 %v409
        %2493 = vmatpush1.msra.mxu0 %v408
        %2494 = vmatprep.subr.mxu0 %v405
        %2495 = vmatpush1.msra.mxu0 %v404
        %2496 = vmatprep.subr.mxu0 %v401
        %2497 = vmatpush1.msra.mxu0 %v400
        %2498 = vmatprep.subr.mxu0 %v397
        %2499 = vmatpush1.msra.mxu0 %v396
        %2500 = vmatprep.subr.mxu0 %v393
        %2501 = vmatpush1.msra.mxu0 %v392
        %2502 = vmatprep.subr.mxu0 %v389
        %2503 = vmatpush1.msra.mxu0 %v388
        %2504 = vmatprep.subr.mxu0 %v385
        %2505 = vmatpush1.msra.mxu0 %v384
        %2506 = vmatprep.subr.mxu0 %v381
        %2507 = vmatpush1.msra.mxu0 %v380
        %2508 = vmatprep.subr.mxu0 %v377
        %2509 = vmatpush1.msra.mxu0 %v376
        %2510 = vmatprep.subr.mxu0 %v373
        %2511 = vmatpush1.msra.mxu0 %v372
        %2512 = vmatprep.subr.mxu0 %v369
        %2513 = vmatpush1.msra.mxu0 %v368
        %2514 = vmatprep.subr.mxu0 %v365
        %2515 = vmatpush1.msra.mxu0 %v364
        %2516 = vmatprep.subr.mxu0 %v361
        %2517 = vmatpush1.msra.mxu0 %v360
        %2518 = vmatprep.subr.mxu0 0.0
        %2519 = vmatpush2.msra.mxu0 0.0
        %2520 = vmatprep.subr.mxu0 0.0
        %2521 = vmatpush2.msra.mxu0 0.0
        %2522 = vmatprep.subr.mxu0 0.0
        %2523 = vmatpush2.msra.mxu0 0.0
        %2524 = vmatprep.subr.mxu0 0.0
        %2525 = vmatpush2.msra.mxu0 0.0
        %2526 = vmatprep.subr.mxu0 0.0
        %2527 = vmatpush2.msra.mxu0 0.0
        %2528 = vmatprep.subr.mxu0 0.0
        %2529 = vmatpush2.msra.mxu0 0.0
        %2530 = vmatprep.subr.mxu0 0.0
        %2531 = vmatpush2.msra.mxu0 0.0
        %2532 = vmatprep.subr.mxu0 0.0
        %2533 = vmatpush2.msra.mxu0 0.0
        %2534 = vmatprep.subr.mxu0 0.0
        %2535 = vmatpush2.msra.mxu0 0.0
        %2536 = vmatprep.subr.mxu0 0.0
        %2537 = vmatpush2.msra.mxu0 0.0
        %2538 = vmatprep.subr.mxu0 0.0
        %2539 = vmatpush2.msra.mxu0 0.0
        %2540 = vmatprep.subr.mxu0 0.0
        %2541 = vmatpush2.msra.mxu0 0.0
        %2542 = vmatprep.subr.mxu0 0.0
        %2543 = vmatpush2.msra.mxu0 0.0
        %2544 = vmatprep.subr.mxu0 0.0
        %2545 = vmatpush2.msra.mxu0 0.0
        %2546 = vmatprep.subr.mxu0 0.0
        %2547 = vmatpush2.msra.mxu0 0.0
        %2548 = vmatprep.subr.mxu0 0.0
        %2549 = vmatpush2.msra.mxu0 0.0
        %2550 = vmatprep.mubr.f32.mxu0 0.0
        %2551 = vmatmul.mubr.f32.gmra.mxu0 %v2481
        %v2552 = vpop.f32.mrf.mxu0
        %v2553 = vadd.f32 0.0, %v2552
        %v2554 = vpop.f32.mrf.mxu0
        %v2555 = vadd.f32 0.0, %v2554
        %2556 = vdwg.mxu0
        %2557 = vmatprep.subr.mxu0 %v423
        %2558 = vmatpush1.msra.mxu0 %v422
        %2559 = vmatprep.subr.mxu0 %v419
        %2560 = vmatpush1.msra.mxu0 %v418
        %2561 = vmatprep.subr.mxu0 %v415
        %2562 = vmatpush1.msra.mxu0 %v414
        %2563 = vmatprep.subr.mxu0 %v411
        %2564 = vmatpush1.msra.mxu0 %v410
        %2565 = vmatprep.subr.mxu0 %v407
        %2566 = vmatpush1.msra.mxu0 %v406
        %2567 = vmatprep.subr.mxu0 %v403
        %2568 = vmatpush1.msra.mxu0 %v402
        %2569 = vmatprep.subr.mxu0 %v399
        %2570 = vmatpush1.msra.mxu0 %v398
        %2571 = vmatprep.subr.mxu0 %v395
        %2572 = vmatpush1.msra.mxu0 %v394
        %2573 = vmatprep.subr.mxu0 %v391
        %2574 = vmatpush1.msra.mxu0 %v390
        %2575 = vmatprep.subr.mxu0 %v387
        %2576 = vmatpush1.msra.mxu0 %v386
        %2577 = vmatprep.subr.mxu0 %v383
        %2578 = vmatpush1.msra.mxu0 %v382
        %2579 = vmatprep.subr.mxu0 %v379
        %2580 = vmatpush1.msra.mxu0 %v378
        %2581 = vmatprep.subr.mxu0 %v375
        %2582 = vmatpush1.msra.mxu0 %v374
        %2583 = vmatprep.subr.mxu0 %v371
        %2584 = vmatpush1.msra.mxu0 %v370
        %2585 = vmatprep.subr.mxu0 %v367
        %2586 = vmatpush1.msra.mxu0 %v366
        %2587 = vmatprep.subr.mxu0 %v363
        %2588 = vmatpush1.msra.mxu0 %v362
        %2589 = vmatprep.subr.mxu0 0.0
        %2590 = vmatpush2.msra.mxu0 0.0
        %2591 = vmatprep.subr.mxu0 0.0
        %2592 = vmatpush2.msra.mxu0 0.0
        %2593 = vmatprep.subr.mxu0 0.0
        %2594 = vmatpush2.msra.mxu0 0.0
        %2595 = vmatprep.subr.mxu0 0.0
        %2596 = vmatpush2.msra.mxu0 0.0
        %2597 = vmatprep.subr.mxu0 0.0
        %2598 = vmatpush2.msra.mxu0 0.0
        %2599 = vmatprep.subr.mxu0 0.0
        %2600 = vmatpush2.msra.mxu0 0.0
        %2601 = vmatprep.subr.mxu0 0.0
        %2602 = vmatpush2.msra.mxu0 0.0
        %2603 = vmatprep.subr.mxu0 0.0
        %2604 = vmatpush2.msra.mxu0 0.0
        %2605 = vmatprep.subr.mxu0 0.0
        %2606 = vmatpush2.msra.mxu0 0.0
        %2607 = vmatprep.subr.mxu0 0.0
        %2608 = vmatpush2.msra.mxu0 0.0
        %2609 = vmatprep.subr.mxu0 0.0
        %2610 = vmatpush2.msra.mxu0 0.0
        %2611 = vmatprep.subr.mxu0 0.0
        %2612 = vmatpush2.msra.mxu0 0.0
        %2613 = vmatprep.subr.mxu0 0.0
        %2614 = vmatpush2.msra.mxu0 0.0
        %2615 = vmatprep.subr.mxu0 0.0
        %2616 = vmatpush2.msra.mxu0 0.0
        %2617 = vmatprep.subr.mxu0 0.0
        %2618 = vmatpush2.msra.mxu0 0.0
        %2619 = vmatprep.subr.mxu0 0.0
        %2620 = vmatpush2.msra.mxu0 0.0
        %2621 = vmatprep.mubr.f32.mxu0 0.0
        %2622 = vmatmul.mubr.f32.gmra.mxu0 %v2481
        %v2623 = vpop.f32.mrf.mxu0
        %v2624 = vadd.f32 0.0, %v2623
        %v2625 = vpop.f32.mrf.mxu0
        %v2626 = vadd.f32 0.0, %v2625
        %2627 = vdwg.mxu0
        %v2628 = vrot.slane %v2553, 4
        %v2629 = vadd.f32 %v2553, %v2628
        %v2630 = vrot.slane %v2629, 2
        %v2631 = vadd.f32 %v2629, %v2630
        %v2632 = vrot.slane %v2631, 1
        %v2633 = vadd.f32 %v2631, %v2632
        %v2634 = vrot.slane %v2555, 4
        %v2635 = vadd.f32 %v2555, %v2634
        %v2636 = vrot.slane %v2635, 2
        %v2637 = vadd.f32 %v2635, %v2636
        %v2638 = vrot.slane %v2637, 1
        %v2639 = vadd.f32 %v2637, %v2638
        %v2640 = vrot.slane %v2624, 4
        %v2641 = vadd.f32 %v2624, %v2640
        %v2642 = vrot.slane %v2641, 2
        %v2643 = vadd.f32 %v2641, %v2642
        %v2644 = vrot.slane %v2643, 1
        %v2645 = vadd.f32 %v2643, %v2644
        %v2646 = vrot.slane %v2626, 4
        %v2647 = vadd.f32 %v2626, %v2646
        %v2648 = vrot.slane %v2647, 2
        %v2649 = vadd.f32 %v2647, %v2648
        %v2650 = vrot.slane %v2649, 1
        %v2651 = vadd.f32 %v2649, %v2650
        %v2652 = vmul.f32 %v2633, %v595
        %v2653 = vmul.f32 %v2639, %v595
        %v2654 = vmul.f32 %v2645, %v595
        %v2655 = vmul.f32 %v2651, %v595
        %v2656 = vmul.f32 %v2553, %v2553
        %v2657 = vmul.f32 %v2555, %v2555
        %v2658 = vmul.f32 %v2624, %v2624
        %v2659 = vmul.f32 %v2626, %v2626
        %v2660 = vrot.slane %v2656, 4
        %v2661 = vadd.f32 %v2656, %v2660
        %v2662 = vrot.slane %v2661, 2
        %v2663 = vadd.f32 %v2661, %v2662
        %v2664 = vrot.slane %v2663, 1
        %v2665 = vadd.f32 %v2663, %v2664
        %v2666 = vrot.slane %v2657, 4
        %v2667 = vadd.f32 %v2657, %v2666
        %v2668 = vrot.slane %v2667, 2
        %v2669 = vadd.f32 %v2667, %v2668
        %v2670 = vrot.slane %v2669, 1
        %v2671 = vadd.f32 %v2669, %v2670
        %v2672 = vrot.slane %v2658, 4
        %v2673 = vadd.f32 %v2658, %v2672
        %v2674 = vrot.slane %v2673, 2
        %v2675 = vadd.f32 %v2673, %v2674
        %v2676 = vrot.slane %v2675, 1
        %v2677 = vadd.f32 %v2675, %v2676
        %v2678 = vrot.slane %v2659, 4
        %v2679 = vadd.f32 %v2659, %v2678
        %v2680 = vrot.slane %v2679, 2
        %v2681 = vadd.f32 %v2679, %v2680
        %v2682 = vrot.slane %v2681, 1
        %v2683 = vadd.f32 %v2681, %v2682
        %v2684 = vmul.f32 %v2665, %v595
        %v2685 = vmul.f32 %v2671, %v595
        %v2686 = vmul.f32 %v2677, %v595
        %v2687 = vmul.f32 %v2683, %v595
        %v2688 = vmul.f32 %v2652, %v2652
        %v2689 = vmul.f32 %v2653, %v2653
        %v2690 = vmul.f32 %v2654, %v2654
        %v2691 = vmul.f32 %v2655, %v2655
        %v2692 = vsub.f32 %v2684, %v2688
        %v2693 = vsub.f32 %v2685, %v2689
        %v2694 = vsub.f32 %v2686, %v2690
        %v2695 = vsub.f32 %v2687, %v2691
        %v2696 = vmax.f32 %v2692, 0.0
        %v2697 = vmax.f32 %v2693, 0.0
        %v2698 = vmax.f32 %v2694, 0.0
        %v2699 = vmax.f32 %v2695, 0.0
        %v2700 = vsub.f32 %v2553, %v2652
        %v2701 = vsub.f32 %v2555, %v2653
        %v2702 = vsub.f32 %v2624, %v2654
        %v2703 = vsub.f32 %v2626, %v2655
        %v2704 = vadd.f32 %v2696, 0.001
        %v2705 = vadd.f32 %v2697, 0.001
        %v2706 = vadd.f32 %v2698, 0.001
        %v2707 = vadd.f32 %v2699, 0.001
        %v2708 = vrsqrt.pop %v2704
        %v2709 = vrsqrt.pop %v2705
        %v2710 = vrsqrt.pop %v2706
        %v2711 = vrsqrt.pop %v2707
        %v2716 = vcombine.low %v2708, %v2709
        %v2717 = vcombine.low %v2710, %v2711
        %v2719 = vunpack.c.l.s4 1966171168
        %v2720 = vunpack.c.0.s8 %v2719
        %v2721 = vlaneseq
        %v2722 = vshrl.u32 %v2721, 7
        %v2723 = vsub.s32 %v2720, %v2722
        %v2724 = vrot.slane %v2716, %v2723
        %v2726 = vunpack.c.l.s4 1966171168
        %v2727 = vunpack.c.0.s8 %v2726
        %v2728 = vlaneseq
        %v2729 = vshrl.u32 %v2728, 7
        %v2730 = vsub.s32 %v2727, %v2729
        %v2731 = vrot.slane %v2717, %v2730
        %v2732 = vcombine.low %v2724, %v2731
        %v2734 = vunpack.c.l.s4 1966171168
        %v2735 = vunpack.c.0.s8 %v2734
        %v2736 = vlaneseq
        %v2737 = vshrl.u32 %v2736, 7
        %v2738 = vsub.s32 %v2735, %v2737
        %v2739 = vrot.slane %v2732, %v2738
        %v2741 = vmul.f32 %v424, %v2739
        %v2743 = vlaneseq
        %v2744 = vshrl.u32 %v2743, 7
        %v2745 = vsub.s32 0, %v2744
        %v2746 = vrot.slane %v2741, %v2745
        %v2747 = vlaneseq
        %v2748 = vshrl.u32 %v2747, 7
        %v2749 = vsub.s32 1, %v2748
        %v2750 = vrot.slane %v2741, %v2749
        %v2751 = vlaneseq
        %v2752 = vshrl.u32 %v2751, 7
        %v2753 = vsub.s32 2, %v2752
        %v2754 = vrot.slane %v2741, %v2753
        %v2755 = vlaneseq
        %v2756 = vshrl.u32 %v2755, 7
        %v2757 = vsub.s32 3, %v2756
        %v2758 = vrot.slane %v2741, %v2757
        %v2763 = vmul.f32 %v2700, %v2746
        %v2764 = vmul.f32 %v2701, %v2750
        %v2765 = vmul.f32 %v2702, %v2754
        %v2766 = vmul.f32 %v2703, %v2758
        %s2767 = scalar_lea.vmem %s303, 192 [#allocation4]
        %v2768 = vld [vmem:[%s2767] sm:$0xff]
        %v2769 = vld [vmem:[%s2767 + $0x8] sm:$0xff]
        %v2770 = vld [vmem:[%s2767 + $0x10] sm:$0xff]
        %v2771 = vld [vmem:[%s2767 + $0x18] sm:$0xff]
        %v2772 = vadd.f32 %v2763, %v2768
        %v2773 = vadd.f32 %v2764, %v2769
        %v2774 = vadd.f32 %v2765, %v2770
        %v2775 = vadd.f32 %v2766, %v2771
        %v2776 = vmul.f32 %v2772, 0.5
        %v2777 = vtanh.pop %v2776
        %v2778 = vadd.f32 %v2777, 1.0
        %v2779 = vmul.f32 %v2778, 0.5
        %v2780 = vmul.f32 %v2779, %v2445
        %v2781 = vmul.f32 %v2773, 0.5
        %v2782 = vtanh.pop %v2781
        %v2783 = vadd.f32 %v2782, 1.0
        %v2784 = vmul.f32 %v2783, 0.5
        %v2785 = vtanh.pop %v2775
        %v2786 = vmul.f32 %v2784, %v2785
        %v2787 = vadd.f32 %v2780, %v2786
        %v2788 = vrot.slane %v2787, 4
        %v2789 = vadd.f32 %v2787, %v2788
        %v2790 = vrot.slane %v2789, 2
        %v2791 = vadd.f32 %v2789, %v2790
        %v2792 = vrot.slane %v2791, 1
        %v2793 = vadd.f32 %v2791, %v2792
        %v2794 = vmul.f32 %v2793, %v595
        %v2795 = vmul.f32 %v2787, %v2787
        %v2796 = vrot.slane %v2795, 4
        %v2797 = vadd.f32 %v2795, %v2796
        %v2798 = vrot.slane %v2797, 2
        %v2799 = vadd.f32 %v2797, %v2798
        %v2800 = vrot.slane %v2799, 1
        %v2801 = vadd.f32 %v2799, %v2800
        %v2802 = vmul.f32 %v2801, %v595
        %v2803 = vmul.f32 %v2794, %v2794
        %v2804 = vsub.f32 %v2802, %v2803
        %v2805 = vmax.f32 %v2804, 0.0
        %v2806 = vsub.f32 %v2787, %v2794
        %v2807 = vadd.f32 %v2805, 0.001
        %v2808 = vrsqrt.pop %v2807
        %v2809 = vmul.f32 %v425, %v2808
        %v2811 = vlaneseq
        %v2812 = vshrl.u32 %v2811, 7
        %v2813 = vsub.s32 0, %v2812
        %v2814 = vrot.slane %v2809, %v2813
        %v2816 = vmul.f32 %v2806, %v2814
        %v2817 = vadd.f32 %v2816, %v764
        %v2818 = vmul.f32 %v2774, 0.5
        %v2819 = vtanh.pop %v2818
        %v2820 = vadd.f32 %v2819, 1.0
        %v2821 = vmul.f32 %v2820, 0.5
        %v2822 = vtanh.pop %v2817
        %v2823 = vmul.f32 %v2821, %v2822
        %s2824 = scalar_lea.vmem %s349, 96 [#allocation13]
        %2825 = vst [vmem:[%s2824] sm:$0xff] %v2823
        %s2826 = scalar_lea.vmem %s349, 104 [#allocation13]
        %2827 = vst [vmem:[%s2826] sm:$0xff] %v2787
        %2828 = vmatprep.subr.mxu0 %v421
        %2829 = vmatpush1.msra.mxu0 %v420
        %2830 = vmatprep.subr.mxu0 %v417
        %2831 = vmatpush1.msra.mxu0 %v416
        %2832 = vmatprep.subr.mxu0 %v413
        %2833 = vmatpush1.msra.mxu0 %v412
        %2834 = vmatprep.subr.mxu0 %v409
        %2835 = vmatpush1.msra.mxu0 %v408
        %2836 = vmatprep.subr.mxu0 %v405
        %2837 = vmatpush1.msra.mxu0 %v404
        %2838 = vmatprep.subr.mxu0 %v401
        %2839 = vmatpush1.msra.mxu0 %v400
        %2840 = vmatprep.subr.mxu0 %v397
        %2841 = vmatpush1.msra.mxu0 %v396
        %2842 = vmatprep.subr.mxu0 %v393
        %2843 = vmatpush1.msra.mxu0 %v392
        %2844 = vmatprep.subr.mxu0 %v389
        %2845 = vmatpush1.msra.mxu0 %v388
        %2846 = vmatprep.subr.mxu0 %v385
        %2847 = vmatpush1.msra.mxu0 %v384
        %2848 = vmatprep.subr.mxu0 %v381
        %2849 = vmatpush1.msra.mxu0 %v380
        %2850 = vmatprep.subr.mxu0 %v377
        %2851 = vmatpush1.msra.mxu0 %v376
        %2852 = vmatprep.subr.mxu0 %v373
        %2853 = vmatpush1.msra.mxu0 %v372
        %2854 = vmatprep.subr.mxu0 %v369
        %2855 = vmatpush1.msra.mxu0 %v368
        %2856 = vmatprep.subr.mxu0 %v365
        %2857 = vmatpush1.msra.mxu0 %v364
        %2858 = vmatprep.subr.mxu0 %v361
        %2859 = vmatpush1.msra.mxu0 %v360
        %2860 = vmatprep.subr.mxu0 0.0
        %2861 = vmatpush2.msra.mxu0 0.0
        %2862 = vmatprep.subr.mxu0 0.0
        %2863 = vmatpush2.msra.mxu0 0.0
        %2864 = vmatprep.subr.mxu0 0.0
        %2865 = vmatpush2.msra.mxu0 0.0
        %2866 = vmatprep.subr.mxu0 0.0
        %2867 = vmatpush2.msra.mxu0 0.0
        %2868 = vmatprep.subr.mxu0 0.0
        %2869 = vmatpush2.msra.mxu0 0.0
        %2870 = vmatprep.subr.mxu0 0.0
        %2871 = vmatpush2.msra.mxu0 0.0
        %2872 = vmatprep.subr.mxu0 0.0
        %2873 = vmatpush2.msra.mxu0 0.0
        %2874 = vmatprep.subr.mxu0 0.0
        %2875 = vmatpush2.msra.mxu0 0.0
        %2876 = vmatprep.subr.mxu0 0.0
        %2877 = vmatpush2.msra.mxu0 0.0
        %2878 = vmatprep.subr.mxu0 0.0
        %2879 = vmatpush2.msra.mxu0 0.0
        %2880 = vmatprep.subr.mxu0 0.0
        %2881 = vmatpush2.msra.mxu0 0.0
        %2882 = vmatprep.subr.mxu0 0.0
        %2883 = vmatpush2.msra.mxu0 0.0
        %2884 = vmatprep.subr.mxu0 0.0
        %2885 = vmatpush2.msra.mxu0 0.0
        %2886 = vmatprep.subr.mxu0 0.0
        %2887 = vmatpush2.msra.mxu0 0.0
        %2888 = vmatprep.subr.mxu0 0.0
        %2889 = vmatpush2.msra.mxu0 0.0
        %2890 = vmatprep.subr.mxu0 0.0
        %2891 = vmatpush2.msra.mxu0 0.0
        %2892 = vmatprep.mubr.f32.mxu0 0.0
        %2893 = vmatmul.mubr.f32.gmra.mxu0 %v2823
        %v2894 = vpop.f32.mrf.mxu0
        %v2895 = vadd.f32 0.0, %v2894
        %v2896 = vpop.f32.mrf.mxu0
        %v2897 = vadd.f32 0.0, %v2896
        %2898 = vdwg.mxu0
        %2899 = vmatprep.subr.mxu0 %v423
        %2900 = vmatpush1.msra.mxu0 %v422
        %2901 = vmatprep.subr.mxu0 %v419
        %2902 = vmatpush1.msra.mxu0 %v418
        %2903 = vmatprep.subr.mxu0 %v415
        %2904 = vmatpush1.msra.mxu0 %v414
        %2905 = vmatprep.subr.mxu0 %v411
        %2906 = vmatpush1.msra.mxu0 %v410
        %2907 = vmatprep.subr.mxu0 %v407
        %2908 = vmatpush1.msra.mxu0 %v406
        %2909 = vmatprep.subr.mxu0 %v403
        %2910 = vmatpush1.msra.mxu0 %v402
        %2911 = vmatprep.subr.mxu0 %v399
        %2912 = vmatpush1.msra.mxu0 %v398
        %2913 = vmatprep.subr.mxu0 %v395
        %2914 = vmatpush1.msra.mxu0 %v394
        %2915 = vmatprep.subr.mxu0 %v391
        %2916 = vmatpush1.msra.mxu0 %v390
        %2917 = vmatprep.subr.mxu0 %v387
        %2918 = vmatpush1.msra.mxu0 %v386
        %2919 = vmatprep.subr.mxu0 %v383
        %2920 = vmatpush1.msra.mxu0 %v382
        %2921 = vmatprep.subr.mxu0 %v379
        %2922 = vmatpush1.msra.mxu0 %v378
        %2923 = vmatprep.subr.mxu0 %v375
        %2924 = vmatpush1.msra.mxu0 %v374
        %2925 = vmatprep.subr.mxu0 %v371
        %2926 = vmatpush1.msra.mxu0 %v370
        %2927 = vmatprep.subr.mxu0 %v367
        %2928 = vmatpush1.msra.mxu0 %v366
        %2929 = vmatprep.subr.mxu0 %v363
        %2930 = vmatpush1.msra.mxu0 %v362
        %2931 = vmatprep.subr.mxu0 0.0
        %2932 = vmatpush2.msra.mxu0 0.0
        %2933 = vmatprep.subr.mxu0 0.0
        %2934 = vmatpush2.msra.mxu0 0.0
        %2935 = vmatprep.subr.mxu0 0.0
        %2936 = vmatpush2.msra.mxu0 0.0
        %2937 = vmatprep.subr.mxu0 0.0
        %2938 = vmatpush2.msra.mxu0 0.0
        %2939 = vmatprep.subr.mxu0 0.0
        %2940 = vmatpush2.msra.mxu0 0.0
        %2941 = vmatprep.subr.mxu0 0.0
        %2942 = vmatpush2.msra.mxu0 0.0
        %2943 = vmatprep.subr.mxu0 0.0
        %2944 = vmatpush2.msra.mxu0 0.0
        %2945 = vmatprep.subr.mxu0 0.0
        %2946 = vmatpush2.msra.mxu0 0.0
        %2947 = vmatprep.subr.mxu0 0.0
        %2948 = vmatpush2.msra.mxu0 0.0
        %2949 = vmatprep.subr.mxu0 0.0
        %2950 = vmatpush2.msra.mxu0 0.0
        %2951 = vmatprep.subr.mxu0 0.0
        %2952 = vmatpush2.msra.mxu0 0.0
        %2953 = vmatprep.subr.mxu0 0.0
        %2954 = vmatpush2.msra.mxu0 0.0
        %2955 = vmatprep.subr.mxu0 0.0
        %2956 = vmatpush2.msra.mxu0 0.0
        %2957 = vmatprep.subr.mxu0 0.0
        %2958 = vmatpush2.msra.mxu0 0.0
        %2959 = vmatprep.subr.mxu0 0.0
        %2960 = vmatpush2.msra.mxu0 0.0
        %2961 = vmatprep.subr.mxu0 0.0
        %2962 = vmatpush2.msra.mxu0 0.0
        %2963 = vmatprep.mubr.f32.mxu0 0.0
        %2964 = vmatmul.mubr.f32.gmra.mxu0 %v2823
        %v2965 = vpop.f32.mrf.mxu0
        %v2966 = vadd.f32 0.0, %v2965
        %v2967 = vpop.f32.mrf.mxu0
        %v2968 = vadd.f32 0.0, %v2967
        %2969 = vdwg.mxu0
        %v2970 = vrot.slane %v2895, 4
        %v2971 = vadd.f32 %v2895, %v2970
        %v2972 = vrot.slane %v2971, 2
        %v2973 = vadd.f32 %v2971, %v2972
        %v2974 = vrot.slane %v2973, 1
        %v2975 = vadd.f32 %v2973, %v2974
        %v2976 = vrot.slane %v2897, 4
        %v2977 = vadd.f32 %v2897, %v2976
        %v2978 = vrot.slane %v2977, 2
        %v2979 = vadd.f32 %v2977, %v2978
        %v2980 = vrot.slane %v2979, 1
        %v2981 = vadd.f32 %v2979, %v2980
        %v2982 = vrot.slane %v2966, 4
        %v2983 = vadd.f32 %v2966, %v2982
        %v2984 = vrot.slane %v2983, 2
        %v2985 = vadd.f32 %v2983, %v2984
        %v2986 = vrot.slane %v2985, 1
        %v2987 = vadd.f32 %v2985, %v2986
        %v2988 = vrot.slane %v2968, 4
        %v2989 = vadd.f32 %v2968, %v2988
        %v2990 = vrot.slane %v2989, 2
        %v2991 = vadd.f32 %v2989, %v2990
        %v2992 = vrot.slane %v2991, 1
        %v2993 = vadd.f32 %v2991, %v2992
        %v2994 = vmul.f32 %v2975, %v595
        %v2995 = vmul.f32 %v2981, %v595
        %v2996 = vmul.f32 %v2987, %v595
        %v2997 = vmul.f32 %v2993, %v595
        %v2998 = vmul.f32 %v2895, %v2895
        %v2999 = vmul.f32 %v2897, %v2897
        %v3000 = vmul.f32 %v2966, %v2966
        %v3001 = vmul.f32 %v2968, %v2968
        %v3002 = vrot.slane %v2998, 4
        %v3003 = vadd.f32 %v2998, %v3002
        %v3004 = vrot.slane %v3003, 2
        %v3005 = vadd.f32 %v3003, %v3004
        %v3006 = vrot.slane %v3005, 1
        %v3007 = vadd.f32 %v3005, %v3006
        %v3008 = vrot.slane %v2999, 4
        %v3009 = vadd.f32 %v2999, %v3008
        %v3010 = vrot.slane %v3009, 2
        %v3011 = vadd.f32 %v3009, %v3010
        %v3012 = vrot.slane %v3011, 1
        %v3013 = vadd.f32 %v3011, %v3012
        %v3014 = vrot.slane %v3000, 4
        %v3015 = vadd.f32 %v3000, %v3014
        %v3016 = vrot.slane %v3015, 2
        %v3017 = vadd.f32 %v3015, %v3016
        %v3018 = vrot.slane %v3017, 1
        %v3019 = vadd.f32 %v3017, %v3018
        %v3020 = vrot.slane %v3001, 4
        %v3021 = vadd.f32 %v3001, %v3020
        %v3022 = vrot.slane %v3021, 2
        %v3023 = vadd.f32 %v3021, %v3022
        %v3024 = vrot.slane %v3023, 1
        %v3025 = vadd.f32 %v3023, %v3024
        %v3026 = vmul.f32 %v3007, %v595
        %v3027 = vmul.f32 %v3013, %v595
        %v3028 = vmul.f32 %v3019, %v595
        %v3029 = vmul.f32 %v3025, %v595
        %v3030 = vmul.f32 %v2994, %v2994
        %v3031 = vmul.f32 %v2995, %v2995
        %v3032 = vmul.f32 %v2996, %v2996
        %v3033 = vmul.f32 %v2997, %v2997
        %v3034 = vsub.f32 %v3026, %v3030
        %v3035 = vsub.f32 %v3027, %v3031
        %v3036 = vsub.f32 %v3028, %v3032
        %v3037 = vsub.f32 %v3029, %v3033
        %v3038 = vmax.f32 %v3034, 0.0
        %v3039 = vmax.f32 %v3035, 0.0
        %v3040 = vmax.f32 %v3036, 0.0
        %v3041 = vmax.f32 %v3037, 0.0
        %v3042 = vsub.f32 %v2895, %v2994
        %v3043 = vsub.f32 %v2897, %v2995
        %v3044 = vsub.f32 %v2966, %v2996
        %v3045 = vsub.f32 %v2968, %v2997
        %v3046 = vadd.f32 %v3038, 0.001
        %v3047 = vadd.f32 %v3039, 0.001
        %v3048 = vadd.f32 %v3040, 0.001
        %v3049 = vadd.f32 %v3041, 0.001
        %v3050 = vrsqrt.pop %v3046
        %v3051 = vrsqrt.pop %v3047
        %v3052 = vrsqrt.pop %v3048
        %v3053 = vrsqrt.pop %v3049
        %v3058 = vcombine.low %v3050, %v3051
        %v3059 = vcombine.low %v3052, %v3053
        %v3061 = vunpack.c.l.s4 1966171168
        %v3062 = vunpack.c.0.s8 %v3061
        %v3063 = vlaneseq
        %v3064 = vshrl.u32 %v3063, 7
        %v3065 = vsub.s32 %v3062, %v3064
        %v3066 = vrot.slane %v3058, %v3065
        %v3068 = vunpack.c.l.s4 1966171168
        %v3069 = vunpack.c.0.s8 %v3068
        %v3070 = vlaneseq
        %v3071 = vshrl.u32 %v3070, 7
        %v3072 = vsub.s32 %v3069, %v3071
        %v3073 = vrot.slane %v3059, %v3072
        %v3074 = vcombine.low %v3066, %v3073
        %v3076 = vunpack.c.l.s4 1966171168
        %v3077 = vunpack.c.0.s8 %v3076
        %v3078 = vlaneseq
        %v3079 = vshrl.u32 %v3078, 7
        %v3080 = vsub.s32 %v3077, %v3079
        %v3081 = vrot.slane %v3074, %v3080
        %v3083 = vmul.f32 %v424, %v3081
        %v3085 = vlaneseq
        %v3086 = vshrl.u32 %v3085, 7
        %v3087 = vsub.s32 0, %v3086
        %v3088 = vrot.slane %v3083, %v3087
        %v3089 = vlaneseq
        %v3090 = vshrl.u32 %v3089, 7
        %v3091 = vsub.s32 1, %v3090
        %v3092 = vrot.slane %v3083, %v3091
        %v3093 = vlaneseq
        %v3094 = vshrl.u32 %v3093, 7
        %v3095 = vsub.s32 2, %v3094
        %v3096 = vrot.slane %v3083, %v3095
        %v3097 = vlaneseq
        %v3098 = vshrl.u32 %v3097, 7
        %v3099 = vsub.s32 3, %v3098
        %v3100 = vrot.slane %v3083, %v3099
        %v3105 = vmul.f32 %v3042, %v3088
        %v3106 = vmul.f32 %v3043, %v3092
        %v3107 = vmul.f32 %v3044, %v3096
        %v3108 = vmul.f32 %v3045, %v3100
        %s3109 = scalar_lea.vmem %s303, 224 [#allocation4]
        %v3110 = vld [vmem:[%s3109] sm:$0xff]
        %v3111 = vld [vmem:[%s3109 + $0x8] sm:$0xff]
        %v3112 = vld [vmem:[%s3109 + $0x10] sm:$0xff]
        %v3113 = vld [vmem:[%s3109 + $0x18] sm:$0xff]
        %v3114 = vadd.f32 %v3105, %v3110
        %v3115 = vadd.f32 %v3106, %v3111
        %v3116 = vadd.f32 %v3107, %v3112
        %v3117 = vadd.f32 %v3108, %v3113
        %v3118 = vmul.f32 %v3114, 0.5
        %v3119 = vtanh.pop %v3118
        %v3120 = vadd.f32 %v3119, 1.0
        %v3121 = vmul.f32 %v3120, 0.5
        %v3122 = vmul.f32 %v3121, %v2787
        %v3123 = vmul.f32 %v3115, 0.5
        %v3124 = vtanh.pop %v3123
        %v3125 = vadd.f32 %v3124, 1.0
        %v3126 = vmul.f32 %v3125, 0.5
        %v3127 = vtanh.pop %v3117
        %v3128 = vmul.f32 %v3126, %v3127
        %v3129 = vadd.f32 %v3122, %v3128
        %v3130 = vrot.slane %v3129, 4
        %v3131 = vadd.f32 %v3129, %v3130
        %v3132 = vrot.slane %v3131, 2
        %v3133 = vadd.f32 %v3131, %v3132
        %v3134 = vrot.slane %v3133, 1
        %v3135 = vadd.f32 %v3133, %v3134
        %v3136 = vmul.f32 %v3135, %v595
        %v3137 = vmul.f32 %v3129, %v3129
        %v3138 = vrot.slane %v3137, 4
        %v3139 = vadd.f32 %v3137, %v3138
        %v3140 = vrot.slane %v3139, 2
        %v3141 = vadd.f32 %v3139, %v3140
        %v3142 = vrot.slane %v3141, 1
        %v3143 = vadd.f32 %v3141, %v3142
        %v3144 = vmul.f32 %v3143, %v595
        %v3145 = vmul.f32 %v3136, %v3136
        %v3146 = vsub.f32 %v3144, %v3145
        %v3147 = vmax.f32 %v3146, 0.0
        %v3148 = vsub.f32 %v3129, %v3136
        %v3149 = vadd.f32 %v3147, 0.001
        %v3150 = vrsqrt.pop %v3149
        %v3151 = vmul.f32 %v425, %v3150
        %v3153 = vlaneseq
        %v3154 = vshrl.u32 %v3153, 7
        %v3155 = vsub.s32 0, %v3154
        %v3156 = vrot.slane %v3151, %v3155
        %v3158 = vmul.f32 %v3148, %v3156
        %v3159 = vadd.f32 %v3158, %v764
        %v3160 = vmul.f32 %v3116, 0.5
        %v3161 = vtanh.pop %v3160
        %v3162 = vadd.f32 %v3161, 1.0
        %v3163 = vmul.f32 %v3162, 0.5
        %v3164 = vtanh.pop %v3159
        %v3165 = vmul.f32 %v3163, %v3164
        %s3166 = scalar_lea.vmem %s349, 112 [#allocation13]
        %3167 = vst [vmem:[%s3166] sm:$0xff] %v3165
        %s3168 = scalar_lea.vmem %s349, 120 [#allocation13]
        %3169 = vst [vmem:[%s3168] sm:$0xff] %v3129
        %3170 = vst [vmem:[#allocation2] sm:$0xff] %v3165
        %3171 = vst [vmem:[#allocation3] sm:$0xff] %v3129
        %s3172 = sand.u32 %s186, 1
        %s3173 = scalar_lea.sflag [#allocation6], %s3172
        %s3174 = sand.u32 %s186, 1
        %s3175 = smul.addr %s3174, 128
        %s3176 = scalar_lea.vmem [#allocation13], %s3175
        // Predicated region
        $region73: #{tpu_custom_call.1} parent=47 // pred_check
          %p3177 = pneg %p196
        $region74: #{tpu_custom_call.1} parent=47 // pred_check_branch
          %3179 = sbr.rel (%p3177) target = $region76
        $region75: #{tpu_custom_call.1} parent=47 // pred_region
          %s3180 = smul.u32 8, %s26
          %s3182 = ssub.s32 2048, 2048
          %3183 = vsyncadd %s3173, %s3182
          %s3184 = smul.addr %s3180, 2
          %s3185 = smul.addr %s3184, 128
          %s3186 = scalar_lea.hbm %s7, %s3185
          %s3187 = sshll.u32 %s3176, 4
          %s3188 = int_to_ptr.vmem [resolvable:$true] %s3187
          %3193 = dma.vmem_to_hbm [thread:$0]  %s3188, 2048, %s3186, %s3173, 128, 128, 8
        $region76: #{tpu_custom_call.1} parent=47 // pred_fallthru
          _
      $region48: #{tpu_custom_call.1} parent=5 // pred_fallthru
        _
      %p3194 = scmp.le.s32.totalorder 2, %s21
      // Predicated region
      $region77: #{tpu_custom_call.1} parent=5 // pred_check
        %p3195 = pneg %p3194
      $region78: #{tpu_custom_call.1} parent=5 // pred_check_branch
        %3197 = sbr.rel (%p3195) target = $region80
      $region79: #{tpu_custom_call.1} parent=5 // pred_region
        %s3198 = ssub.s32 %s21, 2
        // Predicated region
        $region81: #{tpu_custom_call.1} parent=79 // pred_check
          %p3199 = pneg %p202
        $region82: #{tpu_custom_call.1} parent=79 // pred_check_branch
          %3201 = sbr.rel (%p3199) target = $region84
        $region83: #{tpu_custom_call.1} parent=79 // pred_region
          %s3202 = sand.u32 %s187, 1
          %s3203 = scalar_lea.sflag [#allocation6], %s3202
          %s3204 = sand.u32 %s187, 1
          %s3205 = smul.addr %s3204, 128
          %s3206 = scalar_lea.vmem [#allocation13], %s3205
          %3207 = dma.done %s3203, 2048
        $region84: #{tpu_custom_call.1} parent=79 // pred_fallthru
          _
      $region80: #{tpu_custom_call.1} parent=5 // pred_fallthru
        _
    $region6: #{tpu_custom_call.1} parent=1 // loop_footer
      %s25 = sadd.s32 1, %s21
    $region7: #{tpu_custom_call.1} parent=1 // loop_footer_branch
      %20 = sbr.rel target = $region3
    $region8: #{tpu_custom_call.1} parent=1 // loop_exit
      _
    %3208 = vsyncpa [#allocation5], 1
    %s3209 = scalar_lea.sflag [#allocation5], 1
    %3210 = vsyncpa %s3209, 1
    %3211 = vsyncpa [#allocation8], 1
    %3212 = vsyncpa [#allocation11], 1
    %3213 = vsyncpa [#allocation6], 1
    %s3214 = scalar_lea.sflag [#allocation6], 1
    %3215 = vsyncpa %s3214, 1

</llo_original>
